<compile_context>
chip_gen: v5e
topology: v5e:2x2
jax: 0.10.0
libtpu: 0.0.40
codegen_flags: <defaults>
</compile_context>

<pallas_src>
import jax
import jax.numpy as jnp
from jax.experimental import pallas as pl
from jax.experimental.pallas import tpu as pltpu


def _conv_stats_kernel(x_ref, w_ref, conv_ref, psum_ref, psq_ref, acc_ref):
    """3x3 conv (halo already in x_ref) as 9 bf16 MXU matmuls accumulated into
    a f32 VMEM scratch, plus per-tile per-channel sum / sum-of-squares."""
    _, th, W, Cp = conv_ref.shape

    acc_ref[...] = jnp.zeros_like(acc_ref)
    for t in range(9):                                # unrolled: 9 MXU matmuls
        dy, dx = divmod(t, 3)
        xs = x_ref[0, dy:dy + th, dx:dx + W, :].reshape(th * W, Cp)
        acc_ref[...] += jnp.dot(xs, w_ref[t],
                                preferred_element_type=jnp.float32)

    acc = acc_ref[...]                                # single f32 read-back
    conv_ref[...] = acc.reshape(1, th, W, Cp).astype(conv_ref.dtype)  # bf16
    psum_ref[0] = jnp.sum(acc, axis=0, keepdims=True)
    psq_ref[0] = jnp.sum(acc * acc, axis=0, keepdims=True)


def _bn_res_relu_kernel(x_ref, conv_ref, scale_ref, shift_ref, y_ref):
    """y = relu(x + conv * scale + shift)  (scale/shift fold BN mean/var)."""
    s = scale_ref[...].reshape(1, 1, 1, -1)
    b = shift_ref[...].reshape(1, 1, 1, -1)
    y_ref[...] = jnp.maximum(
        x_ref[...].astype(jnp.float32) + conv_ref[...].astype(jnp.float32) * s + b,
        0.0)


def _pick_row_tile(H, row_tile=None):
    if row_tile is not None:
        assert H % row_tile == 0, "row_tile must divide H"
        return int(row_tile)
    if H <= 32:                      # small images: one tile per image
        return H
    for th in range(32, 7, -1):      # 8..32 rows, must divide H
        if H % th == 0:
            return th
    return H                         # TODO(synk): ragged last tile for prime H


def residual_block_forward(x_nchw, weight, eps=1e-5, row_tile=None):
    """Forward of ResidualBlock: relu(x + BatchNorm2d(conv3x3(x))), train-mode BN."""
    N, C, H, W = x_nchw.shape
    Cout, Cin, KH, KW = weight.shape
    assert (Cout, Cin, KH, KW) == (C, C, 3, 3)

    Cp = int(pl.cdiv(C, 128)) * 128          # lane-dense channel padding
    th = _pick_row_tile(H, row_tile)
    nH = H // th
    Wp2 = W + 2

    # NCHW -> NHWC (channels on the 128-lane axis), pad channels, cast to bf16.
    x_nhwc = jnp.transpose(x_nchw, (0, 2, 3, 1)).astype(jnp.bfloat16)
    x_nhwc = jnp.pad(x_nhwc, ((0, 0), (0, 0), (0, 0), (0, Cp - C)))

    # 1-pixel spatial zero padding once in HBM; overlapping 2-row-halo slabs.
    xpad = jnp.pad(x_nhwc, ((0, 0), (1, 1), (1, 1), (0, 0)))
    if nH == 1:
        x_tiles = xpad                                        # (N, H+2, W+2, Cp)
    else:
        x_tiles = jnp.stack(
            [xpad[:, j * th:j * th + th + 2] for j in range(nH)], axis=1
        ).reshape(N * nH, th + 2, Wp2, Cp)

    # (Cout, Cin, 3, 3) -> (3, 3, Cin, Cout) -> (9, Cin_p, Cout_p), bf16.
    w = jnp.transpose(weight, (2, 3, 1, 0)).reshape(9, C, C)
    w = jnp.pad(w, ((0, 0), (0, Cp - C), (0, Cp - C))).astype(jnp.bfloat16)

    # --- Phase 1: conv3x3 (9 bf16 MXU matmuls) + per-tile BN partial stats ---
    conv_out, psum, psq = pl.pallas_call(
        _conv_stats_kernel,
        out_shape=(
            jax.ShapeDtypeStruct((N * nH, th, W, Cp), jnp.bfloat16),
            jax.ShapeDtypeStruct((N * nH, 1, Cp), jnp.float32),
            jax.ShapeDtypeStruct((N * nH, 1, Cp), jnp.float32),
        ),
        grid_spec=pltpu.PrefetchScalarGridSpec(
            num_scalar_prefetch=0,
            grid=(N * nH,),
            in_specs=[
                pl.BlockSpec((1, th + 2, Wp2, Cp), lambda i: (i, 0, 0, 0)),
                # Full weight slab, constant index -> VMEM-resident, one DMA.
                pl.BlockSpec((9, Cp, Cp), lambda i: (0, 0, 0)),
            ],
            out_specs=[
                pl.BlockSpec((1, th, W, Cp), lambda i: (i, 0, 0, 0)),
                pl.BlockSpec((1, 1, Cp), lambda i: (i, 0, 0)),
                pl.BlockSpec((1, 1, Cp), lambda i: (i, 0, 0)),
            ],
            scratch_shapes=[pltpu.VMEM((th * W, Cp), jnp.float32)],
        ),
        compiler_params=pltpu.CompilerParams(
            dimension_semantics=("parallel",)),
    )(x_tiles, w)

    # --- Tiny global reduction + BN scale/shift folding (plain JAX) ----------
    cnt = jnp.float32(N * H * W)
    total = jnp.sum(psum[:, 0, :], axis=0)
    total_sq = jnp.sum(psq[:, 0, :], axis=0)
    mean = total / cnt
    # TODO(synk): E[x^2]-E[x]^2 cancels when |mean| >> std; switch to a
    # two-pass / Welford reduction if activations can be large.
    var = jnp.maximum(total_sq / cnt - mean * mean, 0.0)    # biased variance
    inv = jax.lax.rsqrt(var + eps)                          # gamma == 1 (fresh BN)
    ch_mask = jnp.arange(Cp) < C                            # neutralize pad lanes
    scale = jnp.where(ch_mask, inv, 1.0).reshape(1, Cp)
    shift = jnp.where(ch_mask, -mean * inv, 0.0).reshape(1, Cp)   # beta == 0

    # --- Phase 2: fused BN apply + residual + ReLU (lane-dense epilogue) -----
    x_res = x_nhwc.reshape(N * nH, th, W, Cp)
    y = pl.pallas_call(
        _bn_res_relu_kernel,
        out_shape=jax.ShapeDtypeStruct((N * nH, th, W, Cp), jnp.float32),
        grid_spec=pltpu.PrefetchScalarGridSpec(
            num_scalar_prefetch=0,
            grid=(N * nH,),
            in_specs=[
                pl.BlockSpec((1, th, W, Cp), lambda i: (i, 0, 0, 0)),
                pl.BlockSpec((1, th, W, Cp), lambda i: (i, 0, 0, 0)),
                pl.BlockSpec((1, Cp), lambda i: (0, 0)),
                pl.BlockSpec((1, Cp), lambda i: (0, 0)),
            ],
            out_specs=pl.BlockSpec((1, th, W, Cp), lambda i: (i, 0, 0, 0)),
        ),
        compiler_params=pltpu.CompilerParams(
            dimension_semantics=("parallel",)),
    )(x_res, conv_out, scale, shift)

    # Drop channel padding and return NCHW to match the PyTorch module.
    y = y.reshape(N, H, W, Cp)[..., :C]
    return jnp.transpose(y, (0, 3, 1, 2))


def _reference(x_nchw, weight, eps=1e-5):
    """Pure-JAX f32 reference: relu(x + train-mode BN(conv3x3(x)))."""
    conv = jax.lax.conv_general_dilated(
        x_nchw, weight, window_strides=(1, 1), padding="SAME",
        dimension_numbers=("NCHW", "OIHW", "NCHW"))
    mean = jnp.mean(conv, axis=(0, 2, 3), keepdims=True)
    var = jnp.mean(jnp.square(conv - mean), axis=(0, 2, 3), keepdims=True)
    h = (conv - mean) * jax.lax.rsqrt(var + eps)
    return jnp.maximum(x_nchw + h, 0.0)


if __name__ == "__main__":
    key = jax.random.PRNGKey(0)
    kx, kw = jax.random.split(key)
    N, C, H, W = 2, 4, 16, 16
    x = jax.random.normal(kx, (N, C, H, W), dtype=jnp.float32)
    # Conv2d-default-ish init scale ~ 1/sqrt(fan_in); exact init is irrelevant.
    weight = jax.random.normal(kw, (C, C, 3, 3), dtype=jnp.float32) / jnp.sqrt(C * 9.0)

    y_ref = _reference(x, weight)

    fwd = jax.jit(residual_block_forward, static_argnames=("row_tile",))
    # Exercise both the whole-image path and the row-tiled (2-row halo) path.
    for rt in (None, 8):
        y = jax.block_until_ready(fwd(x, weight, row_tile=rt))
        max_err = float(jnp.max(jnp.abs(y - y_ref)))
        # bf16 MXU inputs + bf16 intermediates vs f32 reference -> 3e-2 tolerance.
        if not bool(jnp.allclose(y, y_ref, atol=3e-2, rtol=3e-2)):
            raise AssertionError(
                f"Pallas output mismatch vs reference "
                f"(row_tile={rt}, max abs err {max_err:.3e})")
    print("KERNEL_OK")
</pallas_src>

<mosaic_0001>
module attributes {stable_mosaic.version = 11 : i64} {
  func.func @_conv_stats_kernel(%arg0: i32, %arg1: memref<1x18x18x128xbf16, #tpu.memory_space<vmem>>, %arg2: memref<9x128x128xbf16, #tpu.memory_space<vmem>>, %arg3: memref<1x16x16x128xbf16, #tpu.memory_space<vmem>>, %arg4: memref<1x1x128xf32, #tpu.memory_space<vmem>>, %arg5: memref<1x1x128xf32, #tpu.memory_space<vmem>>, %arg6: memref<256x128xf32, #tpu.memory_space<vmem>>) attributes {dimension_semantics = [#tpu.dimension_semantics<parallel>], iteration_bounds = array<i64: 2>, scalar_prefetch = 0 : i64, scratch_operands = 1 : i64, tpu.core_type = #tpu.core_type<tc>, window_params = [{transform_indices = @transform_0, window_bounds = array<i64: 1, 18, 18, 128>}, {pipeline_mode = #tpu.pipeline_mode<synchronous>, transform_indices = @transform_1, window_bounds = array<i64: 9, 128, 128>}, {transform_indices = @transform_2, window_bounds = array<i64: 1, 16, 16, 128>}, {transform_indices = @transform_3, window_bounds = array<i64: 1, 1, 128>}, {transform_indices = @transform_4, window_bounds = array<i64: 1, 1, 128>}]} {
    %cst = arith.constant 0.000000e+00 : f32
    %0 = vector.broadcast %cst : f32 to vector<256x128xf32>
    %c0 = arith.constant 0 : index
    %c0_0 = arith.constant 0 : index
    %1 = vector.load %arg6[%c0, %c0_0] : memref<256x128xf32, #tpu.memory_space<vmem>>, vector<256x128xf32>
    tpu.vector_store %arg6[%c0, %c0_0], %0 {strides = array<i32>} : memref<256x128xf32, #tpu.memory_space<vmem>>, vector<256x128xf32>,
    %c0_1 = arith.constant 0 : index
    %c0_2 = arith.constant 0 : index
    %c0_3 = arith.constant 0 : index
    %c0_4 = arith.constant 0 : index
    %2 = vector.load %arg1[%c0_1, %c0_2, %c0_3, %c0_4] : memref<1x18x18x128xbf16, #tpu.memory_space<vmem>>, vector<1x16x16x128xbf16>
    %3 = vector.shape_cast %2 : vector<1x16x16x128xbf16> to vector<16x16x128xbf16>
    %4 = vector.shape_cast %3 : vector<16x16x128xbf16> to vector<256x128xbf16>
    %c0_5 = arith.constant 0 : index
    %c0_6 = arith.constant 0 : index
    %5 = vector.load %arg6[%c0_5, %c0_6] : memref<256x128xf32, #tpu.memory_space<vmem>>, vector<256x128xf32>
    %c0_7 = arith.constant 0 : index
    %c0_8 = arith.constant 0 : index
    %c0_9 = arith.constant 0 : index
    %6 = vector.load %arg2[%c0_7, %c0_8, %c0_9] : memref<9x128x128xbf16, #tpu.memory_space<vmem>>, vector<1x128x128xbf16>
    %7 = vector.shape_cast %6 : vector<1x128x128xbf16> to vector<128x128xbf16>
    %cst_10 = arith.constant dense<0.000000e+00> : vector<256x128xf32>
    %8 = tpu.matmul %4, %7, %cst_10 {dimension_numbers = #tpu.dot_dimension_numbers<[1], [0], [0], [1], [0, 0, 1, 1], [], []>} : vector<256x128xbf16>, vector<128x128xbf16>, vector<256x128xf32> -> vector<256x128xf32>
    %9 = arith.addf %5, %8 : vector<256x128xf32>
    %c0_11 = arith.constant 0 : index
    %c0_12 = arith.constant 0 : index
    %10 = vector.load %arg6[%c0_11, %c0_12] : memref<256x128xf32, #tpu.memory_space<vmem>>, vector<256x128xf32>
    tpu.vector_store %arg6[%c0_11, %c0_12], %9 {strides = array<i32>} : memref<256x128xf32, #tpu.memory_space<vmem>>, vector<256x128xf32>,
    %c0_13 = arith.constant 0 : index
    %c0_14 = arith.constant 0 : index
    %c1 = arith.constant 1 : index
    %c0_15 = arith.constant 0 : index
    %11 = vector.load %arg1[%c0_13, %c0_14, %c1, %c0_15] : memref<1x18x18x128xbf16, #tpu.memory_space<vmem>>, vector<1x16x16x128xbf16>
    %12 = vector.shape_cast %11 : vector<1x16x16x128xbf16> to vector<16x16x128xbf16>
    %13 = vector.shape_cast %12 : vector<16x16x128xbf16> to vector<256x128xbf16>
    %c0_16 = arith.constant 0 : index
    %c0_17 = arith.constant 0 : index
    %14 = vector.load %arg6[%c0_16, %c0_17] : memref<256x128xf32, #tpu.memory_space<vmem>>, vector<256x128xf32>
    %c1_18 = arith.constant 1 : index
    %c0_19 = arith.constant 0 : index
    %c0_20 = arith.constant 0 : index
    %15 = vector.load %arg2[%c1_18, %c0_19, %c0_20] : memref<9x128x128xbf16, #tpu.memory_space<vmem>>, vector<1x128x128xbf16>
    %16 = vector.shape_cast %15 : vector<1x128x128xbf16> to vector<128x128xbf16>
    %cst_21 = arith.constant dense<0.000000e+00> : vector<256x128xf32>
    %17 = tpu.matmul %13, %16, %cst_21 {dimension_numbers = #tpu.dot_dimension_numbers<[1], [0], [0], [1], [0, 0, 1, 1], [], []>} : vector<256x128xbf16>, vector<128x128xbf16>, vector<256x128xf32> -> vector<256x128xf32>
    %18 = arith.addf %14, %17 : vector<256x128xf32>
    %c0_22 = arith.constant 0 : index
    %c0_23 = arith.constant 0 : index
    %19 = vector.load %arg6[%c0_22, %c0_23] : memref<256x128xf32, #tpu.memory_space<vmem>>, vector<256x128xf32>
    tpu.vector_store %arg6[%c0_22, %c0_23], %18 {strides = array<i32>} : memref<256x128xf32, #tpu.memory_space<vmem>>, vector<256x128xf32>,
    %c0_24 = arith.constant 0 : index
    %c0_25 = arith.constant 0 : index
    %c2 = arith.constant 2 : index
    %c0_26 = arith.constant 0 : index
    %20 = vector.load %arg1[%c0_24, %c0_25, %c2, %c0_26] : memref<1x18x18x128xbf16, #tpu.memory_space<vmem>>, vector<1x16x16x128xbf16>
    %21 = vector.shape_cast %20 : vector<1x16x16x128xbf16> to vector<16x16x128xbf16>
    %22 = vector.shape_cast %21 : vector<16x16x128xbf16> to vector<256x128xbf16>
    %c0_27 = arith.constant 0 : index
    %c0_28 = arith.constant 0 : index
    %23 = vector.load %arg6[%c0_27, %c0_28] : memref<256x128xf32, #tpu.memory_space<vmem>>, vector<256x128xf32>
    %c2_29 = arith.constant 2 : index
    %c0_30 = arith.constant 0 : index
    %c0_31 = arith.constant 0 : index
    %24 = vector.load %arg2[%c2_29, %c0_30, %c0_31] : memref<9x128x128xbf16, #tpu.memory_space<vmem>>, vector<1x128x128xbf16>
    %25 = vector.shape_cast %24 : vector<1x128x128xbf16> to vector<128x128xbf16>
    %cst_32 = arith.constant dense<0.000000e+00> : vector<256x128xf32>
    %26 = tpu.matmul %22, %25, %cst_32 {dimension_numbers = #tpu.dot_dimension_numbers<[1], [0], [0], [1], [0, 0, 1, 1], [], []>} : vector<256x128xbf16>, vector<128x128xbf16>, vector<256x128xf32> -> vector<256x128xf32>
    %27 = arith.addf %23, %26 : vector<256x128xf32>
    %c0_33 = arith.constant 0 : index
    %c0_34 = arith.constant 0 : index
    %28 = vector.load %arg6[%c0_33, %c0_34] : memref<256x128xf32, #tpu.memory_space<vmem>>, vector<256x128xf32>
    tpu.vector_store %arg6[%c0_33, %c0_34], %27 {strides = array<i32>} : memref<256x128xf32, #tpu.memory_space<vmem>>, vector<256x128xf32>,
    %c0_35 = arith.constant 0 : index
    %c1_36 = arith.constant 1 : index
    %c0_37 = arith.constant 0 : index
    %c0_38 = arith.constant 0 : index
    %29 = vector.load %arg1[%c0_35, %c1_36, %c0_37, %c0_38] : memref<1x18x18x128xbf16, #tpu.memory_space<vmem>>, vector<1x16x16x128xbf16>
    %30 = vector.shape_cast %29 : vector<1x16x16x128xbf16> to vector<16x16x128xbf16>
    %31 = vector.shape_cast %30 : vector<16x16x128xbf16> to vector<256x128xbf16>
    %c0_39 = arith.constant 0 : index
    %c0_40 = arith.constant 0 : index
    %32 = vector.load %arg6[%c0_39, %c0_40] : memref<256x128xf32, #tpu.memory_space<vmem>>, vector<256x128xf32>
    %c3 = arith.constant 3 : index
    %c0_41 = arith.constant 0 : index
    %c0_42 = arith.constant 0 : index
    %33 = vector.load %arg2[%c3, %c0_41, %c0_42] : memref<9x128x128xbf16, #tpu.memory_space<vmem>>, vector<1x128x128xbf16>
    %34 = vector.shape_cast %33 : vector<1x128x128xbf16> to vector<128x128xbf16>
    %cst_43 = arith.constant dense<0.000000e+00> : vector<256x128xf32>
    %35 = tpu.matmul %31, %34, %cst_43 {dimension_numbers = #tpu.dot_dimension_numbers<[1], [0], [0], [1], [0, 0, 1, 1], [], []>} : vector<256x128xbf16>, vector<128x128xbf16>, vector<256x128xf32> -> vector<256x128xf32>
    %36 = arith.addf %32, %35 : vector<256x128xf32>
    %c0_44 = arith.constant 0 : index
    %c0_45 = arith.constant 0 : index
    %37 = vector.load %arg6[%c0_44, %c0_45] : memref<256x128xf32, #tpu.memory_space<vmem>>, vector<256x128xf32>
    tpu.vector_store %arg6[%c0_44, %c0_45], %36 {strides = array<i32>} : memref<256x128xf32, #tpu.memory_space<vmem>>, vector<256x128xf32>,
    %c0_46 = arith.constant 0 : index
    %c1_47 = arith.constant 1 : index
    %c1_48 = arith.constant 1 : index
    %c0_49 = arith.constant 0 : index
    %38 = vector.load %arg1[%c0_46, %c1_47, %c1_48, %c0_49] : memref<1x18x18x128xbf16, #tpu.memory_space<vmem>>, vector<1x16x16x128xbf16>
    %39 = vector.shape_cast %38 : vector<1x16x16x128xbf16> to vector<16x16x128xbf16>
    %40 = vector.shape_cast %39 : vector<16x16x128xbf16> to vector<256x128xbf16>
    %c0_50 = arith.constant 0 : index
    %c0_51 = arith.constant 0 : index
    %41 = vector.load %arg6[%c0_50, %c0_51] : memref<256x128xf32, #tpu.memory_space<vmem>>, vector<256x128xf32>
    %c4 = arith.constant 4 : index
    %c0_52 = arith.constant 0 : index
    %c0_53 = arith.constant 0 : index
    %42 = vector.load %arg2[%c4, %c0_52, %c0_53] : memref<9x128x128xbf16, #tpu.memory_space<vmem>>, vector<1x128x128xbf16>
    %43 = vector.shape_cast %42 : vector<1x128x128xbf16> to vector<128x128xbf16>
    %cst_54 = arith.constant dense<0.000000e+00> : vector<256x128xf32>
    %44 = tpu.matmul %40, %43, %cst_54 {dimension_numbers = #tpu.dot_dimension_numbers<[1], [0], [0], [1], [0, 0, 1, 1], [], []>} : vector<256x128xbf16>, vector<128x128xbf16>, vector<256x128xf32> -> vector<256x128xf32>
    %45 = arith.addf %41, %44 : vector<256x128xf32>
    %c0_55 = arith.constant 0 : index
    %c0_56 = arith.constant 0 : index
    %46 = vector.load %arg6[%c0_55, %c0_56] : memref<256x128xf32, #tpu.memory_space<vmem>>, vector<256x128xf32>
    tpu.vector_store %arg6[%c0_55, %c0_56], %45 {strides = array<i32>} : memref<256x128xf32, #tpu.memory_space<vmem>>, vector<256x128xf32>,
    %c0_57 = arith.constant 0 : index
    %c1_58 = arith.constant 1 : index
    %c2_59 = arith.constant 2 : index
    %c0_60 = arith.constant 0 : index
    %47 = vector.load %arg1[%c0_57, %c1_58, %c2_59, %c0_60] : memref<1x18x18x128xbf16, #tpu.memory_space<vmem>>, vector<1x16x16x128xbf16>
    %48 = vector.shape_cast %47 : vector<1x16x16x128xbf16> to vector<16x16x128xbf16>
    %49 = vector.shape_cast %48 : vector<16x16x128xbf16> to vector<256x128xbf16>
    %c0_61 = arith.constant 0 : index
    %c0_62 = arith.constant 0 : index
    %50 = vector.load %arg6[%c0_61, %c0_62] : memref<256x128xf32, #tpu.memory_space<vmem>>, vector<256x128xf32>
    %c5 = arith.constant 5 : index
    %c0_63 = arith.constant 0 : index
    %c0_64 = arith.constant 0 : index
    %51 = vector.load %arg2[%c5, %c0_63, %c0_64] : memref<9x128x128xbf16, #tpu.memory_space<vmem>>, vector<1x128x128xbf16>
    %52 = vector.shape_cast %51 : vector<1x128x128xbf16> to vector<128x128xbf16>
    %cst_65 = arith.constant dense<0.000000e+00> : vector<256x128xf32>
    %53 = tpu.matmul %49, %52, %cst_65 {dimension_numbers = #tpu.dot_dimension_numbers<[1], [0], [0], [1], [0, 0, 1, 1], [], []>} : vector<256x128xbf16>, vector<128x128xbf16>, vector<256x128xf32> -> vector<256x128xf32>
    %54 = arith.addf %50, %53 : vector<256x128xf32>
    %c0_66 = arith.constant 0 : index
    %c0_67 = arith.constant 0 : index
    %55 = vector.load %arg6[%c0_66, %c0_67] : memref<256x128xf32, #tpu.memory_space<vmem>>, vector<256x128xf32>
    tpu.vector_store %arg6[%c0_66, %c0_67], %54 {strides = array<i32>} : memref<256x128xf32, #tpu.memory_space<vmem>>, vector<256x128xf32>,
    %c0_68 = arith.constant 0 : index
    %c2_69 = arith.constant 2 : index
    %c0_70 = arith.constant 0 : index
    %c0_71 = arith.constant 0 : index
    %56 = vector.load %arg1[%c0_68, %c2_69, %c0_70, %c0_71] : memref<1x18x18x128xbf16, #tpu.memory_space<vmem>>, vector<1x16x16x128xbf16>
    %57 = vector.shape_cast %56 : vector<1x16x16x128xbf16> to vector<16x16x128xbf16>
    %58 = vector.shape_cast %57 : vector<16x16x128xbf16> to vector<256x128xbf16>
    %c0_72 = arith.constant 0 : index
    %c0_73 = arith.constant 0 : index
    %59 = vector.load %arg6[%c0_72, %c0_73] : memref<256x128xf32, #tpu.memory_space<vmem>>, vector<256x128xf32>
    %c6 = arith.constant 6 : index
    %c0_74 = arith.constant 0 : index
    %c0_75 = arith.constant 0 : index
    %60 = vector.load %arg2[%c6, %c0_74, %c0_75] : memref<9x128x128xbf16, #tpu.memory_space<vmem>>, vector<1x128x128xbf16>
    %61 = vector.shape_cast %60 : vector<1x128x128xbf16> to vector<128x128xbf16>
    %cst_76 = arith.constant dense<0.000000e+00> : vector<256x128xf32>
    %62 = tpu.matmul %58, %61, %cst_76 {dimension_numbers = #tpu.dot_dimension_numbers<[1], [0], [0], [1], [0, 0, 1, 1], [], []>} : vector<256x128xbf16>, vector<128x128xbf16>, vector<256x128xf32> -> vector<256x128xf32>
    %63 = arith.addf %59, %62 : vector<256x128xf32>
    %c0_77 = arith.constant 0 : index
    %c0_78 = arith.constant 0 : index
    %64 = vector.load %arg6[%c0_77, %c0_78] : memref<256x128xf32, #tpu.memory_space<vmem>>, vector<256x128xf32>
    tpu.vector_store %arg6[%c0_77, %c0_78], %63 {strides = array<i32>} : memref<256x128xf32, #tpu.memory_space<vmem>>, vector<256x128xf32>,
    %c0_79 = arith.constant 0 : index
    %c2_80 = arith.constant 2 : index
    %c1_81 = arith.constant 1 : index
    %c0_82 = arith.constant 0 : index
    %65 = vector.load %arg1[%c0_79, %c2_80, %c1_81, %c0_82] : memref<1x18x18x128xbf16, #tpu.memory_space<vmem>>, vector<1x16x16x128xbf16>
    %66 = vector.shape_cast %65 : vector<1x16x16x128xbf16> to vector<16x16x128xbf16>
    %67 = vector.shape_cast %66 : vector<16x16x128xbf16> to vector<256x128xbf16>
    %c0_83 = arith.constant 0 : index
    %c0_84 = arith.constant 0 : index
    %68 = vector.load %arg6[%c0_83, %c0_84] : memref<256x128xf32, #tpu.memory_space<vmem>>, vector<256x128xf32>
    %c7 = arith.constant 7 : index
    %c0_85 = arith.constant 0 : index
    %c0_86 = arith.constant 0 : index
    %69 = vector.load %arg2[%c7, %c0_85, %c0_86] : memref<9x128x128xbf16, #tpu.memory_space<vmem>>, vector<1x128x128xbf16>
    %70 = vector.shape_cast %69 : vector<1x128x128xbf16> to vector<128x128xbf16>
    %cst_87 = arith.constant dense<0.000000e+00> : vector<256x128xf32>
    %71 = tpu.matmul %67, %70, %cst_87 {dimension_numbers = #tpu.dot_dimension_numbers<[1], [0], [0], [1], [0, 0, 1, 1], [], []>} : vector<256x128xbf16>, vector<128x128xbf16>, vector<256x128xf32> -> vector<256x128xf32>
    %72 = arith.addf %68, %71 : vector<256x128xf32>
    %c0_88 = arith.constant 0 : index
    %c0_89 = arith.constant 0 : index
    %73 = vector.load %arg6[%c0_88, %c0_89] : memref<256x128xf32, #tpu.memory_space<vmem>>, vector<256x128xf32>
    tpu.vector_store %arg6[%c0_88, %c0_89], %72 {strides = array<i32>} : memref<256x128xf32, #tpu.memory_space<vmem>>, vector<256x128xf32>,
    %c0_90 = arith.constant 0 : index
    %c2_91 = arith.constant 2 : index
    %c2_92 = arith.constant 2 : index
    %c0_93 = arith.constant 0 : index
    %74 = vector.load %arg1[%c0_90, %c2_91, %c2_92, %c0_93] : memref<1x18x18x128xbf16, #tpu.memory_space<vmem>>, vector<1x16x16x128xbf16>
    %75 = vector.shape_cast %74 : vector<1x16x16x128xbf16> to vector<16x16x128xbf16>
    %76 = vector.shape_cast %75 : vector<16x16x128xbf16> to vector<256x128xbf16>
    %c0_94 = arith.constant 0 : index
    %c0_95 = arith.constant 0 : index
    %77 = vector.load %arg6[%c0_94, %c0_95] : memref<256x128xf32, #tpu.memory_space<vmem>>, vector<256x128xf32>
    %c8 = arith.constant 8 : index
    %c0_96 = arith.constant 0 : index
    %c0_97 = arith.constant 0 : index
    %78 = vector.load %arg2[%c8, %c0_96, %c0_97] : memref<9x128x128xbf16, #tpu.memory_space<vmem>>, vector<1x128x128xbf16>
    %79 = vector.shape_cast %78 : vector<1x128x128xbf16> to vector<128x128xbf16>
    %cst_98 = arith.constant dense<0.000000e+00> : vector<256x128xf32>
    %80 = tpu.matmul %76, %79, %cst_98 {dimension_numbers = #tpu.dot_dimension_numbers<[1], [0], [0], [1], [0, 0, 1, 1], [], []>} : vector<256x128xbf16>, vector<128x128xbf16>, vector<256x128xf32> -> vector<256x128xf32>
    %81 = arith.addf %77, %80 : vector<256x128xf32>
    %c0_99 = arith.constant 0 : index
    %c0_100 = arith.constant 0 : index
    %82 = vector.load %arg6[%c0_99, %c0_100] : memref<256x128xf32, #tpu.memory_space<vmem>>, vector<256x128xf32>
    tpu.vector_store %arg6[%c0_99, %c0_100], %81 {strides = array<i32>} : memref<256x128xf32, #tpu.memory_space<vmem>>, vector<256x128xf32>,
    %c0_101 = arith.constant 0 : index
    %c0_102 = arith.constant 0 : index
    %83 = vector.load %arg6[%c0_101, %c0_102] : memref<256x128xf32, #tpu.memory_space<vmem>>, vector<256x128xf32>
    %84 = vector.shape_cast %83 : vector<256x128xf32> to vector<1x16x16x128xf32>
    %85 = arith.truncf %84 : vector<1x16x16x128xf32> to vector<1x16x16x128xbf16>
    %c0_103 = arith.constant 0 : index
    %c0_104 = arith.constant 0 : index
    %c0_105 = arith.constant 0 : index
    %c0_106 = arith.constant 0 : index
    %86 = vector.load %arg3[%c0_103, %c0_104, %c0_105, %c0_106] : memref<1x16x16x128xbf16, #tpu.memory_space<vmem>>, vector<1x16x16x128xbf16>
    tpu.vector_store %arg3[%c0_103, %c0_104, %c0_105, %c0_106], %85 {strides = array<i32>} : memref<1x16x16x128xbf16, #tpu.memory_space<vmem>>, vector<1x16x16x128xbf16>,
    %cst_107 = arith.constant dense<0.000000e+00> : vector<128xf32>
    %87 = vector.multi_reduction <add>, %83, %cst_107 [0] : vector<256x128xf32> to vector<128xf32>
    %88 = vector.shape_cast %87 : vector<128xf32> to vector<1x128xf32>
    %c0_108 = arith.constant 0 : index
    %c0_109 = arith.constant 0 : index
    %c0_110 = arith.constant 0 : index
    %89 = vector.load %arg4[%c0_108, %c0_109, %c0_110] : memref<1x1x128xf32, #tpu.memory_space<vmem>>, vector<1x1x128xf32>
    %90 = vector.shape_cast %89 : vector<1x1x128xf32> to vector<1x128xf32>
    %91 = vector.shape_cast %88 : vector<1x128xf32> to vector<1x1x128xf32>
    tpu.vector_store %arg4[%c0_108, %c0_109, %c0_110], %91 {strides = array<i32>} : memref<1x1x128xf32, #tpu.memory_space<vmem>>, vector<1x1x128xf32>,
    %92 = arith.mulf %83, %83 : vector<256x128xf32>
    %cst_111 = arith.constant dense<0.000000e+00> : vector<128xf32>
    %93 = vector.multi_reduction <add>, %92, %cst_111 [0] : vector<256x128xf32> to vector<128xf32>
    %94 = vector.shape_cast %93 : vector<128xf32> to vector<1x128xf32>
    %c0_112 = arith.constant 0 : index
    %c0_113 = arith.constant 0 : index
    %c0_114 = arith.constant 0 : index
    %95 = vector.load %arg5[%c0_112, %c0_113, %c0_114] : memref<1x1x128xf32, #tpu.memory_space<vmem>>, vector<1x1x128xf32>
    %96 = vector.shape_cast %95 : vector<1x1x128xf32> to vector<1x128xf32>
    %97 = vector.shape_cast %94 : vector<1x128xf32> to vector<1x1x128xf32>
    tpu.vector_store %arg5[%c0_112, %c0_113, %c0_114], %97 {strides = array<i32>} : memref<1x1x128xf32, #tpu.memory_space<vmem>>, vector<1x1x128xf32>,
    return
  }
  func.func @transform_0(%arg0: i32) -> (i32, i32, i32, i32) {
    %c0_i32 = arith.constant 0 : i32
    %c0_i32_0 = arith.constant 0 : i32
    %c0_i32_1 = arith.constant 0 : i32
    %c0_i32_2 = arith.constant 0 : i32
    return %arg0, %c0_i32, %c0_i32_0, %c0_i32_1 : i32, i32, i32, i32
  }
  func.func @transform_1(%arg0: i32) -> (i32, i32, i32) {
    %c0_i32 = arith.constant 0 : i32
    %c0_i32_0 = arith.constant 0 : i32
    %c0_i32_1 = arith.constant 0 : i32
    %c0_i32_2 = arith.constant 0 : i32
    return %c0_i32, %c0_i32_0, %c0_i32_1 : i32, i32, i32
  }
  func.func @transform_2(%arg0: i32) -> (i32, i32, i32, i32) {
    %c0_i32 = arith.constant 0 : i32
    %c0_i32_0 = arith.constant 0 : i32
    %c0_i32_1 = arith.constant 0 : i32
    %c0_i32_2 = arith.constant 0 : i32
    return %arg0, %c0_i32, %c0_i32_0, %c0_i32_1 : i32, i32, i32, i32
  }
  func.func @transform_3(%arg0: i32) -> (i32, i32, i32) {
    %c0_i32 = arith.constant 0 : i32
    %c0_i32_0 = arith.constant 0 : i32
    %c0_i32_1 = arith.constant 0 : i32
    return %arg0, %c0_i32, %c0_i32_0 : i32, i32, i32
  }
  func.func @transform_4(%arg0: i32) -> (i32, i32, i32) {
    %c0_i32 = arith.constant 0 : i32
    %c0_i32_0 = arith.constant 0 : i32
    %c0_i32_1 = arith.constant 0 : i32
    return %arg0, %c0_i32, %c0_i32_0 : i32, i32, i32
  }
}

module attributes {stable_mosaic.version = 11 : i64} {
  func.func @_bn_res_relu_kernel(%arg0: i32, %arg1: memref<1x16x16x128xbf16, #tpu.memory_space<vmem>>, %arg2: memref<1x16x16x128xbf16, #tpu.memory_space<vmem>>, %arg3: memref<1x128xf32, #tpu.memory_space<vmem>>, %arg4: memref<1x128xf32, #tpu.memory_space<vmem>>, %arg5: memref<1x16x16x128xf32, #tpu.memory_space<vmem>>) attributes {dimension_semantics = [#tpu.dimension_semantics<parallel>], iteration_bounds = array<i64: 2>, scalar_prefetch = 0 : i64, scratch_operands = 0 : i64, tpu.core_type = #tpu.core_type<tc>, window_params = [{transform_indices = @transform_0, window_bounds = array<i64: 1, 16, 16, 128>}, {transform_indices = @transform_1, window_bounds = array<i64: 1, 16, 16, 128>}, {pipeline_mode = #tpu.pipeline_mode<synchronous>, transform_indices = @transform_2, window_bounds = array<i64: 1, 128>}, {pipeline_mode = #tpu.pipeline_mode<synchronous>, transform_indices = @transform_3, window_bounds = array<i64: 1, 128>}, {transform_indices = @transform_4, window_bounds = array<i64: 1, 16, 16, 128>}]} {
    %c0 = arith.constant 0 : index
    %c0_0 = arith.constant 0 : index
    %0 = vector.load %arg3[%c0, %c0_0] : memref<1x128xf32, #tpu.memory_space<vmem>>, vector<1x128xf32>
    %1 = vector.shape_cast %0 : vector<1x128xf32> to vector<1x1x1x128xf32>
    %c0_1 = arith.constant 0 : index
    %c0_2 = arith.constant 0 : index
    %2 = vector.load %arg4[%c0_1, %c0_2] : memref<1x128xf32, #tpu.memory_space<vmem>>, vector<1x128xf32>
    %3 = vector.shape_cast %2 : vector<1x128xf32> to vector<1x1x1x128xf32>
    %c0_3 = arith.constant 0 : index
    %c0_4 = arith.constant 0 : index
    %c0_5 = arith.constant 0 : index
    %c0_6 = arith.constant 0 : index
    %4 = vector.load %arg1[%c0_3, %c0_4, %c0_5, %c0_6] : memref<1x16x16x128xbf16, #tpu.memory_space<vmem>>, vector<1x16x16x128xbf16>
    %5 = arith.extf %4 : vector<1x16x16x128xbf16> to vector<1x16x16x128xf32>
    %c0_7 = arith.constant 0 : index
    %c0_8 = arith.constant 0 : index
    %c0_9 = arith.constant 0 : index
    %c0_10 = arith.constant 0 : index
    %6 = vector.load %arg2[%c0_7, %c0_8, %c0_9, %c0_10] : memref<1x16x16x128xbf16, #tpu.memory_space<vmem>>, vector<1x16x16x128xbf16>
    %7 = arith.extf %6 : vector<1x16x16x128xbf16> to vector<1x16x16x128xf32>
    %8 = vector.broadcast %1 : vector<1x1x1x128xf32> to vector<1x16x16x128xf32>
    %9 = arith.mulf %7, %8 : vector<1x16x16x128xf32>
    %10 = arith.addf %5, %9 : vector<1x16x16x128xf32>
    %11 = vector.broadcast %3 : vector<1x1x1x128xf32> to vector<1x16x16x128xf32>
    %12 = arith.addf %10, %11 : vector<1x16x16x128xf32>
    %cst = arith.constant 0.000000e+00 : f32
    %13 = vector.broadcast %cst : f32 to vector<1x16x16x128xf32>
    %14 = arith.maximumf %12, %13 : vector<1x16x16x128xf32>
    %c0_11 = arith.constant 0 : index
    %c0_12 = arith.constant 0 : index
    %c0_13 = arith.constant 0 : index
    %c0_14 = arith.constant 0 : index
    %15 = vector.load %arg5[%c0_11, %c0_12, %c0_13, %c0_14] : memref<1x16x16x128xf32, #tpu.memory_space<vmem>>, vector<1x16x16x128xf32>
    tpu.vector_store %arg5[%c0_11, %c0_12, %c0_13, %c0_14], %14 {strides = array<i32>} : memref<1x16x16x128xf32, #tpu.memory_space<vmem>>, vector<1x16x16x128xf32>,
    return
  }
  func.func @transform_0(%arg0: i32) -> (i32, i32, i32, i32) {
    %c0_i32 = arith.constant 0 : i32
    %c0_i32_0 = arith.constant 0 : i32
    %c0_i32_1 = arith.constant 0 : i32
    %c0_i32_2 = arith.constant 0 : i32
    return %arg0, %c0_i32, %c0_i32_0, %c0_i32_1 : i32, i32, i32, i32
  }
  func.func @transform_1(%arg0: i32) -> (i32, i32, i32, i32) {
    %c0_i32 = arith.constant 0 : i32
    %c0_i32_0 = arith.constant 0 : i32
    %c0_i32_1 = arith.constant 0 : i32
    %c0_i32_2 = arith.constant 0 : i32
    return %arg0, %c0_i32, %c0_i32_0, %c0_i32_1 : i32, i32, i32, i32
  }
  func.func @transform_2(%arg0: i32) -> (i32, i32) {
    %c0_i32 = arith.constant 0 : i32
    %c0_i32_0 = arith.constant 0 : i32
    %c0_i32_1 = arith.constant 0 : i32
    return %c0_i32, %c0_i32_0 : i32, i32
  }
  func.func @transform_3(%arg0: i32) -> (i32, i32) {
    %c0_i32 = arith.constant 0 : i32
    %c0_i32_0 = arith.constant 0 : i32
    %c0_i32_1 = arith.constant 0 : i32
    return %c0_i32, %c0_i32_0 : i32, i32
  }
  func.func @transform_4(%arg0: i32) -> (i32, i32, i32, i32) {
    %c0_i32 = arith.constant 0 : i32
    %c0_i32_0 = arith.constant 0 : i32
    %c0_i32_1 = arith.constant 0 : i32
    %c0_i32_2 = arith.constant 0 : i32
    return %arg0, %c0_i32, %c0_i32_0, %c0_i32_1 : i32, i32, i32, i32
  }
}

</mosaic_0001>

<llo_original>
// kernel: residual_block_forward.3
$region0: #{residual_block_forward.3}
  #allocation0 [shape = 'u32[]', space=smem, size = 0x4, offset = 0x4, fixed_abs, tag = 'smem constant byte address 0x4 - core index']
  #allocation1 [shape = 'u32[72,128]{1,0:T(1,128)}', space=vmem, size = 0x9000, scoped, tag = 'internal scratch']
  %s0 = inlined_call_operand.vmem [shape: bf16[2,16,16,128], index: 0, kind: input, shape index: {}]
  %s1 = inlined_call_operand.vmem [shape: bf16[2,16,16,128], index: 1, kind: input, shape index: {}]
  %s2 = inlined_call_operand.vmem [shape: f32[1,128], index: 2, kind: input, shape index: {}]
  %s3 = inlined_call_operand.vmem [shape: f32[1,128], index: 3, kind: input, shape index: {}]
  %s4 = inlined_call_operand.vmem [shape: f32[2,16,16,128], index: 4, kind: output, shape index: {}]
  %s5 = sld [smem:[#allocation0]]
  $region49: #{residual_block_forward.3} parent=0
    _
  %s7 = ssub.s32 1, %s5
  %s8 = scalar_select 0, %s7, %s5
  loop: start=0, step=1, limit=4
  $region2: #{residual_block_forward.3} parent=0 // loop_pre_header
    _
  $region3: #{residual_block_forward.3} parent=0 // loop_header
    %s10 = sphi 0, %s14
    %p11 = scmp.ge.s32.totalorder %s10, 4
    %s20 = sphi 0, %s22
    %s23 = sphi 0, %s20
    %s24 = sphi 0, %s23
    %s40 = sphi 0, %s24
    %s46 = sphi 0, %s48
    %s49 = sphi 0, %s46
    %s50 = sphi 0, %s49
    %s66 = sphi 0, %s50
    %s70 = sphi 0, %s70
    %s72 = sphi 0, %s70
    %s73 = sphi 0, %s72
    %s87 = sphi 0, %s73
    %s91 = sphi 0, %s91
    %s93 = sphi 0, %s91
    %s94 = sphi 0, %s93
    %s108 = sphi 0, %s94
    %s114 = sphi 0, %s116
    %s117 = sphi 0, %s114
    %s118 = sphi 0, %s117
    %s134 = sphi 0, %s118
  $region4: #{residual_block_forward.3} parent=0 // loop_header_branch
    %13 = sbr.rel (%p11) target = $region8
  $region5: #{residual_block_forward.3} parent=0 // loop_body
    %s15 = ssub.s32 %s10, 1
    %s16 = ssub.s32 %s10, 2
    %s17 = sadd.s32 %s10, 1
    %s18 = ssub.s32 %s10, %s17
    %p19 = scmp.eq.s32.totalorder %s18, 0
    %s21 = sadd.s32 %s20, 1
    %s22 = scalar_select %p19, %s20, %s21
    %p25 = pneg %p19
    %p26 = scmp.eq.s32.totalorder %s10, 1
    %p27 = por %p25, %p26
    %p28 = scmp.ne.s32.totalorder %s20, %s23
    %p29 = scmp.eq.s32.totalorder %s10, 0
    %p30 = por %p28, %p29
    %p31 = scmp.ne.s32.totalorder %s20, %s23
    %p32 = scmp.eq.s32.totalorder %s15, 1
    %p33 = por %p31, %p32
    %p34 = scmp.ne.s32.totalorder %s23, %s24
    %p35 = scmp.eq.s32.totalorder %s15, 0
    %p36 = por %p34, %p35
    %p37 = scmp.ne.s32.totalorder %s23, %s24
    %p38 = scmp.eq.s32.totalorder %s16, 1
    %p39 = por %p37, %p38
    %p41 = scmp.ne.s32.totalorder %s24, %s40
    %p42 = scmp.eq.s32.totalorder %s16, 0
    %p43 = por %p41, %p42
    %s44 = ssub.s32 %s10, %s17
    %p45 = scmp.eq.s32.totalorder %s44, 0
    %s47 = sadd.s32 %s46, 1
    %s48 = scalar_select %p45, %s46, %s47
    %p51 = pneg %p45
    %p52 = scmp.eq.s32.totalorder %s10, 1
    %p53 = por %p51, %p52
    %p54 = scmp.ne.s32.totalorder %s46, %s49
    %p55 = scmp.eq.s32.totalorder %s10, 0
    %p56 = por %p54, %p55
    %p57 = scmp.ne.s32.totalorder %s46, %s49
    %p58 = scmp.eq.s32.totalorder %s15, 1
    %p59 = por %p57, %p58
    %p60 = scmp.ne.s32.totalorder %s49, %s50
    %p61 = scmp.eq.s32.totalorder %s15, 0
    %p62 = por %p60, %p61
    %p63 = scmp.ne.s32.totalorder %s49, %s50
    %p64 = scmp.eq.s32.totalorder %s16, 1
    %p65 = por %p63, %p64
    %p67 = scmp.ne.s32.totalorder %s50, %s66
    %p68 = scmp.eq.s32.totalorder %s16, 0
    %p69 = por %p67, %p68
    %s71 = sadd.s32 %s70, 1
    %p74 = scmp.eq.s32.totalorder %s10, 1
    %p75 = scmp.ne.s32.totalorder %s70, %s72
    %p76 = scmp.eq.s32.totalorder %s10, 0
    %p77 = por %p75, %p76
    %p78 = scmp.ne.s32.totalorder %s70, %s72
    %p79 = scmp.eq.s32.totalorder %s15, 1
    %p80 = por %p78, %p79
    %p81 = scmp.ne.s32.totalorder %s72, %s73
    %p82 = scmp.eq.s32.totalorder %s15, 0
    %p83 = por %p81, %p82
    %p84 = scmp.ne.s32.totalorder %s72, %s73
    %p85 = scmp.eq.s32.totalorder %s16, 1
    %p86 = por %p84, %p85
    %p88 = scmp.ne.s32.totalorder %s73, %s87
    %p89 = scmp.eq.s32.totalorder %s16, 0
    %p90 = por %p88, %p89
    %s92 = sadd.s32 %s91, 1
    %p95 = scmp.eq.s32.totalorder %s10, 1
    %p96 = scmp.ne.s32.totalorder %s91, %s93
    %p97 = scmp.eq.s32.totalorder %s10, 0
    %p98 = por %p96, %p97
    %p99 = scmp.ne.s32.totalorder %s91, %s93
    %p100 = scmp.eq.s32.totalorder %s15, 1
    %p101 = por %p99, %p100
    %p102 = scmp.ne.s32.totalorder %s93, %s94
    %p103 = scmp.eq.s32.totalorder %s15, 0
    %p104 = por %p102, %p103
    %p105 = scmp.ne.s32.totalorder %s93, %s94
    %p106 = scmp.eq.s32.totalorder %s16, 1
    %p107 = por %p105, %p106
    %p109 = scmp.ne.s32.totalorder %s94, %s108
    %p110 = scmp.eq.s32.totalorder %s16, 0
    %p111 = por %p109, %p110
    %s112 = ssub.s32 %s10, %s17
    %p113 = scmp.eq.s32.totalorder %s112, 0
    %s115 = sadd.s32 %s114, 1
    %s116 = scalar_select %p113, %s114, %s115
    %p119 = pneg %p113
    %p120 = scmp.eq.s32.totalorder %s10, 1
    %p121 = por %p119, %p120
    %p122 = scmp.ne.s32.totalorder %s114, %s117
    %p123 = scmp.eq.s32.totalorder %s10, 0
    %p124 = por %p122, %p123
    %p125 = scmp.ne.s32.totalorder %s114, %s117
    %p126 = scmp.eq.s32.totalorder %s15, 1
    %p127 = por %p125, %p126
    %p128 = scmp.ne.s32.totalorder %s117, %s118
    %p129 = scmp.eq.s32.totalorder %s15, 0
    %p130 = por %p128, %p129
    %p131 = scmp.ne.s32.totalorder %s117, %s118
    %p132 = scmp.eq.s32.totalorder %s16, 1
    %p133 = por %p131, %p132
    %p135 = scmp.ne.s32.totalorder %s118, %s134
    %p136 = scmp.eq.s32.totalorder %s16, 0
    %p137 = por %p135, %p136
    %p138 = scmp.le.s32.totalorder 1, %s10
    %p139 = scmp.lt.s32.totalorder %s10, 3
    %p140 = pnand %p138, %p139
    %p141 = pneg %p140
    // Predicated region
    $region9: #{residual_block_forward.3} parent=5 // pred_check
      _
    $region10: #{residual_block_forward.3} parent=5 // pred_check_branch
      %143 = sbr.rel (%p140) target = $region12
    $region11: #{residual_block_forward.3} parent=5 // pred_region
      %s144 = ssub.s32 %s10, 1
      // Predicated region
      $region13: #{residual_block_forward.3} parent=11 // pred_check
        %p145 = pneg %p83
      $region14: #{residual_block_forward.3} parent=11 // pred_check_branch
        %147 = sbr.rel (%p145) target = $region16
      $region15: #{residual_block_forward.3} parent=11 // pred_region
        _
      $region16: #{residual_block_forward.3} parent=11 // pred_fallthru
        _
      // Predicated region
      $region17: #{residual_block_forward.3} parent=11 // pred_check
        %p148 = pneg %p104
      $region18: #{residual_block_forward.3} parent=11 // pred_check_branch
        %150 = sbr.rel (%p148) target = $region20
      $region19: #{residual_block_forward.3} parent=11 // pred_region
        _
      $region20: #{residual_block_forward.3} parent=11 // pred_fallthru
        _
    $region12: #{residual_block_forward.3} parent=5 // pred_fallthru
      _
    %p151 = scmp.lt.s32.totalorder %s10, 2
    // Predicated region
    $region21: #{residual_block_forward.3} parent=5 // pred_check
      %p152 = pneg %p151
    $region22: #{residual_block_forward.3} parent=5 // pred_check_branch
      %154 = sbr.rel (%p152) target = $region24
    $region23: #{residual_block_forward.3} parent=5 // pred_region
      // Predicated region
      $region25: #{residual_block_forward.3} parent=23 // pred_check
        %p155 = pneg %p30
      $region26: #{residual_block_forward.3} parent=23 // pred_check_branch
        %157 = sbr.rel (%p155) target = $region28
      $region27: #{residual_block_forward.3} parent=23 // pred_region
        %p158 = scmp.lt.s32.totalorder %s10, 1
        %s159 = scalar_select %p158, %s10, 1
        %s160 = smul.addr %s159, 32
        %s161 = smul.addr %s160, 4
        %s162 = scalar_lea.vmem %s0, %s161
      $region28: #{residual_block_forward.3} parent=23 // pred_fallthru
        _
      // Predicated region
      $region29: #{residual_block_forward.3} parent=23 // pred_check
        %p163 = pneg %p56
      $region30: #{residual_block_forward.3} parent=23 // pred_check_branch
        %165 = sbr.rel (%p163) target = $region32
      $region31: #{residual_block_forward.3} parent=23 // pred_region
        %p166 = scmp.lt.s32.totalorder %s10, 1
        %s167 = scalar_select %p166, %s10, 1
        %s168 = smul.addr %s167, 32
        %s169 = smul.addr %s168, 4
        %s170 = scalar_lea.vmem %s1, %s169
      $region32: #{residual_block_forward.3} parent=23 // pred_fallthru
        _
    $region24: #{residual_block_forward.3} parent=5 // pred_fallthru
      _
    %p171 = scmp.le.s32.totalorder 1, %s10
    %p172 = scmp.lt.s32.totalorder %s10, 3
    %p173 = pnand %p171, %p172
    %p174 = pneg %p173
    // Predicated region
    $region33: #{residual_block_forward.3} parent=5 // pred_check
      _
    $region34: #{residual_block_forward.3} parent=5 // pred_check_branch
      %176 = sbr.rel (%p173) target = $region36
    $region35: #{residual_block_forward.3} parent=5 // pred_region
      %s177 = ssub.s32 %s10, 1
      %p178 = scmp.lt.s32.totalorder %s15, 1
      %s179 = scalar_select %p178, %s15, 1
      %s180 = smul.addr %s179, 32
      %s181 = smul.addr %s180, 4
      %s182 = scalar_lea.vmem %s0, %s181
      %p183 = pneg %p36
      %p184 = pneg %p33
      %p185 = scmp.lt.s32.totalorder %s15, 1
      %s186 = scalar_select %p185, %s15, 1
      %s187 = smul.addr %s186, 32
      %s188 = smul.addr %s187, 4
      %s189 = scalar_lea.vmem %s1, %s188
      %p190 = pneg %p62
      %p191 = pneg %p59
      %p192 = pneg %p83
      %p193 = pneg %p80
      %p194 = pneg %p104
      %p195 = pneg %p101
      %p196 = pneg %p130
      %p197 = pneg %p127
      %p198 = scmp.lt.s32.totalorder %s15, 1
      %s199 = scalar_select %p198, %s15, 1
      %s200 = smul.addr %s199, 32
      %s201 = smul.addr %s200, 8
      %s202 = scalar_lea.vmem %s4, %s201
      %p203 = scmp.lt.s32.totalorder %s15, 1
      %s204 = scalar_select %p203, %s15, 1
      %s205 = smul.addr %s204, 32
      %s206 = smul.addr %s205, 4
      %s207 = scalar_lea.vmem %s0, %s206
      %p208 = scmp.lt.s32.totalorder %s15, 1
      %s209 = scalar_select %p208, %s15, 1
      %s210 = smul.addr %s209, 32
      %s211 = smul.addr %s210, 4
      %s212 = scalar_lea.vmem %s1, %s211
      %p213 = scmp.lt.s32.totalorder %s15, 1
      %s214 = scalar_select %p213, %s15, 1
      %s215 = smul.addr %s214, 32
      %s216 = smul.addr %s215, 8
      %s217 = scalar_lea.vmem %s4, %s216
      %v218 = vld [vmem:[%s2] sm:$0x1]
      %v219 = vld [vmem:[%s3] sm:$0x1]
      %v220 = vld [vmem:[%s207] sm:$0xf]
      %v221 = vld [vmem:[%s207 + $0x4] sm:$0xf]
      %v222 = vld [vmem:[%s207 + $0x8] sm:$0xf]
      %v223 = vld [vmem:[%s207 + $0xc] sm:$0xf]
      %v224 = vld [vmem:[%s207 + $0x10] sm:$0xf]
      %v225 = vld [vmem:[%s207 + $0x14] sm:$0xf]
      %v226 = vld [vmem:[%s207 + $0x18] sm:$0xf]
      %v227 = vld [vmem:[%s207 + $0x1c] sm:$0xf]
      %v228 = vld [vmem:[%s207 + $0x20] sm:$0xf]
      %v229 = vld [vmem:[%s207 + $0x24] sm:$0xf]
      %v230 = vld [vmem:[%s207 + $0x28] sm:$0xf]
      %v231 = vld [vmem:[%s207 + $0x2c] sm:$0xf]
      %v232 = vld [vmem:[%s207 + $0x30] sm:$0xf]
      %v233 = vld [vmem:[%s207 + $0x34] sm:$0xf]
      %v234 = vld [vmem:[%s207 + $0x38] sm:$0xf]
      %v235 = vld [vmem:[%s207 + $0x3c] sm:$0xf]
      %v236 = vld [vmem:[%s207 + $0x40] sm:$0xf]
      %v237 = vld [vmem:[%s207 + $0x44] sm:$0xf]
      %v238 = vld [vmem:[%s207 + $0x48] sm:$0xf]
      %v239 = vld [vmem:[%s207 + $0x4c] sm:$0xf]
      %v240 = vld [vmem:[%s207 + $0x50] sm:$0xf]
      %v241 = vld [vmem:[%s207 + $0x54] sm:$0xf]
      %v242 = vld [vmem:[%s207 + $0x58] sm:$0xf]
      %v243 = vld [vmem:[%s207 + $0x5c] sm:$0xf]
      %v244 = vld [vmem:[%s207 + $0x60] sm:$0xf]
      %v245 = vld [vmem:[%s207 + $0x64] sm:$0xf]
      %v246 = vld [vmem:[%s207 + $0x68] sm:$0xf]
      %v247 = vld [vmem:[%s207 + $0x6c] sm:$0xf]
      %v248 = vld [vmem:[%s207 + $0x70] sm:$0xf]
      %v249 = vld [vmem:[%s207 + $0x74] sm:$0xf]
      %v250 = vld [vmem:[%s207 + $0x78] sm:$0xf]
      %v251 = vld [vmem:[%s207 + $0x7c] sm:$0xf]
      %v252 = vunpack.c.l.bf16 %v220
      %v253 = vunpack.c.l.bf16 %v221
      %v254 = vunpack.c.l.bf16 %v222
      %v255 = vunpack.c.l.bf16 %v223
      %v256 = vunpack.c.l.bf16 %v224
      %v257 = vunpack.c.l.bf16 %v225
      %v258 = vunpack.c.l.bf16 %v226
      %v259 = vunpack.c.l.bf16 %v227
      %v260 = vunpack.c.l.bf16 %v228
      %v261 = vunpack.c.l.bf16 %v229
      %v262 = vunpack.c.l.bf16 %v230
      %v263 = vunpack.c.l.bf16 %v231
      %v264 = vunpack.c.l.bf16 %v232
      %v265 = vunpack.c.l.bf16 %v233
      %v266 = vunpack.c.l.bf16 %v234
      %v267 = vunpack.c.l.bf16 %v235
      %v268 = vunpack.c.l.bf16 %v236
      %v269 = vunpack.c.l.bf16 %v237
      %v270 = vunpack.c.l.bf16 %v238
      %v271 = vunpack.c.l.bf16 %v239
      %v272 = vunpack.c.l.bf16 %v240
      %v273 = vunpack.c.l.bf16 %v241
      %v274 = vunpack.c.l.bf16 %v242
      %v275 = vunpack.c.l.bf16 %v243
      %v276 = vunpack.c.l.bf16 %v244
      %v277 = vunpack.c.l.bf16 %v245
      %v278 = vunpack.c.l.bf16 %v246
      %v279 = vunpack.c.l.bf16 %v247
      %v280 = vunpack.c.l.bf16 %v248
      %v281 = vunpack.c.l.bf16 %v249
      %v282 = vunpack.c.l.bf16 %v250
      %v283 = vunpack.c.l.bf16 %v251
      %v284 = vld [vmem:[%s212] sm:$0xf]
      %v285 = vld [vmem:[%s212 + $0x4] sm:$0xf]
      %v286 = vld [vmem:[%s212 + $0x8] sm:$0xf]
      %v287 = vld [vmem:[%s212 + $0xc] sm:$0xf]
      %v288 = vld [vmem:[%s212 + $0x10] sm:$0xf]
      %v289 = vld [vmem:[%s212 + $0x14] sm:$0xf]
      %v290 = vld [vmem:[%s212 + $0x18] sm:$0xf]
      %v291 = vld [vmem:[%s212 + $0x1c] sm:$0xf]
      %v292 = vld [vmem:[%s212 + $0x20] sm:$0xf]
      %v293 = vld [vmem:[%s212 + $0x24] sm:$0xf]
      %v294 = vld [vmem:[%s212 + $0x28] sm:$0xf]
      %v295 = vld [vmem:[%s212 + $0x2c] sm:$0xf]
      %v296 = vld [vmem:[%s212 + $0x30] sm:$0xf]
      %v297 = vld [vmem:[%s212 + $0x34] sm:$0xf]
      %v298 = vld [vmem:[%s212 + $0x38] sm:$0xf]
      %v299 = vld [vmem:[%s212 + $0x3c] sm:$0xf]
      %v300 = vld [vmem:[%s212 + $0x40] sm:$0xf]
      %v301 = vld [vmem:[%s212 + $0x44] sm:$0xf]
      %v302 = vld [vmem:[%s212 + $0x48] sm:$0xf]
      %v303 = vld [vmem:[%s212 + $0x4c] sm:$0xf]
      %v304 = vld [vmem:[%s212 + $0x50] sm:$0xf]
      %v305 = vld [vmem:[%s212 + $0x54] sm:$0xf]
      %v306 = vld [vmem:[%s212 + $0x58] sm:$0xf]
      %v307 = vld [vmem:[%s212 + $0x5c] sm:$0xf]
      %v308 = vld [vmem:[%s212 + $0x60] sm:$0xf]
      %v309 = vld [vmem:[%s212 + $0x64] sm:$0xf]
      %v310 = vld [vmem:[%s212 + $0x68] sm:$0xf]
      %v311 = vld [vmem:[%s212 + $0x6c] sm:$0xf]
      %v312 = vld [vmem:[%s212 + $0x70] sm:$0xf]
      %v313 = vld [vmem:[%s212 + $0x74] sm:$0xf]
      %v314 = vld [vmem:[%s212 + $0x78] sm:$0xf]
      %v315 = vld [vmem:[%s212 + $0x7c] sm:$0xf]
      %v316 = vunpack.c.l.bf16 %v284
      %v317 = vunpack.c.l.bf16 %v285
      %v318 = vunpack.c.l.bf16 %v286
      %v319 = vunpack.c.l.bf16 %v287
      %v320 = vunpack.c.l.bf16 %v288
      %v321 = vunpack.c.l.bf16 %v289
      %v322 = vunpack.c.l.bf16 %v290
      %v323 = vunpack.c.l.bf16 %v291
      %v324 = vunpack.c.l.bf16 %v292
      %v325 = vunpack.c.l.bf16 %v293
      %v326 = vunpack.c.l.bf16 %v294
      %v327 = vunpack.c.l.bf16 %v295
      %v328 = vunpack.c.l.bf16 %v296
      %v329 = vunpack.c.l.bf16 %v297
      %v330 = vunpack.c.l.bf16 %v298
      %v331 = vunpack.c.l.bf16 %v299
      %v332 = vunpack.c.l.bf16 %v300
      %v333 = vunpack.c.l.bf16 %v301
      %v334 = vunpack.c.l.bf16 %v302
      %v335 = vunpack.c.l.bf16 %v303
      %v336 = vunpack.c.l.bf16 %v304
      %v337 = vunpack.c.l.bf16 %v305
      %v338 = vunpack.c.l.bf16 %v306
      %v339 = vunpack.c.l.bf16 %v307
      %v340 = vunpack.c.l.bf16 %v308
      %v341 = vunpack.c.l.bf16 %v309
      %v342 = vunpack.c.l.bf16 %v310
      %v343 = vunpack.c.l.bf16 %v311
      %v344 = vunpack.c.l.bf16 %v312
      %v345 = vunpack.c.l.bf16 %v313
      %v346 = vunpack.c.l.bf16 %v314
      %v347 = vunpack.c.l.bf16 %v315
      %v349 = vperm.slane %v218, 0
      %v351 = vmul.f32 %v316, %v349
      %v352 = vmul.f32 %v317, %v349
      %v353 = vmul.f32 %v318, %v349
      %v354 = vmul.f32 %v319, %v349
      %v355 = vmul.f32 %v320, %v349
      %v356 = vmul.f32 %v321, %v349
      %v357 = vmul.f32 %v322, %v349
      %v358 = vmul.f32 %v323, %v349
      %v359 = vmul.f32 %v324, %v349
      %v360 = vmul.f32 %v325, %v349
      %v361 = vmul.f32 %v326, %v349
      %v362 = vmul.f32 %v327, %v349
      %v363 = vmul.f32 %v328, %v349
      %v364 = vmul.f32 %v329, %v349
      %v365 = vmul.f32 %v330, %v349
      %v366 = vmul.f32 %v331, %v349
      %v367 = vmul.f32 %v332, %v349
      %v368 = vmul.f32 %v333, %v349
      %v369 = vmul.f32 %v334, %v349
      %v370 = vmul.f32 %v335, %v349
      %v371 = vmul.f32 %v336, %v349
      %v372 = vmul.f32 %v337, %v349
      %v373 = vmul.f32 %v338, %v349
      %v374 = vmul.f32 %v339, %v349
      %v375 = vmul.f32 %v340, %v349
      %v376 = vmul.f32 %v341, %v349
      %v377 = vmul.f32 %v342, %v349
      %v378 = vmul.f32 %v343, %v349
      %v379 = vmul.f32 %v344, %v349
      %v380 = vmul.f32 %v345, %v349
      %v381 = vmul.f32 %v346, %v349
      %v382 = vmul.f32 %v347, %v349
      %v383 = vadd.f32 %v252, %v351
      %v384 = vadd.f32 %v253, %v352
      %v385 = vadd.f32 %v254, %v353
      %v386 = vadd.f32 %v255, %v354
      %v387 = vadd.f32 %v256, %v355
      %v388 = vadd.f32 %v257, %v356
      %v389 = vadd.f32 %v258, %v357
      %v390 = vadd.f32 %v259, %v358
      %v391 = vadd.f32 %v260, %v359
      %v392 = vadd.f32 %v261, %v360
      %v393 = vadd.f32 %v262, %v361
      %v394 = vadd.f32 %v263, %v362
      %v395 = vadd.f32 %v264, %v363
      %v396 = vadd.f32 %v265, %v364
      %v397 = vadd.f32 %v266, %v365
      %v398 = vadd.f32 %v267, %v366
      %v399 = vadd.f32 %v268, %v367
      %v400 = vadd.f32 %v269, %v368
      %v401 = vadd.f32 %v270, %v369
      %v402 = vadd.f32 %v271, %v370
      %v403 = vadd.f32 %v272, %v371
      %v404 = vadd.f32 %v273, %v372
      %v405 = vadd.f32 %v274, %v373
      %v406 = vadd.f32 %v275, %v374
      %v407 = vadd.f32 %v276, %v375
      %v408 = vadd.f32 %v277, %v376
      %v409 = vadd.f32 %v278, %v377
      %v410 = vadd.f32 %v279, %v378
      %v411 = vadd.f32 %v280, %v379
      %v412 = vadd.f32 %v281, %v380
      %v413 = vadd.f32 %v282, %v381
      %v414 = vadd.f32 %v283, %v382
      %v416 = vperm.slane %v219, 0
      %v418 = vadd.f32 %v383, %v416
      %v419 = vadd.f32 %v384, %v416
      %v420 = vadd.f32 %v385, %v416
      %v421 = vadd.f32 %v386, %v416
      %v422 = vadd.f32 %v387, %v416
      %v423 = vadd.f32 %v388, %v416
      %v424 = vadd.f32 %v389, %v416
      %v425 = vadd.f32 %v390, %v416
      %v426 = vadd.f32 %v391, %v416
      %v427 = vadd.f32 %v392, %v416
      %v428 = vadd.f32 %v393, %v416
      %v429 = vadd.f32 %v394, %v416
      %v430 = vadd.f32 %v395, %v416
      %v431 = vadd.f32 %v396, %v416
      %v432 = vadd.f32 %v397, %v416
      %v433 = vadd.f32 %v398, %v416
      %v434 = vadd.f32 %v399, %v416
      %v435 = vadd.f32 %v400, %v416
      %v436 = vadd.f32 %v401, %v416
      %v437 = vadd.f32 %v402, %v416
      %v438 = vadd.f32 %v403, %v416
      %v439 = vadd.f32 %v404, %v416
      %v440 = vadd.f32 %v405, %v416
      %v441 = vadd.f32 %v406, %v416
      %v442 = vadd.f32 %v407, %v416
      %v443 = vadd.f32 %v408, %v416
      %v444 = vadd.f32 %v409, %v416
      %v445 = vadd.f32 %v410, %v416
      %v446 = vadd.f32 %v411, %v416
      %v447 = vadd.f32 %v412, %v416
      %v448 = vadd.f32 %v413, %v416
      %v449 = vadd.f32 %v414, %v416
      %v450 = vmax.f32 %v418, 0.0
      %v451 = vmax.f32 %v419, 0.0
      %v452 = vmax.f32 %v420, 0.0
      %v453 = vmax.f32 %v421, 0.0
      %v454 = vmax.f32 %v422, 0.0
      %v455 = vmax.f32 %v423, 0.0
      %v456 = vmax.f32 %v424, 0.0
      %v457 = vmax.f32 %v425, 0.0
      %v458 = vmax.f32 %v426, 0.0
      %v459 = vmax.f32 %v427, 0.0
      %v460 = vmax.f32 %v428, 0.0
      %v461 = vmax.f32 %v429, 0.0
      %v462 = vmax.f32 %v430, 0.0
      %v463 = vmax.f32 %v431, 0.0
      %v464 = vmax.f32 %v432, 0.0
      %v465 = vmax.f32 %v433, 0.0
      %v466 = vmax.f32 %v434, 0.0
      %v467 = vmax.f32 %v435, 0.0
      %v468 = vmax.f32 %v436, 0.0
      %v469 = vmax.f32 %v437, 0.0
      %v470 = vmax.f32 %v438, 0.0
      %v471 = vmax.f32 %v439, 0.0
      %v472 = vmax.f32 %v440, 0.0
      %v473 = vmax.f32 %v441, 0.0
      %v474 = vmax.f32 %v442, 0.0
      %v475 = vmax.f32 %v443, 0.0
      %v476 = vmax.f32 %v444, 0.0
      %v477 = vmax.f32 %v445, 0.0
      %v478 = vmax.f32 %v446, 0.0
      %v479 = vmax.f32 %v447, 0.0
      %v480 = vmax.f32 %v448, 0.0
      %v481 = vmax.f32 %v449, 0.0
      %482 = vst [vmem:[%s217] sm:$0xff] %v450
      %483 = vst [vmem:[%s217 + $0x8] sm:$0xff] %v451
      %484 = vst [vmem:[%s217 + $0x10] sm:$0xff] %v452
      %485 = vst [vmem:[%s217 + $0x18] sm:$0xff] %v453
      %486 = vst [vmem:[%s217 + $0x20] sm:$0xff] %v454
      %487 = vst [vmem:[%s217 + $0x28] sm:$0xff] %v455
      %488 = vst [vmem:[%s217 + $0x30] sm:$0xff] %v456
      %489 = vst [vmem:[%s217 + $0x38] sm:$0xff] %v457
      %490 = vst [vmem:[%s217 + $0x40] sm:$0xff] %v458
      %491 = vst [vmem:[%s217 + $0x48] sm:$0xff] %v459
      %492 = vst [vmem:[%s217 + $0x50] sm:$0xff] %v460
      %493 = vst [vmem:[%s217 + $0x58] sm:$0xff] %v461
      %494 = vst [vmem:[%s217 + $0x60] sm:$0xff] %v462
      %495 = vst [vmem:[%s217 + $0x68] sm:$0xff] %v463
      %496 = vst [vmem:[%s217 + $0x70] sm:$0xff] %v464
      %497 = vst [vmem:[%s217 + $0x78] sm:$0xff] %v465
      %498 = vst [vmem:[%s217 + $0x80] sm:$0xff] %v466
      %499 = vst [vmem:[%s217 + $0x88] sm:$0xff] %v467
      %500 = vst [vmem:[%s217 + $0x90] sm:$0xff] %v468
      %501 = vst [vmem:[%s217 + $0x98] sm:$0xff] %v469
      %502 = vst [vmem:[%s217 + $0xa0] sm:$0xff] %v470
      %503 = vst [vmem:[%s217 + $0xa8] sm:$0xff] %v471
      %504 = vst [vmem:[%s217 + $0xb0] sm:$0xff] %v472
      %505 = vst [vmem:[%s217 + $0xb8] sm:$0xff] %v473
      %506 = vst [vmem:[%s217 + $0xc0] sm:$0xff] %v474
      %507 = vst [vmem:[%s217 + $0xc8] sm:$0xff] %v475
      %508 = vst [vmem:[%s217 + $0xd0] sm:$0xff] %v476
      %509 = vst [vmem:[%s217 + $0xd8] sm:$0xff] %v477
      %510 = vst [vmem:[%s217 + $0xe0] sm:$0xff] %v478
      %511 = vst [vmem:[%s217 + $0xe8] sm:$0xff] %v479
      %512 = vst [vmem:[%s217 + $0xf0] sm:$0xff] %v480
      %513 = vst [vmem:[%s217 + $0xf8] sm:$0xff] %v481
      %p514 = scmp.lt.s32.totalorder %s15, 1
      %s515 = scalar_select %p514, %s15, 1
      %s516 = smul.addr %s515, 32
      %s517 = smul.addr %s516, 8
      %s518 = scalar_lea.vmem %s4, %s517
      // Predicated region
      $region37: #{residual_block_forward.3} parent=35 // pred_check
        %p519 = pneg %p127
      $region38: #{residual_block_forward.3} parent=35 // pred_check_branch
        %521 = sbr.rel (%p519) target = $region40
      $region39: #{residual_block_forward.3} parent=35 // pred_region
        _
      $region40: #{residual_block_forward.3} parent=35 // pred_fallthru
        _
    $region36: #{residual_block_forward.3} parent=5 // pred_fallthru
      _
    %p522 = scmp.le.s32.totalorder 2, %s10
    // Predicated region
    $region41: #{residual_block_forward.3} parent=5 // pred_check
      %p523 = pneg %p522
    $region42: #{residual_block_forward.3} parent=5 // pred_check_branch
      %525 = sbr.rel (%p523) target = $region44
    $region43: #{residual_block_forward.3} parent=5 // pred_region
      %s526 = ssub.s32 %s10, 2
      // Predicated region
      $region45: #{residual_block_forward.3} parent=43 // pred_check
        %p527 = pneg %p133
      $region46: #{residual_block_forward.3} parent=43 // pred_check_branch
        %529 = sbr.rel (%p527) target = $region48
      $region47: #{residual_block_forward.3} parent=43 // pred_region
        %p530 = scmp.lt.s32.totalorder %s16, 1
        %s531 = scalar_select %p530, %s16, 1
        %s532 = smul.addr %s531, 32
        %s533 = smul.addr %s532, 8
        %s534 = scalar_lea.vmem %s4, %s533
      $region48: #{residual_block_forward.3} parent=43 // pred_fallthru
        _
    $region44: #{residual_block_forward.3} parent=5 // pred_fallthru
      _
  $region6: #{residual_block_forward.3} parent=0 // loop_footer
    %s14 = sadd.s32 1, %s10
  $region7: #{residual_block_forward.3} parent=0 // loop_footer_branch
    %9 = sbr.rel target = $region3
  $region8: #{residual_block_forward.3} parent=0 // loop_exit
    _

// kernel: residual_block_forward.2
$region0: #{residual_block_forward.2}
  #allocation0 [shape = 'u32[]', space=smem, size = 0x4, offset = 0x4, fixed_abs, tag = 'smem constant byte address 0x4 - core index']
  #allocation1 [shape = 'u32[72,128]{1,0:T(1,128)}', space=vmem, size = 0x9000, scoped, tag = 'internal scratch']
  #allocation2 [shape = 'f32[256,128]{1,0:T(8,128)}', space=vmem, size = 0x20000, scoped, tag = 'scratch operand']
  %s0 = inlined_call_operand.vmem [shape: bf16[2,18,18,128], index: 0, kind: input, shape index: {}]
  %s1 = inlined_call_operand.vmem [shape: bf16[9,128,128], index: 1, kind: input, shape index: {}]
  %s2 = inlined_call_operand.vmem [shape: bf16[2,16,16,128], index: 2, kind: output, shape index: {0}]
  %s3 = inlined_call_operand.vmem [shape: f32[2,1,128], index: 3, kind: output, shape index: {1}]
  %s4 = inlined_call_operand.vmem [shape: f32[2,1,128], index: 4, kind: output, shape index: {2}]
  %5 = xla_tuple %s2, %s3, %s4
  %s6 = sld [smem:[#allocation0]]
  $region57: #{residual_block_forward.2} parent=0
    _
  %s8 = ssub.s32 1, %s6
  %s9 = scalar_select 0, %s8, %s6
  loop: start=0, step=1, limit=4
  $region2: #{residual_block_forward.2} parent=0 // loop_pre_header
    _
  $region3: #{residual_block_forward.2} parent=0 // loop_header
    %s11 = sphi 0, %s15
    %p12 = scmp.ge.s32.totalorder %s11, 4
    %s21 = sphi 0, %s23
    %s24 = sphi 0, %s21
    %s25 = sphi 0, %s24
    %s41 = sphi 0, %s25
    %s45 = sphi 0, %s45
    %s47 = sphi 0, %s45
    %s48 = sphi 0, %s47
    %s62 = sphi 0, %s48
    %s68 = sphi 0, %s70
    %s71 = sphi 0, %s68
    %s72 = sphi 0, %s71
    %s88 = sphi 0, %s72
    %s94 = sphi 0, %s96
    %s97 = sphi 0, %s94
    %s98 = sphi 0, %s97
    %s114 = sphi 0, %s98
    %s120 = sphi 0, %s122
    %s123 = sphi 0, %s120
    %s124 = sphi 0, %s123
    %s140 = sphi 0, %s124
  $region4: #{residual_block_forward.2} parent=0 // loop_header_branch
    %14 = sbr.rel (%p12) target = $region8
  $region5: #{residual_block_forward.2} parent=0 // loop_body
    %s16 = ssub.s32 %s11, 1
    %s17 = ssub.s32 %s11, 2
    %s18 = sadd.s32 %s11, 1
    %s19 = ssub.s32 %s11, %s18
    %p20 = scmp.eq.s32.totalorder %s19, 0
    %s22 = sadd.s32 %s21, 1
    %s23 = scalar_select %p20, %s21, %s22
    %p26 = pneg %p20
    %p27 = scmp.eq.s32.totalorder %s11, 1
    %p28 = por %p26, %p27
    %p29 = scmp.ne.s32.totalorder %s21, %s24
    %p30 = scmp.eq.s32.totalorder %s11, 0
    %p31 = por %p29, %p30
    %p32 = scmp.ne.s32.totalorder %s21, %s24
    %p33 = scmp.eq.s32.totalorder %s16, 1
    %p34 = por %p32, %p33
    %p35 = scmp.ne.s32.totalorder %s24, %s25
    %p36 = scmp.eq.s32.totalorder %s16, 0
    %p37 = por %p35, %p36
    %p38 = scmp.ne.s32.totalorder %s24, %s25
    %p39 = scmp.eq.s32.totalorder %s17, 1
    %p40 = por %p38, %p39
    %p42 = scmp.ne.s32.totalorder %s25, %s41
    %p43 = scmp.eq.s32.totalorder %s17, 0
    %p44 = por %p42, %p43
    %s46 = sadd.s32 %s45, 1
    %p49 = scmp.eq.s32.totalorder %s11, 1
    %p50 = scmp.ne.s32.totalorder %s45, %s47
    %p51 = scmp.eq.s32.totalorder %s11, 0
    %p52 = por %p50, %p51
    %p53 = scmp.ne.s32.totalorder %s45, %s47
    %p54 = scmp.eq.s32.totalorder %s16, 1
    %p55 = por %p53, %p54
    %p56 = scmp.ne.s32.totalorder %s47, %s48
    %p57 = scmp.eq.s32.totalorder %s16, 0
    %p58 = por %p56, %p57
    %p59 = scmp.ne.s32.totalorder %s47, %s48
    %p60 = scmp.eq.s32.totalorder %s17, 1
    %p61 = por %p59, %p60
    %p63 = scmp.ne.s32.totalorder %s48, %s62
    %p64 = scmp.eq.s32.totalorder %s17, 0
    %p65 = por %p63, %p64
    %s66 = ssub.s32 %s11, %s18
    %p67 = scmp.eq.s32.totalorder %s66, 0
    %s69 = sadd.s32 %s68, 1
    %s70 = scalar_select %p67, %s68, %s69
    %p73 = pneg %p67
    %p74 = scmp.eq.s32.totalorder %s11, 1
    %p75 = por %p73, %p74
    %p76 = scmp.ne.s32.totalorder %s68, %s71
    %p77 = scmp.eq.s32.totalorder %s11, 0
    %p78 = por %p76, %p77
    %p79 = scmp.ne.s32.totalorder %s68, %s71
    %p80 = scmp.eq.s32.totalorder %s16, 1
    %p81 = por %p79, %p80
    %p82 = scmp.ne.s32.totalorder %s71, %s72
    %p83 = scmp.eq.s32.totalorder %s16, 0
    %p84 = por %p82, %p83
    %p85 = scmp.ne.s32.totalorder %s71, %s72
    %p86 = scmp.eq.s32.totalorder %s17, 1
    %p87 = por %p85, %p86
    %p89 = scmp.ne.s32.totalorder %s72, %s88
    %p90 = scmp.eq.s32.totalorder %s17, 0
    %p91 = por %p89, %p90
    %s92 = ssub.s32 %s11, %s18
    %p93 = scmp.eq.s32.totalorder %s92, 0
    %s95 = sadd.s32 %s94, 1
    %s96 = scalar_select %p93, %s94, %s95
    %p99 = pneg %p93
    %p100 = scmp.eq.s32.totalorder %s11, 1
    %p101 = por %p99, %p100
    %p102 = scmp.ne.s32.totalorder %s94, %s97
    %p103 = scmp.eq.s32.totalorder %s11, 0
    %p104 = por %p102, %p103
    %p105 = scmp.ne.s32.totalorder %s94, %s97
    %p106 = scmp.eq.s32.totalorder %s16, 1
    %p107 = por %p105, %p106
    %p108 = scmp.ne.s32.totalorder %s97, %s98
    %p109 = scmp.eq.s32.totalorder %s16, 0
    %p110 = por %p108, %p109
    %p111 = scmp.ne.s32.totalorder %s97, %s98
    %p112 = scmp.eq.s32.totalorder %s17, 1
    %p113 = por %p111, %p112
    %p115 = scmp.ne.s32.totalorder %s98, %s114
    %p116 = scmp.eq.s32.totalorder %s17, 0
    %p117 = por %p115, %p116
    %s118 = ssub.s32 %s11, %s18
    %p119 = scmp.eq.s32.totalorder %s118, 0
    %s121 = sadd.s32 %s120, 1
    %s122 = scalar_select %p119, %s120, %s121
    %p125 = pneg %p119
    %p126 = scmp.eq.s32.totalorder %s11, 1
    %p127 = por %p125, %p126
    %p128 = scmp.ne.s32.totalorder %s120, %s123
    %p129 = scmp.eq.s32.totalorder %s11, 0
    %p130 = por %p128, %p129
    %p131 = scmp.ne.s32.totalorder %s120, %s123
    %p132 = scmp.eq.s32.totalorder %s16, 1
    %p133 = por %p131, %p132
    %p134 = scmp.ne.s32.totalorder %s123, %s124
    %p135 = scmp.eq.s32.totalorder %s16, 0
    %p136 = por %p134, %p135
    %p137 = scmp.ne.s32.totalorder %s123, %s124
    %p138 = scmp.eq.s32.totalorder %s17, 1
    %p139 = por %p137, %p138
    %p141 = scmp.ne.s32.totalorder %s124, %s140
    %p142 = scmp.eq.s32.totalorder %s17, 0
    %p143 = por %p141, %p142
    %p144 = scmp.le.s32.totalorder 1, %s11
    %p145 = scmp.lt.s32.totalorder %s11, 3
    %p146 = pnand %p144, %p145
    %p147 = pneg %p146
    // Predicated region
    $region9: #{residual_block_forward.2} parent=5 // pred_check
      _
    $region10: #{residual_block_forward.2} parent=5 // pred_check_branch
      %149 = sbr.rel (%p146) target = $region12
    $region11: #{residual_block_forward.2} parent=5 // pred_region
      %s150 = ssub.s32 %s11, 1
      // Predicated region
      $region13: #{residual_block_forward.2} parent=11 // pred_check
        %p151 = pneg %p58
      $region14: #{residual_block_forward.2} parent=11 // pred_check_branch
        %153 = sbr.rel (%p151) target = $region16
      $region15: #{residual_block_forward.2} parent=11 // pred_region
        _
      $region16: #{residual_block_forward.2} parent=11 // pred_fallthru
        _
    $region12: #{residual_block_forward.2} parent=5 // pred_fallthru
      _
    %p154 = scmp.lt.s32.totalorder %s11, 2
    // Predicated region
    $region17: #{residual_block_forward.2} parent=5 // pred_check
      %p155 = pneg %p154
    $region18: #{residual_block_forward.2} parent=5 // pred_check_branch
      %157 = sbr.rel (%p155) target = $region20
    $region19: #{residual_block_forward.2} parent=5 // pred_region
      // Predicated region
      $region21: #{residual_block_forward.2} parent=19 // pred_check
        %p158 = pneg %p31
      $region22: #{residual_block_forward.2} parent=19 // pred_check_branch
        %160 = sbr.rel (%p158) target = $region24
      $region23: #{residual_block_forward.2} parent=19 // pred_region
        %p161 = scmp.lt.s32.totalorder %s11, 1
        %s162 = scalar_select %p161, %s11, 1
        %s163 = smul.addr %s162, 54
        %s164 = smul.addr %s163, 4
        %s165 = scalar_lea.vmem %s0, %s164
      $region24: #{residual_block_forward.2} parent=19 // pred_fallthru
        _
    $region20: #{residual_block_forward.2} parent=5 // pred_fallthru
      _
    %p166 = scmp.le.s32.totalorder 1, %s11
    %p167 = scmp.lt.s32.totalorder %s11, 3
    %p168 = pnand %p166, %p167
    %p169 = pneg %p168
    // Predicated region
    $region25: #{residual_block_forward.2} parent=5 // pred_check
      _
    $region26: #{residual_block_forward.2} parent=5 // pred_check_branch
      %171 = sbr.rel (%p168) target = $region28
    $region27: #{residual_block_forward.2} parent=5 // pred_region
      %s172 = ssub.s32 %s11, 1
      %p173 = scmp.lt.s32.totalorder %s16, 1
      %s174 = scalar_select %p173, %s16, 1
      %s175 = smul.addr %s174, 54
      %s176 = smul.addr %s175, 4
      %s177 = scalar_lea.vmem %s0, %s176
      %p178 = pneg %p37
      %p179 = pneg %p34
      %p180 = pneg %p58
      %p181 = pneg %p55
      %p182 = pneg %p84
      %p183 = pneg %p81
      %p184 = scmp.lt.s32.totalorder %s16, 1
      %s185 = scalar_select %p184, %s16, 1
      %s186 = smul.addr %s185, 32
      %s187 = smul.addr %s186, 4
      %s188 = scalar_lea.vmem %s2, %s187
      %p189 = pneg %p110
      %p190 = pneg %p107
      %p191 = scmp.lt.s32.totalorder %s16, 1
      %s192 = scalar_select %p191, %s16, 1
      %s193 = scalar_lea.vmem %s3, %s192
      %p194 = pneg %p136
      %p195 = pneg %p133
      %p196 = scmp.lt.s32.totalorder %s16, 1
      %s197 = scalar_select %p196, %s16, 1
      %s198 = scalar_lea.vmem %s4, %s197
      %p199 = scmp.lt.s32.totalorder %s16, 1
      %s200 = scalar_select %p199, %s16, 1
      %s201 = smul.addr %s200, 54
      %s202 = smul.addr %s201, 4
      %s203 = scalar_lea.vmem %s0, %s202
      %p204 = scmp.lt.s32.totalorder %s16, 1
      %s205 = scalar_select %p204, %s16, 1
      %s206 = smul.addr %s205, 32
      %s207 = smul.addr %s206, 4
      %s208 = scalar_lea.vmem %s2, %s207
      %p209 = scmp.lt.s32.totalorder %s16, 1
      %s210 = scalar_select %p209, %s16, 1
      %s211 = scalar_lea.vmem %s3, %s210
      %p212 = scmp.lt.s32.totalorder %s16, 1
      %s213 = scalar_select %p212, %s16, 1
      %s214 = scalar_lea.vmem %s4, %s213
      %215 = vst [vmem:[#allocation2] sm:$0xff] 0.0
      %216 = vst [vmem:[#allocation2 + $0x8] sm:$0xff] 0.0
      %217 = vst [vmem:[#allocation2 + $0x10] sm:$0xff] 0.0
      %218 = vst [vmem:[#allocation2 + $0x18] sm:$0xff] 0.0
      %219 = vst [vmem:[#allocation2 + $0x20] sm:$0xff] 0.0
      %220 = vst [vmem:[#allocation2 + $0x28] sm:$0xff] 0.0
      %221 = vst [vmem:[#allocation2 + $0x30] sm:$0xff] 0.0
      %222 = vst [vmem:[#allocation2 + $0x38] sm:$0xff] 0.0
      %223 = vst [vmem:[#allocation2 + $0x40] sm:$0xff] 0.0
      %224 = vst [vmem:[#allocation2 + $0x48] sm:$0xff] 0.0
      %225 = vst [vmem:[#allocation2 + $0x50] sm:$0xff] 0.0
      %226 = vst [vmem:[#allocation2 + $0x58] sm:$0xff] 0.0
      %227 = vst [vmem:[#allocation2 + $0x60] sm:$0xff] 0.0
      %228 = vst [vmem:[#allocation2 + $0x68] sm:$0xff] 0.0
      %229 = vst [vmem:[#allocation2 + $0x70] sm:$0xff] 0.0
      %230 = vst [vmem:[#allocation2 + $0x78] sm:$0xff] 0.0
      %231 = vst [vmem:[#allocation2 + $0x80] sm:$0xff] 0.0
      %232 = vst [vmem:[#allocation2 + $0x88] sm:$0xff] 0.0
      %233 = vst [vmem:[#allocation2 + $0x90] sm:$0xff] 0.0
      %234 = vst [vmem:[#allocation2 + $0x98] sm:$0xff] 0.0
      %235 = vst [vmem:[#allocation2 + $0xa0] sm:$0xff] 0.0
      %236 = vst [vmem:[#allocation2 + $0xa8] sm:$0xff] 0.0
      %237 = vst [vmem:[#allocation2 + $0xb0] sm:$0xff] 0.0
      %238 = vst [vmem:[#allocation2 + $0xb8] sm:$0xff] 0.0
      %239 = vst [vmem:[#allocation2 + $0xc0] sm:$0xff] 0.0
      %240 = vst [vmem:[#allocation2 + $0xc8] sm:$0xff] 0.0
      %241 = vst [vmem:[#allocation2 + $0xd0] sm:$0xff] 0.0
      %242 = vst [vmem:[#allocation2 + $0xd8] sm:$0xff] 0.0
      %243 = vst [vmem:[#allocation2 + $0xe0] sm:$0xff] 0.0
      %244 = vst [vmem:[#allocation2 + $0xe8] sm:$0xff] 0.0
      %245 = vst [vmem:[#allocation2 + $0xf0] sm:$0xff] 0.0
      %246 = vst [vmem:[#allocation2 + $0xf8] sm:$0xff] 0.0
      %v247 = vld [vmem:[%s203] sm:$0xf]
      %v248 = vld [vmem:[%s203 + $0x4] sm:$0xf]
      %v249 = vld [vmem:[%s203 + $0xc] sm:$0xf]
      %v250 = vld [vmem:[%s203 + $0x10] sm:$0xf]
      %v251 = vld [vmem:[%s203 + $0x18] sm:$0xf]
      %v252 = vld [vmem:[%s203 + $0x1c] sm:$0xf]
      %v253 = vld [vmem:[%s203 + $0x24] sm:$0xf]
      %v254 = vld [vmem:[%s203 + $0x28] sm:$0xf]
      %v255 = vld [vmem:[%s203 + $0x30] sm:$0xf]
      %v256 = vld [vmem:[%s203 + $0x34] sm:$0xf]
      %v257 = vld [vmem:[%s203 + $0x3c] sm:$0xf]
      %v258 = vld [vmem:[%s203 + $0x40] sm:$0xf]
      %v259 = vld [vmem:[%s203 + $0x48] sm:$0xf]
      %v260 = vld [vmem:[%s203 + $0x4c] sm:$0xf]
      %v261 = vld [vmem:[%s203 + $0x54] sm:$0xf]
      %v262 = vld [vmem:[%s203 + $0x58] sm:$0xf]
      %v263 = vld [vmem:[%s203 + $0x60] sm:$0xf]
      %v264 = vld [vmem:[%s203 + $0x64] sm:$0xf]
      %v265 = vld [vmem:[%s203 + $0x6c] sm:$0xf]
      %v266 = vld [vmem:[%s203 + $0x70] sm:$0xf]
      %v267 = vld [vmem:[%s203 + $0x78] sm:$0xf]
      %v268 = vld [vmem:[%s203 + $0x7c] sm:$0xf]
      %v269 = vld [vmem:[%s203 + $0x84] sm:$0xf]
      %v270 = vld [vmem:[%s203 + $0x88] sm:$0xf]
      %v271 = vld [vmem:[%s203 + $0x90] sm:$0xf]
      %v272 = vld [vmem:[%s203 + $0x94] sm:$0xf]
      %v273 = vld [vmem:[%s203 + $0x9c] sm:$0xf]
      %v274 = vld [vmem:[%s203 + $0xa0] sm:$0xf]
      %v275 = vld [vmem:[%s203 + $0xa8] sm:$0xf]
      %v276 = vld [vmem:[%s203 + $0xac] sm:$0xf]
      %v277 = vld [vmem:[%s203 + $0xb4] sm:$0xf]
      %v278 = vld [vmem:[%s203 + $0xb8] sm:$0xf]
      %v279 = vld [vmem:[#allocation2] sm:$0xff]
      %v280 = vld [vmem:[#allocation2 + $0x8] sm:$0xff]
      %v281 = vld [vmem:[#allocation2 + $0x10] sm:$0xff]
      %v282 = vld [vmem:[#allocation2 + $0x18] sm:$0xff]
      %v283 = vld [vmem:[#allocation2 + $0x20] sm:$0xff]
      %v284 = vld [vmem:[#allocation2 + $0x28] sm:$0xff]
      %v285 = vld [vmem:[#allocation2 + $0x30] sm:$0xff]
      %v286 = vld [vmem:[#allocation2 + $0x38] sm:$0xff]
      %v287 = vld [vmem:[#allocation2 + $0x40] sm:$0xff]
      %v288 = vld [vmem:[#allocation2 + $0x48] sm:$0xff]
      %v289 = vld [vmem:[#allocation2 + $0x50] sm:$0xff]
      %v290 = vld [vmem:[#allocation2 + $0x58] sm:$0xff]
      %v291 = vld [vmem:[#allocation2 + $0x60] sm:$0xff]
      %v292 = vld [vmem:[#allocation2 + $0x68] sm:$0xff]
      %v293 = vld [vmem:[#allocation2 + $0x70] sm:$0xff]
      %v294 = vld [vmem:[#allocation2 + $0x78] sm:$0xff]
      %v295 = vld [vmem:[#allocation2 + $0x80] sm:$0xff]
      %v296 = vld [vmem:[#allocation2 + $0x88] sm:$0xff]
      %v297 = vld [vmem:[#allocation2 + $0x90] sm:$0xff]
      %v298 = vld [vmem:[#allocation2 + $0x98] sm:$0xff]
      %v299 = vld [vmem:[#allocation2 + $0xa0] sm:$0xff]
      %v300 = vld [vmem:[#allocation2 + $0xa8] sm:$0xff]
      %v301 = vld [vmem:[#allocation2 + $0xb0] sm:$0xff]
      %v302 = vld [vmem:[#allocation2 + $0xb8] sm:$0xff]
      %v303 = vld [vmem:[#allocation2 + $0xc0] sm:$0xff]
      %v304 = vld [vmem:[#allocation2 + $0xc8] sm:$0xff]
      %v305 = vld [vmem:[#allocation2 + $0xd0] sm:$0xff]
      %v306 = vld [vmem:[#allocation2 + $0xd8] sm:$0xff]
      %v307 = vld [vmem:[#allocation2 + $0xe0] sm:$0xff]
      %v308 = vld [vmem:[#allocation2 + $0xe8] sm:$0xff]
      %v309 = vld [vmem:[#allocation2 + $0xf0] sm:$0xff]
      %v310 = vld [vmem:[#allocation2 + $0xf8] sm:$0xff]
      %v311 = vld [vmem:[%s1] sm:$0xf]
      %v312 = vld [vmem:[%s1 + $0x4] sm:$0xf]
      %v313 = vld [vmem:[%s1 + $0x8] sm:$0xf]
      %v314 = vld [vmem:[%s1 + $0xc] sm:$0xf]
      %v315 = vld [vmem:[%s1 + $0x10] sm:$0xf]
      %v316 = vld [vmem:[%s1 + $0x14] sm:$0xf]
      %v317 = vld [vmem:[%s1 + $0x18] sm:$0xf]
      %v318 = vld [vmem:[%s1 + $0x1c] sm:$0xf]
      %v319 = vld [vmem:[%s1 + $0x20] sm:$0xf]
      %v320 = vld [vmem:[%s1 + $0x24] sm:$0xf]
      %v321 = vld [vmem:[%s1 + $0x28] sm:$0xf]
      %v322 = vld [vmem:[%s1 + $0x2c] sm:$0xf]
      %v323 = vld [vmem:[%s1 + $0x30] sm:$0xf]
      %v324 = vld [vmem:[%s1 + $0x34] sm:$0xf]
      %v325 = vld [vmem:[%s1 + $0x38] sm:$0xf]
      %v326 = vld [vmem:[%s1 + $0x3c] sm:$0xf]
      %v359 = vunpack.c.l.b16 %v247
      %v360 = vunpack.c.l.b16 %v248
      %v361 = vunpack.c.l.b16 %v249
      %v362 = vunpack.c.l.b16 %v250
      %v363 = vunpack.c.l.b16 %v251
      %v364 = vunpack.c.l.b16 %v252
      %v365 = vunpack.c.l.b16 %v253
      %v366 = vunpack.c.l.b16 %v254
      %v367 = vunpack.c.l.b16 %v255
      %v368 = vunpack.c.l.b16 %v256
      %v369 = vunpack.c.l.b16 %v257
      %v370 = vunpack.c.l.b16 %v258
      %v371 = vunpack.c.l.b16 %v259
      %v372 = vunpack.c.l.b16 %v260
      %v373 = vunpack.c.l.b16 %v261
      %v374 = vunpack.c.l.b16 %v262
      %v375 = vunpack.c.l.b16 %v263
      %v376 = vunpack.c.l.b16 %v264
      %v377 = vunpack.c.l.b16 %v265
      %v378 = vunpack.c.l.b16 %v266
      %v379 = vunpack.c.l.b16 %v267
      %v380 = vunpack.c.l.b16 %v268
      %v381 = vunpack.c.l.b16 %v269
      %v382 = vunpack.c.l.b16 %v270
      %v383 = vunpack.c.l.b16 %v271
      %v384 = vunpack.c.l.b16 %v272
      %v385 = vunpack.c.l.b16 %v273
      %v386 = vunpack.c.l.b16 %v274
      %v387 = vunpack.c.l.b16 %v275
      %v388 = vunpack.c.l.b16 %v276
      %v389 = vunpack.c.l.b16 %v277
      %v390 = vunpack.c.l.b16 %v278
      %v391 = vpack.c.b16 %v360, %v359
      %v392 = vpack.c.b16 %v362, %v361
      %v393 = vpack.c.b16 %v364, %v363
      %v394 = vpack.c.b16 %v366, %v365
      %v395 = vpack.c.b16 %v368, %v367
      %v396 = vpack.c.b16 %v370, %v369
      %v397 = vpack.c.b16 %v372, %v371
      %v398 = vpack.c.b16 %v374, %v373
      %v399 = vpack.c.b16 %v376, %v375
      %v400 = vpack.c.b16 %v378, %v377
      %v401 = vpack.c.b16 %v380, %v379
      %v402 = vpack.c.b16 %v382, %v381
      %v403 = vpack.c.b16 %v384, %v383
      %v404 = vpack.c.b16 %v386, %v385
      %v405 = vpack.c.b16 %v388, %v387
      %v406 = vpack.c.b16 %v390, %v389
      %v439 = vunpack.c.l.b16 %v311
      %v440 = vunpack.c.l.b16 %v312
      %v441 = vunpack.c.l.b16 %v313
      %v442 = vunpack.c.l.b16 %v314
      %v443 = vunpack.c.l.b16 %v315
      %v444 = vunpack.c.l.b16 %v316
      %v445 = vunpack.c.l.b16 %v317
      %v446 = vunpack.c.l.b16 %v318
      %v447 = vunpack.c.l.b16 %v319
      %v448 = vunpack.c.l.b16 %v320
      %v449 = vunpack.c.l.b16 %v321
      %v450 = vunpack.c.l.b16 %v322
      %v451 = vunpack.c.l.b16 %v323
      %v452 = vunpack.c.l.b16 %v324
      %v453 = vunpack.c.l.b16 %v325
      %v454 = vunpack.c.l.b16 %v326
      %v455 = vpack.c.b16 %v440, %v439
      %v456 = vpack.c.b16 %v442, %v441
      %v457 = vpack.c.b16 %v444, %v443
      %v458 = vpack.c.b16 %v446, %v445
      %v459 = vpack.c.b16 %v448, %v447
      %v460 = vpack.c.b16 %v450, %v449
      %v461 = vpack.c.b16 %v452, %v451
      %v462 = vpack.c.b16 %v454, %v453
      %471 = vmatpush.bf16.msra.mxu0 %v462
      %472 = vmatpush.bf16.msra.mxu0 %v461
      %473 = vmatpush.bf16.msra.mxu0 %v460
      %474 = vmatpush.bf16.msra.mxu0 %v459
      %475 = vmatpush.bf16.msra.mxu0 %v458
      %476 = vmatpush.bf16.msra.mxu0 %v457
      %477 = vmatpush.bf16.msra.mxu0 %v456
      %478 = vmatpush.bf16.msra.mxu0 %v455
      %479 = vmatmul.bf16.gmra.mxu0 %v391
      %v480 = vpop.f32.mrf.mxu0
      %v481 = vadd.f32 0.0, %v480
      %v482 = vpop.f32.mrf.mxu0
      %v483 = vadd.f32 0.0, %v482
      %484 = vmatmul.bf16.gmra.mxu0 %v392
      %v485 = vpop.f32.mrf.mxu0
      %v486 = vadd.f32 0.0, %v485
      %v487 = vpop.f32.mrf.mxu0
      %v488 = vadd.f32 0.0, %v487
      %489 = vmatmul.bf16.gmra.mxu0 %v393
      %v490 = vpop.f32.mrf.mxu0
      %v491 = vadd.f32 0.0, %v490
      %v492 = vpop.f32.mrf.mxu0
      %v493 = vadd.f32 0.0, %v492
      %494 = vmatmul.bf16.gmra.mxu0 %v394
      %v495 = vpop.f32.mrf.mxu0
      %v496 = vadd.f32 0.0, %v495
      %v497 = vpop.f32.mrf.mxu0
      %v498 = vadd.f32 0.0, %v497
      %499 = vmatmul.bf16.gmra.mxu0 %v395
      %v500 = vpop.f32.mrf.mxu0
      %v501 = vadd.f32 0.0, %v500
      %v502 = vpop.f32.mrf.mxu0
      %v503 = vadd.f32 0.0, %v502
      %504 = vmatmul.bf16.gmra.mxu0 %v396
      %v505 = vpop.f32.mrf.mxu0
      %v506 = vadd.f32 0.0, %v505
      %v507 = vpop.f32.mrf.mxu0
      %v508 = vadd.f32 0.0, %v507
      %509 = vmatmul.bf16.gmra.mxu0 %v397
      %v510 = vpop.f32.mrf.mxu0
      %v511 = vadd.f32 0.0, %v510
      %v512 = vpop.f32.mrf.mxu0
      %v513 = vadd.f32 0.0, %v512
      %514 = vmatmul.bf16.gmra.mxu0 %v398
      %v515 = vpop.f32.mrf.mxu0
      %v516 = vadd.f32 0.0, %v515
      %v517 = vpop.f32.mrf.mxu0
      %v518 = vadd.f32 0.0, %v517
      %519 = vmatmul.bf16.gmra.mxu0 %v399
      %v520 = vpop.f32.mrf.mxu0
      %v521 = vadd.f32 0.0, %v520
      %v522 = vpop.f32.mrf.mxu0
      %v523 = vadd.f32 0.0, %v522
      %524 = vmatmul.bf16.gmra.mxu0 %v400
      %v525 = vpop.f32.mrf.mxu0
      %v526 = vadd.f32 0.0, %v525
      %v527 = vpop.f32.mrf.mxu0
      %v528 = vadd.f32 0.0, %v527
      %529 = vmatmul.bf16.gmra.mxu0 %v401
      %v530 = vpop.f32.mrf.mxu0
      %v531 = vadd.f32 0.0, %v530
      %v532 = vpop.f32.mrf.mxu0
      %v533 = vadd.f32 0.0, %v532
      %534 = vmatmul.bf16.gmra.mxu0 %v402
      %v535 = vpop.f32.mrf.mxu0
      %v536 = vadd.f32 0.0, %v535
      %v537 = vpop.f32.mrf.mxu0
      %v538 = vadd.f32 0.0, %v537
      %539 = vmatmul.bf16.gmra.mxu0 %v403
      %v540 = vpop.f32.mrf.mxu0
      %v541 = vadd.f32 0.0, %v540
      %v542 = vpop.f32.mrf.mxu0
      %v543 = vadd.f32 0.0, %v542
      %544 = vmatmul.bf16.gmra.mxu0 %v404
      %v545 = vpop.f32.mrf.mxu0
      %v546 = vadd.f32 0.0, %v545
      %v547 = vpop.f32.mrf.mxu0
      %v548 = vadd.f32 0.0, %v547
      %549 = vmatmul.bf16.gmra.mxu0 %v405
      %v550 = vpop.f32.mrf.mxu0
      %v551 = vadd.f32 0.0, %v550
      %v552 = vpop.f32.mrf.mxu0
      %v553 = vadd.f32 0.0, %v552
      %554 = vmatmul.bf16.gmra.mxu0 %v406
      %v555 = vpop.f32.mrf.mxu0
      %v556 = vadd.f32 0.0, %v555
      %v557 = vpop.f32.mrf.mxu0
      %v558 = vadd.f32 0.0, %v557
      %559 = vdwg.mxu0
      %v560 = vadd.f32 %v279, %v481
      %v561 = vadd.f32 %v280, %v483
      %v562 = vadd.f32 %v281, %v486
      %v563 = vadd.f32 %v282, %v488
      %v564 = vadd.f32 %v283, %v491
      %v565 = vadd.f32 %v284, %v493
      %v566 = vadd.f32 %v285, %v496
      %v567 = vadd.f32 %v286, %v498
      %v568 = vadd.f32 %v287, %v501
      %v569 = vadd.f32 %v288, %v503
      %v570 = vadd.f32 %v289, %v506
      %v571 = vadd.f32 %v290, %v508
      %v572 = vadd.f32 %v291, %v511
      %v573 = vadd.f32 %v292, %v513
      %v574 = vadd.f32 %v293, %v516
      %v575 = vadd.f32 %v294, %v518
      %v576 = vadd.f32 %v295, %v521
      %v577 = vadd.f32 %v296, %v523
      %v578 = vadd.f32 %v297, %v526
      %v579 = vadd.f32 %v298, %v528
      %v580 = vadd.f32 %v299, %v531
      %v581 = vadd.f32 %v300, %v533
      %v582 = vadd.f32 %v301, %v536
      %v583 = vadd.f32 %v302, %v538
      %v584 = vadd.f32 %v303, %v541
      %v585 = vadd.f32 %v304, %v543
      %v586 = vadd.f32 %v305, %v546
      %v587 = vadd.f32 %v306, %v548
      %v588 = vadd.f32 %v307, %v551
      %v589 = vadd.f32 %v308, %v553
      %v590 = vadd.f32 %v309, %v556
      %v591 = vadd.f32 %v310, %v558
      %592 = vst [vmem:[#allocation2] sm:$0xff] %v560
      %593 = vst [vmem:[#allocation2 + $0x8] sm:$0xff] %v561
      %594 = vst [vmem:[#allocation2 + $0x10] sm:$0xff] %v562
      %595 = vst [vmem:[#allocation2 + $0x18] sm:$0xff] %v563
      %596 = vst [vmem:[#allocation2 + $0x20] sm:$0xff] %v564
      %597 = vst [vmem:[#allocation2 + $0x28] sm:$0xff] %v565
      %598 = vst [vmem:[#allocation2 + $0x30] sm:$0xff] %v566
      %599 = vst [vmem:[#allocation2 + $0x38] sm:$0xff] %v567
      %600 = vst [vmem:[#allocation2 + $0x40] sm:$0xff] %v568
      %601 = vst [vmem:[#allocation2 + $0x48] sm:$0xff] %v569
      %602 = vst [vmem:[#allocation2 + $0x50] sm:$0xff] %v570
      %603 = vst [vmem:[#allocation2 + $0x58] sm:$0xff] %v571
      %604 = vst [vmem:[#allocation2 + $0x60] sm:$0xff] %v572
      %605 = vst [vmem:[#allocation2 + $0x68] sm:$0xff] %v573
      %606 = vst [vmem:[#allocation2 + $0x70] sm:$0xff] %v574
      %607 = vst [vmem:[#allocation2 + $0x78] sm:$0xff] %v575
      %608 = vst [vmem:[#allocation2 + $0x80] sm:$0xff] %v576
      %609 = vst [vmem:[#allocation2 + $0x88] sm:$0xff] %v577
      %610 = vst [vmem:[#allocation2 + $0x90] sm:$0xff] %v578
      %611 = vst [vmem:[#allocation2 + $0x98] sm:$0xff] %v579
      %612 = vst [vmem:[#allocation2 + $0xa0] sm:$0xff] %v580
      %613 = vst [vmem:[#allocation2 + $0xa8] sm:$0xff] %v581
      %614 = vst [vmem:[#allocation2 + $0xb0] sm:$0xff] %v582
      %615 = vst [vmem:[#allocation2 + $0xb8] sm:$0xff] %v583
      %616 = vst [vmem:[#allocation2 + $0xc0] sm:$0xff] %v584
      %617 = vst [vmem:[#allocation2 + $0xc8] sm:$0xff] %v585
      %618 = vst [vmem:[#allocation2 + $0xd0] sm:$0xff] %v586
      %619 = vst [vmem:[#allocation2 + $0xd8] sm:$0xff] %v587
      %620 = vst [vmem:[#allocation2 + $0xe0] sm:$0xff] %v588
      %621 = vst [vmem:[#allocation2 + $0xe8] sm:$0xff] %v589
      %622 = vst [vmem:[#allocation2 + $0xf0] sm:$0xff] %v590
      %623 = vst [vmem:[#allocation2 + $0xf8] sm:$0xff] %v591
      %v624 = vld [vmem:[%s203] sm:$0xf]
      %v625 = vld [vmem:[%s203 + $0x4] sm:$0xf]
      %v626 = vld [vmem:[%s203 + $0x8] sm:$0x1]
      %v627 = vld [vmem:[%s203 + $0xc] sm:$0xf]
      %v628 = vld [vmem:[%s203 + $0x10] sm:$0xf]
      %v629 = vld [vmem:[%s203 + $0x14] sm:$0x1]
      %v630 = vld [vmem:[%s203 + $0x18] sm:$0xf]
      %v631 = vld [vmem:[%s203 + $0x1c] sm:$0xf]
      %v632 = vld [vmem:[%s203 + $0x20] sm:$0x1]
      %v633 = vld [vmem:[%s203 + $0x24] sm:$0xf]
      %v634 = vld [vmem:[%s203 + $0x28] sm:$0xf]
      %v635 = vld [vmem:[%s203 + $0x2c] sm:$0x1]
      %v636 = vld [vmem:[%s203 + $0x30] sm:$0xf]
      %v637 = vld [vmem:[%s203 + $0x34] sm:$0xf]
      %v638 = vld [vmem:[%s203 + $0x38] sm:$0x1]
      %v639 = vld [vmem:[%s203 + $0x3c] sm:$0xf]
      %v640 = vld [vmem:[%s203 + $0x40] sm:$0xf]
      %v641 = vld [vmem:[%s203 + $0x44] sm:$0x1]
      %v642 = vld [vmem:[%s203 + $0x48] sm:$0xf]
      %v643 = vld [vmem:[%s203 + $0x4c] sm:$0xf]
      %v644 = vld [vmem:[%s203 + $0x50] sm:$0x1]
      %v645 = vld [vmem:[%s203 + $0x54] sm:$0xf]
      %v646 = vld [vmem:[%s203 + $0x58] sm:$0xf]
      %v647 = vld [vmem:[%s203 + $0x5c] sm:$0x1]
      %v648 = vld [vmem:[%s203 + $0x60] sm:$0xf]
      %v649 = vld [vmem:[%s203 + $0x64] sm:$0xf]
      %v650 = vld [vmem:[%s203 + $0x68] sm:$0x1]
      %v651 = vld [vmem:[%s203 + $0x6c] sm:$0xf]
      %v652 = vld [vmem:[%s203 + $0x70] sm:$0xf]
      %v653 = vld [vmem:[%s203 + $0x74] sm:$0x1]
      %v654 = vld [vmem:[%s203 + $0x78] sm:$0xf]
      %v655 = vld [vmem:[%s203 + $0x7c] sm:$0xf]
      %v656 = vld [vmem:[%s203 + $0x80] sm:$0x1]
      %v657 = vld [vmem:[%s203 + $0x84] sm:$0xf]
      %v658 = vld [vmem:[%s203 + $0x88] sm:$0xf]
      %v659 = vld [vmem:[%s203 + $0x8c] sm:$0x1]
      %v660 = vld [vmem:[%s203 + $0x90] sm:$0xf]
      %v661 = vld [vmem:[%s203 + $0x94] sm:$0xf]
      %v662 = vld [vmem:[%s203 + $0x98] sm:$0x1]
      %v663 = vld [vmem:[%s203 + $0x9c] sm:$0xf]
      %v664 = vld [vmem:[%s203 + $0xa0] sm:$0xf]
      %v665 = vld [vmem:[%s203 + $0xa4] sm:$0x1]
      %v666 = vld [vmem:[%s203 + $0xa8] sm:$0xf]
      %v667 = vld [vmem:[%s203 + $0xac] sm:$0xf]
      %v668 = vld [vmem:[%s203 + $0xb0] sm:$0x1]
      %v669 = vld [vmem:[%s203 + $0xb4] sm:$0xf]
      %v670 = vld [vmem:[%s203 + $0xb8] sm:$0xf]
      %v671 = vld [vmem:[%s203 + $0xbc] sm:$0x1]
      %vm672 = vsmask.f32 3328
      %vm673 = vsmask.f32 7440
      %vm674 = vmor %vm672, %vm673
      %v676 = vshrl.u32 %v624, 16
      %v678 = vrot.slane %v676, 4
      %v679 = vshll.u32 %v624, 16
      %v681 = vrot.slane %v679, 5
      %v682 = vor.u32 %v678, %v681
      %v683 = vrot.slane %v682, 4
      %v685 = vshll.u32 %v625, 16
      %v687 = vrot.slane %v685, 5
      %v688 = vsel %vm674, %v683, %v687
      %v689 = vshrl.u32 %v625, 16
      %v691 = vrot.slane %v689, 4
      %v692 = vor.u32 %v691, %v687
      %v693 = vrot.slane %v692, 4
      %v695 = vshll.u32 %v626, 16
      %v697 = vrot.slane %v695, 5
      %v698 = vsel %vm674, %v693, %v697
      %v700 = vshrl.u32 %v627, 16
      %v702 = vrot.slane %v700, 4
      %v703 = vshll.u32 %v627, 16
      %v705 = vrot.slane %v703, 5
      %v706 = vor.u32 %v702, %v705
      %v707 = vrot.slane %v706, 4
      %v709 = vshll.u32 %v628, 16
      %v711 = vrot.slane %v709, 5
      %v712 = vsel %vm674, %v707, %v711
      %v713 = vshrl.u32 %v628, 16
      %v715 = vrot.slane %v713, 4
      %v716 = vor.u32 %v715, %v711
      %v717 = vrot.slane %v716, 4
      %v719 = vshll.u32 %v629, 16
      %v721 = vrot.slane %v719, 5
      %v722 = vsel %vm674, %v717, %v721
      %v724 = vshrl.u32 %v630, 16
      %v726 = vrot.slane %v724, 4
      %v727 = vshll.u32 %v630, 16
      %v729 = vrot.slane %v727, 5
      %v730 = vor.u32 %v726, %v729
      %v731 = vrot.slane %v730, 4
      %v733 = vshll.u32 %v631, 16
      %v735 = vrot.slane %v733, 5
      %v736 = vsel %vm674, %v731, %v735
      %v737 = vshrl.u32 %v631, 16
      %v739 = vrot.slane %v737, 4
      %v740 = vor.u32 %v739, %v735
      %v741 = vrot.slane %v740, 4
      %v743 = vshll.u32 %v632, 16
      %v745 = vrot.slane %v743, 5
      %v746 = vsel %vm674, %v741, %v745
      %v748 = vshrl.u32 %v633, 16
      %v750 = vrot.slane %v748, 4
      %v751 = vshll.u32 %v633, 16
      %v753 = vrot.slane %v751, 5
      %v754 = vor.u32 %v750, %v753
      %v755 = vrot.slane %v754, 4
      %v757 = vshll.u32 %v634, 16
      %v759 = vrot.slane %v757, 5
      %v760 = vsel %vm674, %v755, %v759
      %v761 = vshrl.u32 %v634, 16
      %v763 = vrot.slane %v761, 4
      %v764 = vor.u32 %v763, %v759
      %v765 = vrot.slane %v764, 4
      %v767 = vshll.u32 %v635, 16
      %v769 = vrot.slane %v767, 5
      %v770 = vsel %vm674, %v765, %v769
      %v772 = vshrl.u32 %v636, 16
      %v774 = vrot.slane %v772, 4
      %v775 = vshll.u32 %v636, 16
      %v777 = vrot.slane %v775, 5
      %v778 = vor.u32 %v774, %v777
      %v779 = vrot.slane %v778, 4
      %v781 = vshll.u32 %v637, 16
      %v783 = vrot.slane %v781, 5
      %v784 = vsel %vm674, %v779, %v783
      %v785 = vshrl.u32 %v637, 16
      %v787 = vrot.slane %v785, 4
      %v788 = vor.u32 %v787, %v783
      %v789 = vrot.slane %v788, 4
      %v791 = vshll.u32 %v638, 16
      %v793 = vrot.slane %v791, 5
      %v794 = vsel %vm674, %v789, %v793
      %v796 = vshrl.u32 %v639, 16
      %v798 = vrot.slane %v796, 4
      %v799 = vshll.u32 %v639, 16
      %v801 = vrot.slane %v799, 5
      %v802 = vor.u32 %v798, %v801
      %v803 = vrot.slane %v802, 4
      %v805 = vshll.u32 %v640, 16
      %v807 = vrot.slane %v805, 5
      %v808 = vsel %vm674, %v803, %v807
      %v809 = vshrl.u32 %v640, 16
      %v811 = vrot.slane %v809, 4
      %v812 = vor.u32 %v811, %v807
      %v813 = vrot.slane %v812, 4
      %v815 = vshll.u32 %v641, 16
      %v817 = vrot.slane %v815, 5
      %v818 = vsel %vm674, %v813, %v817
      %v820 = vshrl.u32 %v642, 16
      %v822 = vrot.slane %v820, 4
      %v823 = vshll.u32 %v642, 16
      %v825 = vrot.slane %v823, 5
      %v826 = vor.u32 %v822, %v825
      %v827 = vrot.slane %v826, 4
      %v829 = vshll.u32 %v643, 16
      %v831 = vrot.slane %v829, 5
      %v832 = vsel %vm674, %v827, %v831
      %v833 = vshrl.u32 %v643, 16
      %v835 = vrot.slane %v833, 4
      %v836 = vor.u32 %v835, %v831
      %v837 = vrot.slane %v836, 4
      %v839 = vshll.u32 %v644, 16
      %v841 = vrot.slane %v839, 5
      %v842 = vsel %vm674, %v837, %v841
      %v844 = vshrl.u32 %v645, 16
      %v846 = vrot.slane %v844, 4
      %v847 = vshll.u32 %v645, 16
      %v849 = vrot.slane %v847, 5
      %v850 = vor.u32 %v846, %v849
      %v851 = vrot.slane %v850, 4
      %v853 = vshll.u32 %v646, 16
      %v855 = vrot.slane %v853, 5
      %v856 = vsel %vm674, %v851, %v855
      %v857 = vshrl.u32 %v646, 16
      %v859 = vrot.slane %v857, 4
      %v860 = vor.u32 %v859, %v855
      %v861 = vrot.slane %v860, 4
      %v863 = vshll.u32 %v647, 16
      %v865 = vrot.slane %v863, 5
      %v866 = vsel %vm674, %v861, %v865
      %v868 = vshrl.u32 %v648, 16
      %v870 = vrot.slane %v868, 4
      %v871 = vshll.u32 %v648, 16
      %v873 = vrot.slane %v871, 5
      %v874 = vor.u32 %v870, %v873
      %v875 = vrot.slane %v874, 4
      %v877 = vshll.u32 %v649, 16
      %v879 = vrot.slane %v877, 5
      %v880 = vsel %vm674, %v875, %v879
      %v881 = vshrl.u32 %v649, 16
      %v883 = vrot.slane %v881, 4
      %v884 = vor.u32 %v883, %v879
      %v885 = vrot.slane %v884, 4
      %v887 = vshll.u32 %v650, 16
      %v889 = vrot.slane %v887, 5
      %v890 = vsel %vm674, %v885, %v889
      %v892 = vshrl.u32 %v651, 16
      %v894 = vrot.slane %v892, 4
      %v895 = vshll.u32 %v651, 16
      %v897 = vrot.slane %v895, 5
      %v898 = vor.u32 %v894, %v897
      %v899 = vrot.slane %v898, 4
      %v901 = vshll.u32 %v652, 16
      %v903 = vrot.slane %v901, 5
      %v904 = vsel %vm674, %v899, %v903
      %v905 = vshrl.u32 %v652, 16
      %v907 = vrot.slane %v905, 4
      %v908 = vor.u32 %v907, %v903
      %v909 = vrot.slane %v908, 4
      %v911 = vshll.u32 %v653, 16
      %v913 = vrot.slane %v911, 5
      %v914 = vsel %vm674, %v909, %v913
      %v916 = vshrl.u32 %v654, 16
      %v918 = vrot.slane %v916, 4
      %v919 = vshll.u32 %v654, 16
      %v921 = vrot.slane %v919, 5
      %v922 = vor.u32 %v918, %v921
      %v923 = vrot.slane %v922, 4
      %v925 = vshll.u32 %v655, 16
      %v927 = vrot.slane %v925, 5
      %v928 = vsel %vm674, %v923, %v927
      %v929 = vshrl.u32 %v655, 16
      %v931 = vrot.slane %v929, 4
      %v932 = vor.u32 %v931, %v927
      %v933 = vrot.slane %v932, 4
      %v935 = vshll.u32 %v656, 16
      %v937 = vrot.slane %v935, 5
      %v938 = vsel %vm674, %v933, %v937
      %v940 = vshrl.u32 %v657, 16
      %v942 = vrot.slane %v940, 4
      %v943 = vshll.u32 %v657, 16
      %v945 = vrot.slane %v943, 5
      %v946 = vor.u32 %v942, %v945
      %v947 = vrot.slane %v946, 4
      %v949 = vshll.u32 %v658, 16
      %v951 = vrot.slane %v949, 5
      %v952 = vsel %vm674, %v947, %v951
      %v953 = vshrl.u32 %v658, 16
      %v955 = vrot.slane %v953, 4
      %v956 = vor.u32 %v955, %v951
      %v957 = vrot.slane %v956, 4
      %v959 = vshll.u32 %v659, 16
      %v961 = vrot.slane %v959, 5
      %v962 = vsel %vm674, %v957, %v961
      %v964 = vshrl.u32 %v660, 16
      %v966 = vrot.slane %v964, 4
      %v967 = vshll.u32 %v660, 16
      %v969 = vrot.slane %v967, 5
      %v970 = vor.u32 %v966, %v969
      %v971 = vrot.slane %v970, 4
      %v973 = vshll.u32 %v661, 16
      %v975 = vrot.slane %v973, 5
      %v976 = vsel %vm674, %v971, %v975
      %v977 = vshrl.u32 %v661, 16
      %v979 = vrot.slane %v977, 4
      %v980 = vor.u32 %v979, %v975
      %v981 = vrot.slane %v980, 4
      %v983 = vshll.u32 %v662, 16
      %v985 = vrot.slane %v983, 5
      %v986 = vsel %vm674, %v981, %v985
      %v988 = vshrl.u32 %v663, 16
      %v990 = vrot.slane %v988, 4
      %v991 = vshll.u32 %v663, 16
      %v993 = vrot.slane %v991, 5
      %v994 = vor.u32 %v990, %v993
      %v995 = vrot.slane %v994, 4
      %v997 = vshll.u32 %v664, 16
      %v999 = vrot.slane %v997, 5
      %v1000 = vsel %vm674, %v995, %v999
      %v1001 = vshrl.u32 %v664, 16
      %v1003 = vrot.slane %v1001, 4
      %v1004 = vor.u32 %v1003, %v999
      %v1005 = vrot.slane %v1004, 4
      %v1007 = vshll.u32 %v665, 16
      %v1009 = vrot.slane %v1007, 5
      %v1010 = vsel %vm674, %v1005, %v1009
      %v1012 = vshrl.u32 %v666, 16
      %v1014 = vrot.slane %v1012, 4
      %v1015 = vshll.u32 %v666, 16
      %v1017 = vrot.slane %v1015, 5
      %v1018 = vor.u32 %v1014, %v1017
      %v1019 = vrot.slane %v1018, 4
      %v1021 = vshll.u32 %v667, 16
      %v1023 = vrot.slane %v1021, 5
      %v1024 = vsel %vm674, %v1019, %v1023
      %v1025 = vshrl.u32 %v667, 16
      %v1027 = vrot.slane %v1025, 4
      %v1028 = vor.u32 %v1027, %v1023
      %v1029 = vrot.slane %v1028, 4
      %v1031 = vshll.u32 %v668, 16
      %v1033 = vrot.slane %v1031, 5
      %v1034 = vsel %vm674, %v1029, %v1033
      %v1036 = vshrl.u32 %v669, 16
      %v1038 = vrot.slane %v1036, 4
      %v1039 = vshll.u32 %v669, 16
      %v1041 = vrot.slane %v1039, 5
      %v1042 = vor.u32 %v1038, %v1041
      %v1043 = vrot.slane %v1042, 4
      %v1045 = vshll.u32 %v670, 16
      %v1047 = vrot.slane %v1045, 5
      %v1048 = vsel %vm674, %v1043, %v1047
      %v1049 = vshrl.u32 %v670, 16
      %v1051 = vrot.slane %v1049, 4
      %v1052 = vor.u32 %v1051, %v1047
      %v1053 = vrot.slane %v1052, 4
      %v1055 = vshll.u32 %v671, 16
      %v1057 = vrot.slane %v1055, 5
      %v1058 = vsel %vm674, %v1053, %v1057
      %v1059 = vld [vmem:[#allocation2] sm:$0xff]
      %v1060 = vld [vmem:[#allocation2 + $0x8] sm:$0xff]
      %v1061 = vld [vmem:[#allocation2 + $0x10] sm:$0xff]
      %v1062 = vld [vmem:[#allocation2 + $0x18] sm:$0xff]
      %v1063 = vld [vmem:[#allocation2 + $0x20] sm:$0xff]
      %v1064 = vld [vmem:[#allocation2 + $0x28] sm:$0xff]
      %v1065 = vld [vmem:[#allocation2 + $0x30] sm:$0xff]
      %v1066 = vld [vmem:[#allocation2 + $0x38] sm:$0xff]
      %v1067 = vld [vmem:[#allocation2 + $0x40] sm:$0xff]
      %v1068 = vld [vmem:[#allocation2 + $0x48] sm:$0xff]
      %v1069 = vld [vmem:[#allocation2 + $0x50] sm:$0xff]
      %v1070 = vld [vmem:[#allocation2 + $0x58] sm:$0xff]
      %v1071 = vld [vmem:[#allocation2 + $0x60] sm:$0xff]
      %v1072 = vld [vmem:[#allocation2 + $0x68] sm:$0xff]
      %v1073 = vld [vmem:[#allocation2 + $0x70] sm:$0xff]
      %v1074 = vld [vmem:[#allocation2 + $0x78] sm:$0xff]
      %v1075 = vld [vmem:[#allocation2 + $0x80] sm:$0xff]
      %v1076 = vld [vmem:[#allocation2 + $0x88] sm:$0xff]
      %v1077 = vld [vmem:[#allocation2 + $0x90] sm:$0xff]
      %v1078 = vld [vmem:[#allocation2 + $0x98] sm:$0xff]
      %v1079 = vld [vmem:[#allocation2 + $0xa0] sm:$0xff]
      %v1080 = vld [vmem:[#allocation2 + $0xa8] sm:$0xff]
      %v1081 = vld [vmem:[#allocation2 + $0xb0] sm:$0xff]
      %v1082 = vld [vmem:[#allocation2 + $0xb8] sm:$0xff]
      %v1083 = vld [vmem:[#allocation2 + $0xc0] sm:$0xff]
      %v1084 = vld [vmem:[#allocation2 + $0xc8] sm:$0xff]
      %v1085 = vld [vmem:[#allocation2 + $0xd0] sm:$0xff]
      %v1086 = vld [vmem:[#allocation2 + $0xd8] sm:$0xff]
      %v1087 = vld [vmem:[#allocation2 + $0xe0] sm:$0xff]
      %v1088 = vld [vmem:[#allocation2 + $0xe8] sm:$0xff]
      %v1089 = vld [vmem:[#allocation2 + $0xf0] sm:$0xff]
      %v1090 = vld [vmem:[#allocation2 + $0xf8] sm:$0xff]
      %s1091 = scalar_lea.vmem %s1, 64
      %v1092 = vld [vmem:[%s1091] sm:$0xf]
      %v1093 = vld [vmem:[%s1091 + $0x4] sm:$0xf]
      %v1094 = vld [vmem:[%s1091 + $0x8] sm:$0xf]
      %v1095 = vld [vmem:[%s1091 + $0xc] sm:$0xf]
      %v1096 = vld [vmem:[%s1091 + $0x10] sm:$0xf]
      %v1097 = vld [vmem:[%s1091 + $0x14] sm:$0xf]
      %v1098 = vld [vmem:[%s1091 + $0x18] sm:$0xf]
      %v1099 = vld [vmem:[%s1091 + $0x1c] sm:$0xf]
      %v1100 = vld [vmem:[%s1091 + $0x20] sm:$0xf]
      %v1101 = vld [vmem:[%s1091 + $0x24] sm:$0xf]
      %v1102 = vld [vmem:[%s1091 + $0x28] sm:$0xf]
      %v1103 = vld [vmem:[%s1091 + $0x2c] sm:$0xf]
      %v1104 = vld [vmem:[%s1091 + $0x30] sm:$0xf]
      %v1105 = vld [vmem:[%s1091 + $0x34] sm:$0xf]
      %v1106 = vld [vmem:[%s1091 + $0x38] sm:$0xf]
      %v1107 = vld [vmem:[%s1091 + $0x3c] sm:$0xf]
      %v1108 = vunpack.c.l.b16 %v688
      %v1109 = vunpack.c.l.b16 %v698
      %v1110 = vunpack.c.l.b16 %v712
      %v1111 = vunpack.c.l.b16 %v722
      %v1112 = vunpack.c.l.b16 %v736
      %v1113 = vunpack.c.l.b16 %v746
      %v1114 = vunpack.c.l.b16 %v760
      %v1115 = vunpack.c.l.b16 %v770
      %v1116 = vunpack.c.l.b16 %v784
      %v1117 = vunpack.c.l.b16 %v794
      %v1118 = vunpack.c.l.b16 %v808
      %v1119 = vunpack.c.l.b16 %v818
      %v1120 = vunpack.c.l.b16 %v832
      %v1121 = vunpack.c.l.b16 %v842
      %v1122 = vunpack.c.l.b16 %v856
      %v1123 = vunpack.c.l.b16 %v866
      %v1124 = vunpack.c.l.b16 %v880
      %v1125 = vunpack.c.l.b16 %v890
      %v1126 = vunpack.c.l.b16 %v904
      %v1127 = vunpack.c.l.b16 %v914
      %v1128 = vunpack.c.l.b16 %v928
      %v1129 = vunpack.c.l.b16 %v938
      %v1130 = vunpack.c.l.b16 %v952
      %v1131 = vunpack.c.l.b16 %v962
      %v1132 = vunpack.c.l.b16 %v976
      %v1133 = vunpack.c.l.b16 %v986
      %v1134 = vunpack.c.l.b16 %v1000
      %v1135 = vunpack.c.l.b16 %v1010
      %v1136 = vunpack.c.l.b16 %v1024
      %v1137 = vunpack.c.l.b16 %v1034
      %v1138 = vunpack.c.l.b16 %v1048
      %v1139 = vunpack.c.l.b16 %v1058
      %v1140 = vpack.c.b16 %v1109, %v1108
      %v1141 = vpack.c.b16 %v1111, %v1110
      %v1142 = vpack.c.b16 %v1113, %v1112
      %v1143 = vpack.c.b16 %v1115, %v1114
      %v1144 = vpack.c.b16 %v1117, %v1116
      %v1145 = vpack.c.b16 %v1119, %v1118
      %v1146 = vpack.c.b16 %v1121, %v1120
      %v1147 = vpack.c.b16 %v1123, %v1122
      %v1148 = vpack.c.b16 %v1125, %v1124
      %v1149 = vpack.c.b16 %v1127, %v1126
      %v1150 = vpack.c.b16 %v1129, %v1128
      %v1151 = vpack.c.b16 %v1131, %v1130
      %v1152 = vpack.c.b16 %v1133, %v1132
      %v1153 = vpack.c.b16 %v1135, %v1134
      %v1154 = vpack.c.b16 %v1137, %v1136
      %v1155 = vpack.c.b16 %v1139, %v1138
      %v1188 = vunpack.c.l.b16 %v1092
      %v1189 = vunpack.c.l.b16 %v1093
      %v1190 = vunpack.c.l.b16 %v1094
      %v1191 = vunpack.c.l.b16 %v1095
      %v1192 = vunpack.c.l.b16 %v1096
      %v1193 = vunpack.c.l.b16 %v1097
      %v1194 = vunpack.c.l.b16 %v1098
      %v1195 = vunpack.c.l.b16 %v1099
      %v1196 = vunpack.c.l.b16 %v1100
      %v1197 = vunpack.c.l.b16 %v1101
      %v1198 = vunpack.c.l.b16 %v1102
      %v1199 = vunpack.c.l.b16 %v1103
      %v1200 = vunpack.c.l.b16 %v1104
      %v1201 = vunpack.c.l.b16 %v1105
      %v1202 = vunpack.c.l.b16 %v1106
      %v1203 = vunpack.c.l.b16 %v1107
      %v1204 = vpack.c.b16 %v1189, %v1188
      %v1205 = vpack.c.b16 %v1191, %v1190
      %v1206 = vpack.c.b16 %v1193, %v1192
      %v1207 = vpack.c.b16 %v1195, %v1194
      %v1208 = vpack.c.b16 %v1197, %v1196
      %v1209 = vpack.c.b16 %v1199, %v1198
      %v1210 = vpack.c.b16 %v1201, %v1200
      %v1211 = vpack.c.b16 %v1203, %v1202
      %1220 = vmatpush.bf16.msra.mxu0 %v1211
      %1221 = vmatpush.bf16.msra.mxu0 %v1210
      %1222 = vmatpush.bf16.msra.mxu0 %v1209
      %1223 = vmatpush.bf16.msra.mxu0 %v1208
      %1224 = vmatpush.bf16.msra.mxu0 %v1207
      %1225 = vmatpush.bf16.msra.mxu0 %v1206
      %1226 = vmatpush.bf16.msra.mxu0 %v1205
      %1227 = vmatpush.bf16.msra.mxu0 %v1204
      %1228 = vmatmul.bf16.gmra.mxu0 %v1140
      %v1229 = vpop.f32.mrf.mxu0
      %v1230 = vadd.f32 0.0, %v1229
      %v1231 = vpop.f32.mrf.mxu0
      %v1232 = vadd.f32 0.0, %v1231
      %1233 = vmatmul.bf16.gmra.mxu0 %v1141
      %v1234 = vpop.f32.mrf.mxu0
      %v1235 = vadd.f32 0.0, %v1234
      %v1236 = vpop.f32.mrf.mxu0
      %v1237 = vadd.f32 0.0, %v1236
      %1238 = vmatmul.bf16.gmra.mxu0 %v1142
      %v1239 = vpop.f32.mrf.mxu0
      %v1240 = vadd.f32 0.0, %v1239
      %v1241 = vpop.f32.mrf.mxu0
      %v1242 = vadd.f32 0.0, %v1241
      %1243 = vmatmul.bf16.gmra.mxu0 %v1143
      %v1244 = vpop.f32.mrf.mxu0
      %v1245 = vadd.f32 0.0, %v1244
      %v1246 = vpop.f32.mrf.mxu0
      %v1247 = vadd.f32 0.0, %v1246
      %1248 = vmatmul.bf16.gmra.mxu0 %v1144
      %v1249 = vpop.f32.mrf.mxu0
      %v1250 = vadd.f32 0.0, %v1249
      %v1251 = vpop.f32.mrf.mxu0
      %v1252 = vadd.f32 0.0, %v1251
      %1253 = vmatmul.bf16.gmra.mxu0 %v1145
      %v1254 = vpop.f32.mrf.mxu0
      %v1255 = vadd.f32 0.0, %v1254
      %v1256 = vpop.f32.mrf.mxu0
      %v1257 = vadd.f32 0.0, %v1256
      %1258 = vmatmul.bf16.gmra.mxu0 %v1146
      %v1259 = vpop.f32.mrf.mxu0
      %v1260 = vadd.f32 0.0, %v1259
      %v1261 = vpop.f32.mrf.mxu0
      %v1262 = vadd.f32 0.0, %v1261
      %1263 = vmatmul.bf16.gmra.mxu0 %v1147
      %v1264 = vpop.f32.mrf.mxu0
      %v1265 = vadd.f32 0.0, %v1264
      %v1266 = vpop.f32.mrf.mxu0
      %v1267 = vadd.f32 0.0, %v1266
      %1268 = vmatmul.bf16.gmra.mxu0 %v1148
      %v1269 = vpop.f32.mrf.mxu0
      %v1270 = vadd.f32 0.0, %v1269
      %v1271 = vpop.f32.mrf.mxu0
      %v1272 = vadd.f32 0.0, %v1271
      %1273 = vmatmul.bf16.gmra.mxu0 %v1149
      %v1274 = vpop.f32.mrf.mxu0
      %v1275 = vadd.f32 0.0, %v1274
      %v1276 = vpop.f32.mrf.mxu0
      %v1277 = vadd.f32 0.0, %v1276
      %1278 = vmatmul.bf16.gmra.mxu0 %v1150
      %v1279 = vpop.f32.mrf.mxu0
      %v1280 = vadd.f32 0.0, %v1279
      %v1281 = vpop.f32.mrf.mxu0
      %v1282 = vadd.f32 0.0, %v1281
      %1283 = vmatmul.bf16.gmra.mxu0 %v1151
      %v1284 = vpop.f32.mrf.mxu0
      %v1285 = vadd.f32 0.0, %v1284
      %v1286 = vpop.f32.mrf.mxu0
      %v1287 = vadd.f32 0.0, %v1286
      %1288 = vmatmul.bf16.gmra.mxu0 %v1152
      %v1289 = vpop.f32.mrf.mxu0
      %v1290 = vadd.f32 0.0, %v1289
      %v1291 = vpop.f32.mrf.mxu0
      %v1292 = vadd.f32 0.0, %v1291
      %1293 = vmatmul.bf16.gmra.mxu0 %v1153
      %v1294 = vpop.f32.mrf.mxu0
      %v1295 = vadd.f32 0.0, %v1294
      %v1296 = vpop.f32.mrf.mxu0
      %v1297 = vadd.f32 0.0, %v1296
      %1298 = vmatmul.bf16.gmra.mxu0 %v1154
      %v1299 = vpop.f32.mrf.mxu0
      %v1300 = vadd.f32 0.0, %v1299
      %v1301 = vpop.f32.mrf.mxu0
      %v1302 = vadd.f32 0.0, %v1301
      %1303 = vmatmul.bf16.gmra.mxu0 %v1155
      %v1304 = vpop.f32.mrf.mxu0
      %v1305 = vadd.f32 0.0, %v1304
      %v1306 = vpop.f32.mrf.mxu0
      %v1307 = vadd.f32 0.0, %v1306
      %1308 = vdwg.mxu0
      %v1309 = vadd.f32 %v1059, %v1230
      %v1310 = vadd.f32 %v1060, %v1232
      %v1311 = vadd.f32 %v1061, %v1235
      %v1312 = vadd.f32 %v1062, %v1237
      %v1313 = vadd.f32 %v1063, %v1240
      %v1314 = vadd.f32 %v1064, %v1242
      %v1315 = vadd.f32 %v1065, %v1245
      %v1316 = vadd.f32 %v1066, %v1247
      %v1317 = vadd.f32 %v1067, %v1250
      %v1318 = vadd.f32 %v1068, %v1252
      %v1319 = vadd.f32 %v1069, %v1255
      %v1320 = vadd.f32 %v1070, %v1257
      %v1321 = vadd.f32 %v1071, %v1260
      %v1322 = vadd.f32 %v1072, %v1262
      %v1323 = vadd.f32 %v1073, %v1265
      %v1324 = vadd.f32 %v1074, %v1267
      %v1325 = vadd.f32 %v1075, %v1270
      %v1326 = vadd.f32 %v1076, %v1272
      %v1327 = vadd.f32 %v1077, %v1275
      %v1328 = vadd.f32 %v1078, %v1277
      %v1329 = vadd.f32 %v1079, %v1280
      %v1330 = vadd.f32 %v1080, %v1282
      %v1331 = vadd.f32 %v1081, %v1285
      %v1332 = vadd.f32 %v1082, %v1287
      %v1333 = vadd.f32 %v1083, %v1290
      %v1334 = vadd.f32 %v1084, %v1292
      %v1335 = vadd.f32 %v1085, %v1295
      %v1336 = vadd.f32 %v1086, %v1297
      %v1337 = vadd.f32 %v1087, %v1300
      %v1338 = vadd.f32 %v1088, %v1302
      %v1339 = vadd.f32 %v1089, %v1305
      %v1340 = vadd.f32 %v1090, %v1307
      %1341 = vst [vmem:[#allocation2] sm:$0xff] %v1309
      %1342 = vst [vmem:[#allocation2 + $0x8] sm:$0xff] %v1310
      %1343 = vst [vmem:[#allocation2 + $0x10] sm:$0xff] %v1311
      %1344 = vst [vmem:[#allocation2 + $0x18] sm:$0xff] %v1312
      %1345 = vst [vmem:[#allocation2 + $0x20] sm:$0xff] %v1313
      %1346 = vst [vmem:[#allocation2 + $0x28] sm:$0xff] %v1314
      %1347 = vst [vmem:[#allocation2 + $0x30] sm:$0xff] %v1315
      %1348 = vst [vmem:[#allocation2 + $0x38] sm:$0xff] %v1316
      %1349 = vst [vmem:[#allocation2 + $0x40] sm:$0xff] %v1317
      %1350 = vst [vmem:[#allocation2 + $0x48] sm:$0xff] %v1318
      %1351 = vst [vmem:[#allocation2 + $0x50] sm:$0xff] %v1319
      %1352 = vst [vmem:[#allocation2 + $0x58] sm:$0xff] %v1320
      %1353 = vst [vmem:[#allocation2 + $0x60] sm:$0xff] %v1321
      %1354 = vst [vmem:[#allocation2 + $0x68] sm:$0xff] %v1322
      %1355 = vst [vmem:[#allocation2 + $0x70] sm:$0xff] %v1323
      %1356 = vst [vmem:[#allocation2 + $0x78] sm:$0xff] %v1324
      %1357 = vst [vmem:[#allocation2 + $0x80] sm:$0xff] %v1325
      %1358 = vst [vmem:[#allocation2 + $0x88] sm:$0xff] %v1326
      %1359 = vst [vmem:[#allocation2 + $0x90] sm:$0xff] %v1327
      %1360 = vst [vmem:[#allocation2 + $0x98] sm:$0xff] %v1328
      %1361 = vst [vmem:[#allocation2 + $0xa0] sm:$0xff] %v1329
      %1362 = vst [vmem:[#allocation2 + $0xa8] sm:$0xff] %v1330
      %1363 = vst [vmem:[#allocation2 + $0xb0] sm:$0xff] %v1331
      %1364 = vst [vmem:[#allocation2 + $0xb8] sm:$0xff] %v1332
      %1365 = vst [vmem:[#allocation2 + $0xc0] sm:$0xff] %v1333
      %1366 = vst [vmem:[#allocation2 + $0xc8] sm:$0xff] %v1334
      %1367 = vst [vmem:[#allocation2 + $0xd0] sm:$0xff] %v1335
      %1368 = vst [vmem:[#allocation2 + $0xd8] sm:$0xff] %v1336
      %1369 = vst [vmem:[#allocation2 + $0xe0] sm:$0xff] %v1337
      %1370 = vst [vmem:[#allocation2 + $0xe8] sm:$0xff] %v1338
      %1371 = vst [vmem:[#allocation2 + $0xf0] sm:$0xff] %v1339
      %1372 = vst [vmem:[#allocation2 + $0xf8] sm:$0xff] %v1340
      %v1373 = vld [vmem:[%s203] sm:$0xe]
      %v1374 = vld [vmem:[%s203 + $0x4] sm:$0xf]
      %v1375 = vld [vmem:[%s203 + $0x8] sm:$0x1]
      %v1376 = vld [vmem:[%s203 + $0xc] sm:$0xe]
      %v1377 = vld [vmem:[%s203 + $0x10] sm:$0xf]
      %v1378 = vld [vmem:[%s203 + $0x14] sm:$0x1]
      %v1379 = vld [vmem:[%s203 + $0x18] sm:$0xe]
      %v1380 = vld [vmem:[%s203 + $0x1c] sm:$0xf]
      %v1381 = vld [vmem:[%s203 + $0x20] sm:$0x1]
      %v1382 = vld [vmem:[%s203 + $0x24] sm:$0xe]
      %v1383 = vld [vmem:[%s203 + $0x28] sm:$0xf]
      %v1384 = vld [vmem:[%s203 + $0x2c] sm:$0x1]
      %v1385 = vld [vmem:[%s203 + $0x30] sm:$0xe]
      %v1386 = vld [vmem:[%s203 + $0x34] sm:$0xf]
      %v1387 = vld [vmem:[%s203 + $0x38] sm:$0x1]
      %v1388 = vld [vmem:[%s203 + $0x3c] sm:$0xe]
      %v1389 = vld [vmem:[%s203 + $0x40] sm:$0xf]
      %v1390 = vld [vmem:[%s203 + $0x44] sm:$0x1]
      %v1391 = vld [vmem:[%s203 + $0x48] sm:$0xe]
      %v1392 = vld [vmem:[%s203 + $0x4c] sm:$0xf]
      %v1393 = vld [vmem:[%s203 + $0x50] sm:$0x1]
      %v1394 = vld [vmem:[%s203 + $0x54] sm:$0xe]
      %v1395 = vld [vmem:[%s203 + $0x58] sm:$0xf]
      %v1396 = vld [vmem:[%s203 + $0x5c] sm:$0x1]
      %v1397 = vld [vmem:[%s203 + $0x60] sm:$0xe]
      %v1398 = vld [vmem:[%s203 + $0x64] sm:$0xf]
      %v1399 = vld [vmem:[%s203 + $0x68] sm:$0x1]
      %v1400 = vld [vmem:[%s203 + $0x6c] sm:$0xe]
      %v1401 = vld [vmem:[%s203 + $0x70] sm:$0xf]
      %v1402 = vld [vmem:[%s203 + $0x74] sm:$0x1]
      %v1403 = vld [vmem:[%s203 + $0x78] sm:$0xe]
      %v1404 = vld [vmem:[%s203 + $0x7c] sm:$0xf]
      %v1405 = vld [vmem:[%s203 + $0x80] sm:$0x1]
      %v1406 = vld [vmem:[%s203 + $0x84] sm:$0xe]
      %v1407 = vld [vmem:[%s203 + $0x88] sm:$0xf]
      %v1408 = vld [vmem:[%s203 + $0x8c] sm:$0x1]
      %v1409 = vld [vmem:[%s203 + $0x90] sm:$0xe]
      %v1410 = vld [vmem:[%s203 + $0x94] sm:$0xf]
      %v1411 = vld [vmem:[%s203 + $0x98] sm:$0x1]
      %v1412 = vld [vmem:[%s203 + $0x9c] sm:$0xe]
      %v1413 = vld [vmem:[%s203 + $0xa0] sm:$0xf]
      %v1414 = vld [vmem:[%s203 + $0xa4] sm:$0x1]
      %v1415 = vld [vmem:[%s203 + $0xa8] sm:$0xe]
      %v1416 = vld [vmem:[%s203 + $0xac] sm:$0xf]
      %v1417 = vld [vmem:[%s203 + $0xb0] sm:$0x1]
      %v1418 = vld [vmem:[%s203 + $0xb4] sm:$0xe]
      %v1419 = vld [vmem:[%s203 + $0xb8] sm:$0xf]
      %v1420 = vld [vmem:[%s203 + $0xbc] sm:$0x1]
      %vm1469 = vcmask 1042432
      %vm1470 = vcmask 1046532
      %vm1471 = vmor %vm1469, %vm1470
      %v1472 = vrot.slane %v1373, 5
      %v1473 = vrot.slane %v1472, 4
      %v1474 = vrot.slane %v1374, 5
      %v1475 = vsel %vm1471, %v1473, %v1474
      %v1476 = vrot.slane %v1474, 4
      %v1477 = vrot.slane %v1375, 5
      %v1478 = vsel %vm1471, %v1476, %v1477
      %v1479 = vrot.slane %v1376, 5
      %v1480 = vrot.slane %v1479, 4
      %v1481 = vrot.slane %v1377, 5
      %v1482 = vsel %vm1471, %v1480, %v1481
      %v1483 = vrot.slane %v1481, 4
      %v1484 = vrot.slane %v1378, 5
      %v1485 = vsel %vm1471, %v1483, %v1484
      %v1486 = vrot.slane %v1379, 5
      %v1487 = vrot.slane %v1486, 4
      %v1488 = vrot.slane %v1380, 5
      %v1489 = vsel %vm1471, %v1487, %v1488
      %v1490 = vrot.slane %v1488, 4
      %v1491 = vrot.slane %v1381, 5
      %v1492 = vsel %vm1471, %v1490, %v1491
      %v1493 = vrot.slane %v1382, 5
      %v1494 = vrot.slane %v1493, 4
      %v1495 = vrot.slane %v1383, 5
      %v1496 = vsel %vm1471, %v1494, %v1495
      %v1497 = vrot.slane %v1495, 4
      %v1498 = vrot.slane %v1384, 5
      %v1499 = vsel %vm1471, %v1497, %v1498
      %v1500 = vrot.slane %v1385, 5
      %v1501 = vrot.slane %v1500, 4
      %v1502 = vrot.slane %v1386, 5
      %v1503 = vsel %vm1471, %v1501, %v1502
      %v1504 = vrot.slane %v1502, 4
      %v1505 = vrot.slane %v1387, 5
      %v1506 = vsel %vm1471, %v1504, %v1505
      %v1507 = vrot.slane %v1388, 5
      %v1508 = vrot.slane %v1507, 4
      %v1509 = vrot.slane %v1389, 5
      %v1510 = vsel %vm1471, %v1508, %v1509
      %v1511 = vrot.slane %v1509, 4
      %v1512 = vrot.slane %v1390, 5
      %v1513 = vsel %vm1471, %v1511, %v1512
      %v1514 = vrot.slane %v1391, 5
      %v1515 = vrot.slane %v1514, 4
      %v1516 = vrot.slane %v1392, 5
      %v1517 = vsel %vm1471, %v1515, %v1516
      %v1518 = vrot.slane %v1516, 4
      %v1519 = vrot.slane %v1393, 5
      %v1520 = vsel %vm1471, %v1518, %v1519
      %v1521 = vrot.slane %v1394, 5
      %v1522 = vrot.slane %v1521, 4
      %v1523 = vrot.slane %v1395, 5
      %v1524 = vsel %vm1471, %v1522, %v1523
      %v1525 = vrot.slane %v1523, 4
      %v1526 = vrot.slane %v1396, 5
      %v1527 = vsel %vm1471, %v1525, %v1526
      %v1528 = vrot.slane %v1397, 5
      %v1529 = vrot.slane %v1528, 4
      %v1530 = vrot.slane %v1398, 5
      %v1531 = vsel %vm1471, %v1529, %v1530
      %v1532 = vrot.slane %v1530, 4
      %v1533 = vrot.slane %v1399, 5
      %v1534 = vsel %vm1471, %v1532, %v1533
      %v1535 = vrot.slane %v1400, 5
      %v1536 = vrot.slane %v1535, 4
      %v1537 = vrot.slane %v1401, 5
      %v1538 = vsel %vm1471, %v1536, %v1537
      %v1539 = vrot.slane %v1537, 4
      %v1540 = vrot.slane %v1402, 5
      %v1541 = vsel %vm1471, %v1539, %v1540
      %v1542 = vrot.slane %v1403, 5
      %v1543 = vrot.slane %v1542, 4
      %v1544 = vrot.slane %v1404, 5
      %v1545 = vsel %vm1471, %v1543, %v1544
      %v1546 = vrot.slane %v1544, 4
      %v1547 = vrot.slane %v1405, 5
      %v1548 = vsel %vm1471, %v1546, %v1547
      %v1549 = vrot.slane %v1406, 5
      %v1550 = vrot.slane %v1549, 4
      %v1551 = vrot.slane %v1407, 5
      %v1552 = vsel %vm1471, %v1550, %v1551
      %v1553 = vrot.slane %v1551, 4
      %v1554 = vrot.slane %v1408, 5
      %v1555 = vsel %vm1471, %v1553, %v1554
      %v1556 = vrot.slane %v1409, 5
      %v1557 = vrot.slane %v1556, 4
      %v1558 = vrot.slane %v1410, 5
      %v1559 = vsel %vm1471, %v1557, %v1558
      %v1560 = vrot.slane %v1558, 4
      %v1561 = vrot.slane %v1411, 5
      %v1562 = vsel %vm1471, %v1560, %v1561
      %v1563 = vrot.slane %v1412, 5
      %v1564 = vrot.slane %v1563, 4
      %v1565 = vrot.slane %v1413, 5
      %v1566 = vsel %vm1471, %v1564, %v1565
      %v1567 = vrot.slane %v1565, 4
      %v1568 = vrot.slane %v1414, 5
      %v1569 = vsel %vm1471, %v1567, %v1568
      %v1570 = vrot.slane %v1415, 5
      %v1571 = vrot.slane %v1570, 4
      %v1572 = vrot.slane %v1416, 5
      %v1573 = vsel %vm1471, %v1571, %v1572
      %v1574 = vrot.slane %v1572, 4
      %v1575 = vrot.slane %v1417, 5
      %v1576 = vsel %vm1471, %v1574, %v1575
      %v1577 = vrot.slane %v1418, 5
      %v1578 = vrot.slane %v1577, 4
      %v1579 = vrot.slane %v1419, 5
      %v1580 = vsel %vm1471, %v1578, %v1579
      %v1581 = vrot.slane %v1579, 4
      %v1582 = vrot.slane %v1420, 5
      %v1583 = vsel %vm1471, %v1581, %v1582
      %v1584 = vld [vmem:[#allocation2] sm:$0xff]
      %v1585 = vld [vmem:[#allocation2 + $0x8] sm:$0xff]
      %v1586 = vld [vmem:[#allocation2 + $0x10] sm:$0xff]
      %v1587 = vld [vmem:[#allocation2 + $0x18] sm:$0xff]
      %v1588 = vld [vmem:[#allocation2 + $0x20] sm:$0xff]
      %v1589 = vld [vmem:[#allocation2 + $0x28] sm:$0xff]
      %v1590 = vld [vmem:[#allocation2 + $0x30] sm:$0xff]
      %v1591 = vld [vmem:[#allocation2 + $0x38] sm:$0xff]
      %v1592 = vld [vmem:[#allocation2 + $0x40] sm:$0xff]
      %v1593 = vld [vmem:[#allocation2 + $0x48] sm:$0xff]
      %v1594 = vld [vmem:[#allocation2 + $0x50] sm:$0xff]
      %v1595 = vld [vmem:[#allocation2 + $0x58] sm:$0xff]
      %v1596 = vld [vmem:[#allocation2 + $0x60] sm:$0xff]
      %v1597 = vld [vmem:[#allocation2 + $0x68] sm:$0xff]
      %v1598 = vld [vmem:[#allocation2 + $0x70] sm:$0xff]
      %v1599 = vld [vmem:[#allocation2 + $0x78] sm:$0xff]
      %v1600 = vld [vmem:[#allocation2 + $0x80] sm:$0xff]
      %v1601 = vld [vmem:[#allocation2 + $0x88] sm:$0xff]
      %v1602 = vld [vmem:[#allocation2 + $0x90] sm:$0xff]
      %v1603 = vld [vmem:[#allocation2 + $0x98] sm:$0xff]
      %v1604 = vld [vmem:[#allocation2 + $0xa0] sm:$0xff]
      %v1605 = vld [vmem:[#allocation2 + $0xa8] sm:$0xff]
      %v1606 = vld [vmem:[#allocation2 + $0xb0] sm:$0xff]
      %v1607 = vld [vmem:[#allocation2 + $0xb8] sm:$0xff]
      %v1608 = vld [vmem:[#allocation2 + $0xc0] sm:$0xff]
      %v1609 = vld [vmem:[#allocation2 + $0xc8] sm:$0xff]
      %v1610 = vld [vmem:[#allocation2 + $0xd0] sm:$0xff]
      %v1611 = vld [vmem:[#allocation2 + $0xd8] sm:$0xff]
      %v1612 = vld [vmem:[#allocation2 + $0xe0] sm:$0xff]
      %v1613 = vld [vmem:[#allocation2 + $0xe8] sm:$0xff]
      %v1614 = vld [vmem:[#allocation2 + $0xf0] sm:$0xff]
      %v1615 = vld [vmem:[#allocation2 + $0xf8] sm:$0xff]
      %s1616 = scalar_lea.vmem %s1, 128
      %v1617 = vld [vmem:[%s1616] sm:$0xf]
      %v1618 = vld [vmem:[%s1616 + $0x4] sm:$0xf]
      %v1619 = vld [vmem:[%s1616 + $0x8] sm:$0xf]
      %v1620 = vld [vmem:[%s1616 + $0xc] sm:$0xf]
      %v1621 = vld [vmem:[%s1616 + $0x10] sm:$0xf]
      %v1622 = vld [vmem:[%s1616 + $0x14] sm:$0xf]
      %v1623 = vld [vmem:[%s1616 + $0x18] sm:$0xf]
      %v1624 = vld [vmem:[%s1616 + $0x1c] sm:$0xf]
      %v1625 = vld [vmem:[%s1616 + $0x20] sm:$0xf]
      %v1626 = vld [vmem:[%s1616 + $0x24] sm:$0xf]
      %v1627 = vld [vmem:[%s1616 + $0x28] sm:$0xf]
      %v1628 = vld [vmem:[%s1616 + $0x2c] sm:$0xf]
      %v1629 = vld [vmem:[%s1616 + $0x30] sm:$0xf]
      %v1630 = vld [vmem:[%s1616 + $0x34] sm:$0xf]
      %v1631 = vld [vmem:[%s1616 + $0x38] sm:$0xf]
      %v1632 = vld [vmem:[%s1616 + $0x3c] sm:$0xf]
      %v1633 = vunpack.c.l.b16 %v1475
      %v1634 = vunpack.c.l.b16 %v1478
      %v1635 = vunpack.c.l.b16 %v1482
      %v1636 = vunpack.c.l.b16 %v1485
      %v1637 = vunpack.c.l.b16 %v1489
      %v1638 = vunpack.c.l.b16 %v1492
      %v1639 = vunpack.c.l.b16 %v1496
      %v1640 = vunpack.c.l.b16 %v1499
      %v1641 = vunpack.c.l.b16 %v1503
      %v1642 = vunpack.c.l.b16 %v1506
      %v1643 = vunpack.c.l.b16 %v1510
      %v1644 = vunpack.c.l.b16 %v1513
      %v1645 = vunpack.c.l.b16 %v1517
      %v1646 = vunpack.c.l.b16 %v1520
      %v1647 = vunpack.c.l.b16 %v1524
      %v1648 = vunpack.c.l.b16 %v1527
      %v1649 = vunpack.c.l.b16 %v1531
      %v1650 = vunpack.c.l.b16 %v1534
      %v1651 = vunpack.c.l.b16 %v1538
      %v1652 = vunpack.c.l.b16 %v1541
      %v1653 = vunpack.c.l.b16 %v1545
      %v1654 = vunpack.c.l.b16 %v1548
      %v1655 = vunpack.c.l.b16 %v1552
      %v1656 = vunpack.c.l.b16 %v1555
      %v1657 = vunpack.c.l.b16 %v1559
      %v1658 = vunpack.c.l.b16 %v1562
      %v1659 = vunpack.c.l.b16 %v1566
      %v1660 = vunpack.c.l.b16 %v1569
      %v1661 = vunpack.c.l.b16 %v1573
      %v1662 = vunpack.c.l.b16 %v1576
      %v1663 = vunpack.c.l.b16 %v1580
      %v1664 = vunpack.c.l.b16 %v1583
      %v1665 = vpack.c.b16 %v1634, %v1633
      %v1666 = vpack.c.b16 %v1636, %v1635
      %v1667 = vpack.c.b16 %v1638, %v1637
      %v1668 = vpack.c.b16 %v1640, %v1639
      %v1669 = vpack.c.b16 %v1642, %v1641
      %v1670 = vpack.c.b16 %v1644, %v1643
      %v1671 = vpack.c.b16 %v1646, %v1645
      %v1672 = vpack.c.b16 %v1648, %v1647
      %v1673 = vpack.c.b16 %v1650, %v1649
      %v1674 = vpack.c.b16 %v1652, %v1651
      %v1675 = vpack.c.b16 %v1654, %v1653
      %v1676 = vpack.c.b16 %v1656, %v1655
      %v1677 = vpack.c.b16 %v1658, %v1657
      %v1678 = vpack.c.b16 %v1660, %v1659
      %v1679 = vpack.c.b16 %v1662, %v1661
      %v1680 = vpack.c.b16 %v1664, %v1663
      %v1713 = vunpack.c.l.b16 %v1617
      %v1714 = vunpack.c.l.b16 %v1618
      %v1715 = vunpack.c.l.b16 %v1619
      %v1716 = vunpack.c.l.b16 %v1620
      %v1717 = vunpack.c.l.b16 %v1621
      %v1718 = vunpack.c.l.b16 %v1622
      %v1719 = vunpack.c.l.b16 %v1623
      %v1720 = vunpack.c.l.b16 %v1624
      %v1721 = vunpack.c.l.b16 %v1625
      %v1722 = vunpack.c.l.b16 %v1626
      %v1723 = vunpack.c.l.b16 %v1627
      %v1724 = vunpack.c.l.b16 %v1628
      %v1725 = vunpack.c.l.b16 %v1629
      %v1726 = vunpack.c.l.b16 %v1630
      %v1727 = vunpack.c.l.b16 %v1631
      %v1728 = vunpack.c.l.b16 %v1632
      %v1729 = vpack.c.b16 %v1714, %v1713
      %v1730 = vpack.c.b16 %v1716, %v1715
      %v1731 = vpack.c.b16 %v1718, %v1717
      %v1732 = vpack.c.b16 %v1720, %v1719
      %v1733 = vpack.c.b16 %v1722, %v1721
      %v1734 = vpack.c.b16 %v1724, %v1723
      %v1735 = vpack.c.b16 %v1726, %v1725
      %v1736 = vpack.c.b16 %v1728, %v1727
      %1745 = vmatpush.bf16.msra.mxu0 %v1736
      %1746 = vmatpush.bf16.msra.mxu0 %v1735
      %1747 = vmatpush.bf16.msra.mxu0 %v1734
      %1748 = vmatpush.bf16.msra.mxu0 %v1733
      %1749 = vmatpush.bf16.msra.mxu0 %v1732
      %1750 = vmatpush.bf16.msra.mxu0 %v1731
      %1751 = vmatpush.bf16.msra.mxu0 %v1730
      %1752 = vmatpush.bf16.msra.mxu0 %v1729
      %1753 = vmatmul.bf16.gmra.mxu0 %v1665
      %v1754 = vpop.f32.mrf.mxu0
      %v1755 = vadd.f32 0.0, %v1754
      %v1756 = vpop.f32.mrf.mxu0
      %v1757 = vadd.f32 0.0, %v1756
      %1758 = vmatmul.bf16.gmra.mxu0 %v1666
      %v1759 = vpop.f32.mrf.mxu0
      %v1760 = vadd.f32 0.0, %v1759
      %v1761 = vpop.f32.mrf.mxu0
      %v1762 = vadd.f32 0.0, %v1761
      %1763 = vmatmul.bf16.gmra.mxu0 %v1667
      %v1764 = vpop.f32.mrf.mxu0
      %v1765 = vadd.f32 0.0, %v1764
      %v1766 = vpop.f32.mrf.mxu0
      %v1767 = vadd.f32 0.0, %v1766
      %1768 = vmatmul.bf16.gmra.mxu0 %v1668
      %v1769 = vpop.f32.mrf.mxu0
      %v1770 = vadd.f32 0.0, %v1769
      %v1771 = vpop.f32.mrf.mxu0
      %v1772 = vadd.f32 0.0, %v1771
      %1773 = vmatmul.bf16.gmra.mxu0 %v1669
      %v1774 = vpop.f32.mrf.mxu0
      %v1775 = vadd.f32 0.0, %v1774
      %v1776 = vpop.f32.mrf.mxu0
      %v1777 = vadd.f32 0.0, %v1776
      %1778 = vmatmul.bf16.gmra.mxu0 %v1670
      %v1779 = vpop.f32.mrf.mxu0
      %v1780 = vadd.f32 0.0, %v1779
      %v1781 = vpop.f32.mrf.mxu0
      %v1782 = vadd.f32 0.0, %v1781
      %1783 = vmatmul.bf16.gmra.mxu0 %v1671
      %v1784 = vpop.f32.mrf.mxu0
      %v1785 = vadd.f32 0.0, %v1784
      %v1786 = vpop.f32.mrf.mxu0
      %v1787 = vadd.f32 0.0, %v1786
      %1788 = vmatmul.bf16.gmra.mxu0 %v1672
      %v1789 = vpop.f32.mrf.mxu0
      %v1790 = vadd.f32 0.0, %v1789
      %v1791 = vpop.f32.mrf.mxu0
      %v1792 = vadd.f32 0.0, %v1791
      %1793 = vmatmul.bf16.gmra.mxu0 %v1673
      %v1794 = vpop.f32.mrf.mxu0
      %v1795 = vadd.f32 0.0, %v1794
      %v1796 = vpop.f32.mrf.mxu0
      %v1797 = vadd.f32 0.0, %v1796
      %1798 = vmatmul.bf16.gmra.mxu0 %v1674
      %v1799 = vpop.f32.mrf.mxu0
      %v1800 = vadd.f32 0.0, %v1799
      %v1801 = vpop.f32.mrf.mxu0
      %v1802 = vadd.f32 0.0, %v1801
      %1803 = vmatmul.bf16.gmra.mxu0 %v1675
      %v1804 = vpop.f32.mrf.mxu0
      %v1805 = vadd.f32 0.0, %v1804
      %v1806 = vpop.f32.mrf.mxu0
      %v1807 = vadd.f32 0.0, %v1806
      %1808 = vmatmul.bf16.gmra.mxu0 %v1676
      %v1809 = vpop.f32.mrf.mxu0
      %v1810 = vadd.f32 0.0, %v1809
      %v1811 = vpop.f32.mrf.mxu0
      %v1812 = vadd.f32 0.0, %v1811
      %1813 = vmatmul.bf16.gmra.mxu0 %v1677
      %v1814 = vpop.f32.mrf.mxu0
      %v1815 = vadd.f32 0.0, %v1814
      %v1816 = vpop.f32.mrf.mxu0
      %v1817 = vadd.f32 0.0, %v1816
      %1818 = vmatmul.bf16.gmra.mxu0 %v1678
      %v1819 = vpop.f32.mrf.mxu0
      %v1820 = vadd.f32 0.0, %v1819
      %v1821 = vpop.f32.mrf.mxu0
      %v1822 = vadd.f32 0.0, %v1821
      %1823 = vmatmul.bf16.gmra.mxu0 %v1679
      %v1824 = vpop.f32.mrf.mxu0
      %v1825 = vadd.f32 0.0, %v1824
      %v1826 = vpop.f32.mrf.mxu0
      %v1827 = vadd.f32 0.0, %v1826
      %1828 = vmatmul.bf16.gmra.mxu0 %v1680
      %v1829 = vpop.f32.mrf.mxu0
      %v1830 = vadd.f32 0.0, %v1829
      %v1831 = vpop.f32.mrf.mxu0
      %v1832 = vadd.f32 0.0, %v1831
      %1833 = vdwg.mxu0
      %v1834 = vadd.f32 %v1584, %v1755
      %v1835 = vadd.f32 %v1585, %v1757
      %v1836 = vadd.f32 %v1586, %v1760
      %v1837 = vadd.f32 %v1587, %v1762
      %v1838 = vadd.f32 %v1588, %v1765
      %v1839 = vadd.f32 %v1589, %v1767
      %v1840 = vadd.f32 %v1590, %v1770
      %v1841 = vadd.f32 %v1591, %v1772
      %v1842 = vadd.f32 %v1592, %v1775
      %v1843 = vadd.f32 %v1593, %v1777
      %v1844 = vadd.f32 %v1594, %v1780
      %v1845 = vadd.f32 %v1595, %v1782
      %v1846 = vadd.f32 %v1596, %v1785
      %v1847 = vadd.f32 %v1597, %v1787
      %v1848 = vadd.f32 %v1598, %v1790
      %v1849 = vadd.f32 %v1599, %v1792
      %v1850 = vadd.f32 %v1600, %v1795
      %v1851 = vadd.f32 %v1601, %v1797
      %v1852 = vadd.f32 %v1602, %v1800
      %v1853 = vadd.f32 %v1603, %v1802
      %v1854 = vadd.f32 %v1604, %v1805
      %v1855 = vadd.f32 %v1605, %v1807
      %v1856 = vadd.f32 %v1606, %v1810
      %v1857 = vadd.f32 %v1607, %v1812
      %v1858 = vadd.f32 %v1608, %v1815
      %v1859 = vadd.f32 %v1609, %v1817
      %v1860 = vadd.f32 %v1610, %v1820
      %v1861 = vadd.f32 %v1611, %v1822
      %v1862 = vadd.f32 %v1612, %v1825
      %v1863 = vadd.f32 %v1613, %v1827
      %v1864 = vadd.f32 %v1614, %v1830
      %v1865 = vadd.f32 %v1615, %v1832
      %1866 = vst [vmem:[#allocation2] sm:$0xff] %v1834
      %1867 = vst [vmem:[#allocation2 + $0x8] sm:$0xff] %v1835
      %1868 = vst [vmem:[#allocation2 + $0x10] sm:$0xff] %v1836
      %1869 = vst [vmem:[#allocation2 + $0x18] sm:$0xff] %v1837
      %1870 = vst [vmem:[#allocation2 + $0x20] sm:$0xff] %v1838
      %1871 = vst [vmem:[#allocation2 + $0x28] sm:$0xff] %v1839
      %1872 = vst [vmem:[#allocation2 + $0x30] sm:$0xff] %v1840
      %1873 = vst [vmem:[#allocation2 + $0x38] sm:$0xff] %v1841
      %1874 = vst [vmem:[#allocation2 + $0x40] sm:$0xff] %v1842
      %1875 = vst [vmem:[#allocation2 + $0x48] sm:$0xff] %v1843
      %1876 = vst [vmem:[#allocation2 + $0x50] sm:$0xff] %v1844
      %1877 = vst [vmem:[#allocation2 + $0x58] sm:$0xff] %v1845
      %1878 = vst [vmem:[#allocation2 + $0x60] sm:$0xff] %v1846
      %1879 = vst [vmem:[#allocation2 + $0x68] sm:$0xff] %v1847
      %1880 = vst [vmem:[#allocation2 + $0x70] sm:$0xff] %v1848
      %1881 = vst [vmem:[#allocation2 + $0x78] sm:$0xff] %v1849
      %1882 = vst [vmem:[#allocation2 + $0x80] sm:$0xff] %v1850
      %1883 = vst [vmem:[#allocation2 + $0x88] sm:$0xff] %v1851
      %1884 = vst [vmem:[#allocation2 + $0x90] sm:$0xff] %v1852
      %1885 = vst [vmem:[#allocation2 + $0x98] sm:$0xff] %v1853
      %1886 = vst [vmem:[#allocation2 + $0xa0] sm:$0xff] %v1854
      %1887 = vst [vmem:[#allocation2 + $0xa8] sm:$0xff] %v1855
      %1888 = vst [vmem:[#allocation2 + $0xb0] sm:$0xff] %v1856
      %1889 = vst [vmem:[#allocation2 + $0xb8] sm:$0xff] %v1857
      %1890 = vst [vmem:[#allocation2 + $0xc0] sm:$0xff] %v1858
      %1891 = vst [vmem:[#allocation2 + $0xc8] sm:$0xff] %v1859
      %1892 = vst [vmem:[#allocation2 + $0xd0] sm:$0xff] %v1860
      %1893 = vst [vmem:[#allocation2 + $0xd8] sm:$0xff] %v1861
      %1894 = vst [vmem:[#allocation2 + $0xe0] sm:$0xff] %v1862
      %1895 = vst [vmem:[#allocation2 + $0xe8] sm:$0xff] %v1863
      %1896 = vst [vmem:[#allocation2 + $0xf0] sm:$0xff] %v1864
      %1897 = vst [vmem:[#allocation2 + $0xf8] sm:$0xff] %v1865
      %s1898 = scalar_lea.vmem %s203, 12
      %v1899 = vld [vmem:[%s1898] sm:$0xf]
      %v1900 = vld [vmem:[%s1898 + $0x4] sm:$0xf]
      %v1901 = vld [vmem:[%s1898 + $0xc] sm:$0xf]
      %v1902 = vld [vmem:[%s1898 + $0x10] sm:$0xf]
      %v1903 = vld [vmem:[%s1898 + $0x18] sm:$0xf]
      %v1904 = vld [vmem:[%s1898 + $0x1c] sm:$0xf]
      %v1905 = vld [vmem:[%s1898 + $0x24] sm:$0xf]
      %v1906 = vld [vmem:[%s1898 + $0x28] sm:$0xf]
      %v1907 = vld [vmem:[%s1898 + $0x30] sm:$0xf]
      %v1908 = vld [vmem:[%s1898 + $0x34] sm:$0xf]
      %v1909 = vld [vmem:[%s1898 + $0x3c] sm:$0xf]
      %v1910 = vld [vmem:[%s1898 + $0x40] sm:$0xf]
      %v1911 = vld [vmem:[%s1898 + $0x48] sm:$0xf]
      %v1912 = vld [vmem:[%s1898 + $0x4c] sm:$0xf]
      %v1913 = vld [vmem:[%s1898 + $0x54] sm:$0xf]
      %v1914 = vld [vmem:[%s1898 + $0x58] sm:$0xf]
      %v1915 = vld [vmem:[%s1898 + $0x60] sm:$0xf]
      %v1916 = vld [vmem:[%s1898 + $0x64] sm:$0xf]
      %v1917 = vld [vmem:[%s1898 + $0x6c] sm:$0xf]
      %v1918 = vld [vmem:[%s1898 + $0x70] sm:$0xf]
      %v1919 = vld [vmem:[%s1898 + $0x78] sm:$0xf]
      %v1920 = vld [vmem:[%s1898 + $0x7c] sm:$0xf]
      %v1921 = vld [vmem:[%s1898 + $0x84] sm:$0xf]
      %v1922 = vld [vmem:[%s1898 + $0x88] sm:$0xf]
      %v1923 = vld [vmem:[%s1898 + $0x90] sm:$0xf]
      %v1924 = vld [vmem:[%s1898 + $0x94] sm:$0xf]
      %v1925 = vld [vmem:[%s1898 + $0x9c] sm:$0xf]
      %v1926 = vld [vmem:[%s1898 + $0xa0] sm:$0xf]
      %v1927 = vld [vmem:[%s1898 + $0xa8] sm:$0xf]
      %v1928 = vld [vmem:[%s1898 + $0xac] sm:$0xf]
      %v1929 = vld [vmem:[%s1898 + $0xb4] sm:$0xf]
      %v1930 = vld [vmem:[%s1898 + $0xb8] sm:$0xf]
      %v1931 = vld [vmem:[#allocation2] sm:$0xff]
      %v1932 = vld [vmem:[#allocation2 + $0x8] sm:$0xff]
      %v1933 = vld [vmem:[#allocation2 + $0x10] sm:$0xff]
      %v1934 = vld [vmem:[#allocation2 + $0x18] sm:$0xff]
      %v1935 = vld [vmem:[#allocation2 + $0x20] sm:$0xff]
      %v1936 = vld [vmem:[#allocation2 + $0x28] sm:$0xff]
      %v1937 = vld [vmem:[#allocation2 + $0x30] sm:$0xff]
      %v1938 = vld [vmem:[#allocation2 + $0x38] sm:$0xff]
      %v1939 = vld [vmem:[#allocation2 + $0x40] sm:$0xff]
      %v1940 = vld [vmem:[#allocation2 + $0x48] sm:$0xff]
      %v1941 = vld [vmem:[#allocation2 + $0x50] sm:$0xff]
      %v1942 = vld [vmem:[#allocation2 + $0x58] sm:$0xff]
      %v1943 = vld [vmem:[#allocation2 + $0x60] sm:$0xff]
      %v1944 = vld [vmem:[#allocation2 + $0x68] sm:$0xff]
      %v1945 = vld [vmem:[#allocation2 + $0x70] sm:$0xff]
      %v1946 = vld [vmem:[#allocation2 + $0x78] sm:$0xff]
      %v1947 = vld [vmem:[#allocation2 + $0x80] sm:$0xff]
      %v1948 = vld [vmem:[#allocation2 + $0x88] sm:$0xff]
      %v1949 = vld [vmem:[#allocation2 + $0x90] sm:$0xff]
      %v1950 = vld [vmem:[#allocation2 + $0x98] sm:$0xff]
      %v1951 = vld [vmem:[#allocation2 + $0xa0] sm:$0xff]
      %v1952 = vld [vmem:[#allocation2 + $0xa8] sm:$0xff]
      %v1953 = vld [vmem:[#allocation2 + $0xb0] sm:$0xff]
      %v1954 = vld [vmem:[#allocation2 + $0xb8] sm:$0xff]
      %v1955 = vld [vmem:[#allocation2 + $0xc0] sm:$0xff]
      %v1956 = vld [vmem:[#allocation2 + $0xc8] sm:$0xff]
      %v1957 = vld [vmem:[#allocation2 + $0xd0] sm:$0xff]
      %v1958 = vld [vmem:[#allocation2 + $0xd8] sm:$0xff]
      %v1959 = vld [vmem:[#allocation2 + $0xe0] sm:$0xff]
      %v1960 = vld [vmem:[#allocation2 + $0xe8] sm:$0xff]
      %v1961 = vld [vmem:[#allocation2 + $0xf0] sm:$0xff]
      %v1962 = vld [vmem:[#allocation2 + $0xf8] sm:$0xff]
      %s1963 = scalar_lea.vmem %s1, 192
      %v1964 = vld [vmem:[%s1963] sm:$0xf]
      %v1965 = vld [vmem:[%s1963 + $0x4] sm:$0xf]
      %v1966 = vld [vmem:[%s1963 + $0x8] sm:$0xf]
      %v1967 = vld [vmem:[%s1963 + $0xc] sm:$0xf]
      %v1968 = vld [vmem:[%s1963 + $0x10] sm:$0xf]
      %v1969 = vld [vmem:[%s1963 + $0x14] sm:$0xf]
      %v1970 = vld [vmem:[%s1963 + $0x18] sm:$0xf]
      %v1971 = vld [vmem:[%s1963 + $0x1c] sm:$0xf]
      %v1972 = vld [vmem:[%s1963 + $0x20] sm:$0xf]
      %v1973 = vld [vmem:[%s1963 + $0x24] sm:$0xf]
      %v1974 = vld [vmem:[%s1963 + $0x28] sm:$0xf]
      %v1975 = vld [vmem:[%s1963 + $0x2c] sm:$0xf]
      %v1976 = vld [vmem:[%s1963 + $0x30] sm:$0xf]
      %v1977 = vld [vmem:[%s1963 + $0x34] sm:$0xf]
      %v1978 = vld [vmem:[%s1963 + $0x38] sm:$0xf]
      %v1979 = vld [vmem:[%s1963 + $0x3c] sm:$0xf]
      %v2012 = vunpack.c.l.b16 %v1899
      %v2013 = vunpack.c.l.b16 %v1900
      %v2014 = vunpack.c.l.b16 %v1901
      %v2015 = vunpack.c.l.b16 %v1902
      %v2016 = vunpack.c.l.b16 %v1903
      %v2017 = vunpack.c.l.b16 %v1904
      %v2018 = vunpack.c.l.b16 %v1905
      %v2019 = vunpack.c.l.b16 %v1906
      %v2020 = vunpack.c.l.b16 %v1907
      %v2021 = vunpack.c.l.b16 %v1908
      %v2022 = vunpack.c.l.b16 %v1909
      %v2023 = vunpack.c.l.b16 %v1910
      %v2024 = vunpack.c.l.b16 %v1911
      %v2025 = vunpack.c.l.b16 %v1912
      %v2026 = vunpack.c.l.b16 %v1913
      %v2027 = vunpack.c.l.b16 %v1914
      %v2028 = vunpack.c.l.b16 %v1915
      %v2029 = vunpack.c.l.b16 %v1916
      %v2030 = vunpack.c.l.b16 %v1917
      %v2031 = vunpack.c.l.b16 %v1918
      %v2032 = vunpack.c.l.b16 %v1919
      %v2033 = vunpack.c.l.b16 %v1920
      %v2034 = vunpack.c.l.b16 %v1921
      %v2035 = vunpack.c.l.b16 %v1922
      %v2036 = vunpack.c.l.b16 %v1923
      %v2037 = vunpack.c.l.b16 %v1924
      %v2038 = vunpack.c.l.b16 %v1925
      %v2039 = vunpack.c.l.b16 %v1926
      %v2040 = vunpack.c.l.b16 %v1927
      %v2041 = vunpack.c.l.b16 %v1928
      %v2042 = vunpack.c.l.b16 %v1929
      %v2043 = vunpack.c.l.b16 %v1930
      %v2044 = vpack.c.b16 %v2013, %v2012
      %v2045 = vpack.c.b16 %v2015, %v2014
      %v2046 = vpack.c.b16 %v2017, %v2016
      %v2047 = vpack.c.b16 %v2019, %v2018
      %v2048 = vpack.c.b16 %v2021, %v2020
      %v2049 = vpack.c.b16 %v2023, %v2022
      %v2050 = vpack.c.b16 %v2025, %v2024
      %v2051 = vpack.c.b16 %v2027, %v2026
      %v2052 = vpack.c.b16 %v2029, %v2028
      %v2053 = vpack.c.b16 %v2031, %v2030
      %v2054 = vpack.c.b16 %v2033, %v2032
      %v2055 = vpack.c.b16 %v2035, %v2034
      %v2056 = vpack.c.b16 %v2037, %v2036
      %v2057 = vpack.c.b16 %v2039, %v2038
      %v2058 = vpack.c.b16 %v2041, %v2040
      %v2059 = vpack.c.b16 %v2043, %v2042
      %v2092 = vunpack.c.l.b16 %v1964
      %v2093 = vunpack.c.l.b16 %v1965
      %v2094 = vunpack.c.l.b16 %v1966
      %v2095 = vunpack.c.l.b16 %v1967
      %v2096 = vunpack.c.l.b16 %v1968
      %v2097 = vunpack.c.l.b16 %v1969
      %v2098 = vunpack.c.l.b16 %v1970
      %v2099 = vunpack.c.l.b16 %v1971
      %v2100 = vunpack.c.l.b16 %v1972
      %v2101 = vunpack.c.l.b16 %v1973
      %v2102 = vunpack.c.l.b16 %v1974
      %v2103 = vunpack.c.l.b16 %v1975
      %v2104 = vunpack.c.l.b16 %v1976
      %v2105 = vunpack.c.l.b16 %v1977
      %v2106 = vunpack.c.l.b16 %v1978
      %v2107 = vunpack.c.l.b16 %v1979
      %v2108 = vpack.c.b16 %v2093, %v2092
      %v2109 = vpack.c.b16 %v2095, %v2094
      %v2110 = vpack.c.b16 %v2097, %v2096
      %v2111 = vpack.c.b16 %v2099, %v2098
      %v2112 = vpack.c.b16 %v2101, %v2100
      %v2113 = vpack.c.b16 %v2103, %v2102
      %v2114 = vpack.c.b16 %v2105, %v2104
      %v2115 = vpack.c.b16 %v2107, %v2106
      %2124 = vmatpush.bf16.msra.mxu0 %v2115
      %2125 = vmatpush.bf16.msra.mxu0 %v2114
      %2126 = vmatpush.bf16.msra.mxu0 %v2113
      %2127 = vmatpush.bf16.msra.mxu0 %v2112
      %2128 = vmatpush.bf16.msra.mxu0 %v2111
      %2129 = vmatpush.bf16.msra.mxu0 %v2110
      %2130 = vmatpush.bf16.msra.mxu0 %v2109
      %2131 = vmatpush.bf16.msra.mxu0 %v2108
      %2132 = vmatmul.bf16.gmra.mxu0 %v2044
      %v2133 = vpop.f32.mrf.mxu0
      %v2134 = vadd.f32 0.0, %v2133
      %v2135 = vpop.f32.mrf.mxu0
      %v2136 = vadd.f32 0.0, %v2135
      %2137 = vmatmul.bf16.gmra.mxu0 %v2045
      %v2138 = vpop.f32.mrf.mxu0
      %v2139 = vadd.f32 0.0, %v2138
      %v2140 = vpop.f32.mrf.mxu0
      %v2141 = vadd.f32 0.0, %v2140
      %2142 = vmatmul.bf16.gmra.mxu0 %v2046
      %v2143 = vpop.f32.mrf.mxu0
      %v2144 = vadd.f32 0.0, %v2143
      %v2145 = vpop.f32.mrf.mxu0
      %v2146 = vadd.f32 0.0, %v2145
      %2147 = vmatmul.bf16.gmra.mxu0 %v2047
      %v2148 = vpop.f32.mrf.mxu0
      %v2149 = vadd.f32 0.0, %v2148
      %v2150 = vpop.f32.mrf.mxu0
      %v2151 = vadd.f32 0.0, %v2150
      %2152 = vmatmul.bf16.gmra.mxu0 %v2048
      %v2153 = vpop.f32.mrf.mxu0
      %v2154 = vadd.f32 0.0, %v2153
      %v2155 = vpop.f32.mrf.mxu0
      %v2156 = vadd.f32 0.0, %v2155
      %2157 = vmatmul.bf16.gmra.mxu0 %v2049
      %v2158 = vpop.f32.mrf.mxu0
      %v2159 = vadd.f32 0.0, %v2158
      %v2160 = vpop.f32.mrf.mxu0
      %v2161 = vadd.f32 0.0, %v2160
      %2162 = vmatmul.bf16.gmra.mxu0 %v2050
      %v2163 = vpop.f32.mrf.mxu0
      %v2164 = vadd.f32 0.0, %v2163
      %v2165 = vpop.f32.mrf.mxu0
      %v2166 = vadd.f32 0.0, %v2165
      %2167 = vmatmul.bf16.gmra.mxu0 %v2051
      %v2168 = vpop.f32.mrf.mxu0
      %v2169 = vadd.f32 0.0, %v2168
      %v2170 = vpop.f32.mrf.mxu0
      %v2171 = vadd.f32 0.0, %v2170
      %2172 = vmatmul.bf16.gmra.mxu0 %v2052
      %v2173 = vpop.f32.mrf.mxu0
      %v2174 = vadd.f32 0.0, %v2173
      %v2175 = vpop.f32.mrf.mxu0
      %v2176 = vadd.f32 0.0, %v2175
      %2177 = vmatmul.bf16.gmra.mxu0 %v2053
      %v2178 = vpop.f32.mrf.mxu0
      %v2179 = vadd.f32 0.0, %v2178
      %v2180 = vpop.f32.mrf.mxu0
      %v2181 = vadd.f32 0.0, %v2180
      %2182 = vmatmul.bf16.gmra.mxu0 %v2054
      %v2183 = vpop.f32.mrf.mxu0
      %v2184 = vadd.f32 0.0, %v2183
      %v2185 = vpop.f32.mrf.mxu0
      %v2186 = vadd.f32 0.0, %v2185
      %2187 = vmatmul.bf16.gmra.mxu0 %v2055
      %v2188 = vpop.f32.mrf.mxu0
      %v2189 = vadd.f32 0.0, %v2188
      %v2190 = vpop.f32.mrf.mxu0
      %v2191 = vadd.f32 0.0, %v2190
      %2192 = vmatmul.bf16.gmra.mxu0 %v2056
      %v2193 = vpop.f32.mrf.mxu0
      %v2194 = vadd.f32 0.0, %v2193
      %v2195 = vpop.f32.mrf.mxu0
      %v2196 = vadd.f32 0.0, %v2195
      %2197 = vmatmul.bf16.gmra.mxu0 %v2057
      %v2198 = vpop.f32.mrf.mxu0
      %v2199 = vadd.f32 0.0, %v2198
      %v2200 = vpop.f32.mrf.mxu0
      %v2201 = vadd.f32 0.0, %v2200
      %2202 = vmatmul.bf16.gmra.mxu0 %v2058
      %v2203 = vpop.f32.mrf.mxu0
      %v2204 = vadd.f32 0.0, %v2203
      %v2205 = vpop.f32.mrf.mxu0
      %v2206 = vadd.f32 0.0, %v2205
      %2207 = vmatmul.bf16.gmra.mxu0 %v2059
      %v2208 = vpop.f32.mrf.mxu0
      %v2209 = vadd.f32 0.0, %v2208
      %v2210 = vpop.f32.mrf.mxu0
      %v2211 = vadd.f32 0.0, %v2210
      %2212 = vdwg.mxu0
      %v2213 = vadd.f32 %v1931, %v2134
      %v2214 = vadd.f32 %v1932, %v2136
      %v2215 = vadd.f32 %v1933, %v2139
      %v2216 = vadd.f32 %v1934, %v2141
      %v2217 = vadd.f32 %v1935, %v2144
      %v2218 = vadd.f32 %v1936, %v2146
      %v2219 = vadd.f32 %v1937, %v2149
      %v2220 = vadd.f32 %v1938, %v2151
      %v2221 = vadd.f32 %v1939, %v2154
      %v2222 = vadd.f32 %v1940, %v2156
      %v2223 = vadd.f32 %v1941, %v2159
      %v2224 = vadd.f32 %v1942, %v2161
      %v2225 = vadd.f32 %v1943, %v2164
      %v2226 = vadd.f32 %v1944, %v2166
      %v2227 = vadd.f32 %v1945, %v2169
      %v2228 = vadd.f32 %v1946, %v2171
      %v2229 = vadd.f32 %v1947, %v2174
      %v2230 = vadd.f32 %v1948, %v2176
      %v2231 = vadd.f32 %v1949, %v2179
      %v2232 = vadd.f32 %v1950, %v2181
      %v2233 = vadd.f32 %v1951, %v2184
      %v2234 = vadd.f32 %v1952, %v2186
      %v2235 = vadd.f32 %v1953, %v2189
      %v2236 = vadd.f32 %v1954, %v2191
      %v2237 = vadd.f32 %v1955, %v2194
      %v2238 = vadd.f32 %v1956, %v2196
      %v2239 = vadd.f32 %v1957, %v2199
      %v2240 = vadd.f32 %v1958, %v2201
      %v2241 = vadd.f32 %v1959, %v2204
      %v2242 = vadd.f32 %v1960, %v2206
      %v2243 = vadd.f32 %v1961, %v2209
      %v2244 = vadd.f32 %v1962, %v2211
      %2245 = vst [vmem:[#allocation2] sm:$0xff] %v2213
      %2246 = vst [vmem:[#allocation2 + $0x8] sm:$0xff] %v2214
      %2247 = vst [vmem:[#allocation2 + $0x10] sm:$0xff] %v2215
      %2248 = vst [vmem:[#allocation2 + $0x18] sm:$0xff] %v2216
      %2249 = vst [vmem:[#allocation2 + $0x20] sm:$0xff] %v2217
      %2250 = vst [vmem:[#allocation2 + $0x28] sm:$0xff] %v2218
      %2251 = vst [vmem:[#allocation2 + $0x30] sm:$0xff] %v2219
      %2252 = vst [vmem:[#allocation2 + $0x38] sm:$0xff] %v2220
      %2253 = vst [vmem:[#allocation2 + $0x40] sm:$0xff] %v2221
      %2254 = vst [vmem:[#allocation2 + $0x48] sm:$0xff] %v2222
      %2255 = vst [vmem:[#allocation2 + $0x50] sm:$0xff] %v2223
      %2256 = vst [vmem:[#allocation2 + $0x58] sm:$0xff] %v2224
      %2257 = vst [vmem:[#allocation2 + $0x60] sm:$0xff] %v2225
      %2258 = vst [vmem:[#allocation2 + $0x68] sm:$0xff] %v2226
      %2259 = vst [vmem:[#allocation2 + $0x70] sm:$0xff] %v2227
      %2260 = vst [vmem:[#allocation2 + $0x78] sm:$0xff] %v2228
      %2261 = vst [vmem:[#allocation2 + $0x80] sm:$0xff] %v2229
      %2262 = vst [vmem:[#allocation2 + $0x88] sm:$0xff] %v2230
      %2263 = vst [vmem:[#allocation2 + $0x90] sm:$0xff] %v2231
      %2264 = vst [vmem:[#allocation2 + $0x98] sm:$0xff] %v2232
      %2265 = vst [vmem:[#allocation2 + $0xa0] sm:$0xff] %v2233
      %2266 = vst [vmem:[#allocation2 + $0xa8] sm:$0xff] %v2234
      %2267 = vst [vmem:[#allocation2 + $0xb0] sm:$0xff] %v2235
      %2268 = vst [vmem:[#allocation2 + $0xb8] sm:$0xff] %v2236
      %2269 = vst [vmem:[#allocation2 + $0xc0] sm:$0xff] %v2237
      %2270 = vst [vmem:[#allocation2 + $0xc8] sm:$0xff] %v2238
      %2271 = vst [vmem:[#allocation2 + $0xd0] sm:$0xff] %v2239
      %2272 = vst [vmem:[#allocation2 + $0xd8] sm:$0xff] %v2240
      %2273 = vst [vmem:[#allocation2 + $0xe0] sm:$0xff] %v2241
      %2274 = vst [vmem:[#allocation2 + $0xe8] sm:$0xff] %v2242
      %2275 = vst [vmem:[#allocation2 + $0xf0] sm:$0xff] %v2243
      %2276 = vst [vmem:[#allocation2 + $0xf8] sm:$0xff] %v2244
      %v2277 = vld [vmem:[%s1898] sm:$0xf]
      %v2278 = vld [vmem:[%s1898 + $0x4] sm:$0xf]
      %v2279 = vld [vmem:[%s1898 + $0x8] sm:$0x1]
      %v2280 = vld [vmem:[%s1898 + $0xc] sm:$0xf]
      %v2281 = vld [vmem:[%s1898 + $0x10] sm:$0xf]
      %v2282 = vld [vmem:[%s1898 + $0x14] sm:$0x1]
      %v2283 = vld [vmem:[%s1898 + $0x18] sm:$0xf]
      %v2284 = vld [vmem:[%s1898 + $0x1c] sm:$0xf]
      %v2285 = vld [vmem:[%s1898 + $0x20] sm:$0x1]
      %v2286 = vld [vmem:[%s1898 + $0x24] sm:$0xf]
      %v2287 = vld [vmem:[%s1898 + $0x28] sm:$0xf]
      %v2288 = vld [vmem:[%s1898 + $0x2c] sm:$0x1]
      %v2289 = vld [vmem:[%s1898 + $0x30] sm:$0xf]
      %v2290 = vld [vmem:[%s1898 + $0x34] sm:$0xf]
      %v2291 = vld [vmem:[%s1898 + $0x38] sm:$0x1]
      %v2292 = vld [vmem:[%s1898 + $0x3c] sm:$0xf]
      %v2293 = vld [vmem:[%s1898 + $0x40] sm:$0xf]
      %v2294 = vld [vmem:[%s1898 + $0x44] sm:$0x1]
      %v2295 = vld [vmem:[%s1898 + $0x48] sm:$0xf]
      %v2296 = vld [vmem:[%s1898 + $0x4c] sm:$0xf]
      %v2297 = vld [vmem:[%s1898 + $0x50] sm:$0x1]
      %v2298 = vld [vmem:[%s1898 + $0x54] sm:$0xf]
      %v2299 = vld [vmem:[%s1898 + $0x58] sm:$0xf]
      %v2300 = vld [vmem:[%s1898 + $0x5c] sm:$0x1]
      %v2301 = vld [vmem:[%s1898 + $0x60] sm:$0xf]
      %v2302 = vld [vmem:[%s1898 + $0x64] sm:$0xf]
      %v2303 = vld [vmem:[%s1898 + $0x68] sm:$0x1]
      %v2304 = vld [vmem:[%s1898 + $0x6c] sm:$0xf]
      %v2305 = vld [vmem:[%s1898 + $0x70] sm:$0xf]
      %v2306 = vld [vmem:[%s1898 + $0x74] sm:$0x1]
      %v2307 = vld [vmem:[%s1898 + $0x78] sm:$0xf]
      %v2308 = vld [vmem:[%s1898 + $0x7c] sm:$0xf]
      %v2309 = vld [vmem:[%s1898 + $0x80] sm:$0x1]
      %v2310 = vld [vmem:[%s1898 + $0x84] sm:$0xf]
      %v2311 = vld [vmem:[%s1898 + $0x88] sm:$0xf]
      %v2312 = vld [vmem:[%s1898 + $0x8c] sm:$0x1]
      %v2313 = vld [vmem:[%s1898 + $0x90] sm:$0xf]
      %v2314 = vld [vmem:[%s1898 + $0x94] sm:$0xf]
      %v2315 = vld [vmem:[%s1898 + $0x98] sm:$0x1]
      %v2316 = vld [vmem:[%s1898 + $0x9c] sm:$0xf]
      %v2317 = vld [vmem:[%s1898 + $0xa0] sm:$0xf]
      %v2318 = vld [vmem:[%s1898 + $0xa4] sm:$0x1]
      %v2319 = vld [vmem:[%s1898 + $0xa8] sm:$0xf]
      %v2320 = vld [vmem:[%s1898 + $0xac] sm:$0xf]
      %v2321 = vld [vmem:[%s1898 + $0xb0] sm:$0x1]
      %v2322 = vld [vmem:[%s1898 + $0xb4] sm:$0xf]
      %v2323 = vld [vmem:[%s1898 + $0xb8] sm:$0xf]
      %v2324 = vld [vmem:[%s1898 + $0xbc] sm:$0x1]
      %v2326 = vshrl.u32 %v2277, 16
      %v2328 = vrot.slane %v2326, 4
      %v2329 = vshll.u32 %v2277, 16
      %v2331 = vrot.slane %v2329, 5
      %v2332 = vor.u32 %v2328, %v2331
      %v2333 = vrot.slane %v2332, 4
      %v2335 = vshll.u32 %v2278, 16
      %v2337 = vrot.slane %v2335, 5
      %v2338 = vsel %vm674, %v2333, %v2337
      %v2339 = vshrl.u32 %v2278, 16
      %v2341 = vrot.slane %v2339, 4
      %v2342 = vor.u32 %v2341, %v2337
      %v2343 = vrot.slane %v2342, 4
      %v2345 = vshll.u32 %v2279, 16
      %v2347 = vrot.slane %v2345, 5
      %v2348 = vsel %vm674, %v2343, %v2347
      %v2350 = vshrl.u32 %v2280, 16
      %v2352 = vrot.slane %v2350, 4
      %v2353 = vshll.u32 %v2280, 16
      %v2355 = vrot.slane %v2353, 5
      %v2356 = vor.u32 %v2352, %v2355
      %v2357 = vrot.slane %v2356, 4
      %v2359 = vshll.u32 %v2281, 16
      %v2361 = vrot.slane %v2359, 5
      %v2362 = vsel %vm674, %v2357, %v2361
      %v2363 = vshrl.u32 %v2281, 16
      %v2365 = vrot.slane %v2363, 4
      %v2366 = vor.u32 %v2365, %v2361
      %v2367 = vrot.slane %v2366, 4
      %v2369 = vshll.u32 %v2282, 16
      %v2371 = vrot.slane %v2369, 5
      %v2372 = vsel %vm674, %v2367, %v2371
      %v2374 = vshrl.u32 %v2283, 16
      %v2376 = vrot.slane %v2374, 4
      %v2377 = vshll.u32 %v2283, 16
      %v2379 = vrot.slane %v2377, 5
      %v2380 = vor.u32 %v2376, %v2379
      %v2381 = vrot.slane %v2380, 4
      %v2383 = vshll.u32 %v2284, 16
      %v2385 = vrot.slane %v2383, 5
      %v2386 = vsel %vm674, %v2381, %v2385
      %v2387 = vshrl.u32 %v2284, 16
      %v2389 = vrot.slane %v2387, 4
      %v2390 = vor.u32 %v2389, %v2385
      %v2391 = vrot.slane %v2390, 4
      %v2393 = vshll.u32 %v2285, 16
      %v2395 = vrot.slane %v2393, 5
      %v2396 = vsel %vm674, %v2391, %v2395
      %v2398 = vshrl.u32 %v2286, 16
      %v2400 = vrot.slane %v2398, 4
      %v2401 = vshll.u32 %v2286, 16
      %v2403 = vrot.slane %v2401, 5
      %v2404 = vor.u32 %v2400, %v2403
      %v2405 = vrot.slane %v2404, 4
      %v2407 = vshll.u32 %v2287, 16
      %v2409 = vrot.slane %v2407, 5
      %v2410 = vsel %vm674, %v2405, %v2409
      %v2411 = vshrl.u32 %v2287, 16
      %v2413 = vrot.slane %v2411, 4
      %v2414 = vor.u32 %v2413, %v2409
      %v2415 = vrot.slane %v2414, 4
      %v2417 = vshll.u32 %v2288, 16
      %v2419 = vrot.slane %v2417, 5
      %v2420 = vsel %vm674, %v2415, %v2419
      %v2422 = vshrl.u32 %v2289, 16
      %v2424 = vrot.slane %v2422, 4
      %v2425 = vshll.u32 %v2289, 16
      %v2427 = vrot.slane %v2425, 5
      %v2428 = vor.u32 %v2424, %v2427
      %v2429 = vrot.slane %v2428, 4
      %v2431 = vshll.u32 %v2290, 16
      %v2433 = vrot.slane %v2431, 5
      %v2434 = vsel %vm674, %v2429, %v2433
      %v2435 = vshrl.u32 %v2290, 16
      %v2437 = vrot.slane %v2435, 4
      %v2438 = vor.u32 %v2437, %v2433
      %v2439 = vrot.slane %v2438, 4
      %v2441 = vshll.u32 %v2291, 16
      %v2443 = vrot.slane %v2441, 5
      %v2444 = vsel %vm674, %v2439, %v2443
      %v2446 = vshrl.u32 %v2292, 16
      %v2448 = vrot.slane %v2446, 4
      %v2449 = vshll.u32 %v2292, 16
      %v2451 = vrot.slane %v2449, 5
      %v2452 = vor.u32 %v2448, %v2451
      %v2453 = vrot.slane %v2452, 4
      %v2455 = vshll.u32 %v2293, 16
      %v2457 = vrot.slane %v2455, 5
      %v2458 = vsel %vm674, %v2453, %v2457
      %v2459 = vshrl.u32 %v2293, 16
      %v2461 = vrot.slane %v2459, 4
      %v2462 = vor.u32 %v2461, %v2457
      %v2463 = vrot.slane %v2462, 4
      %v2465 = vshll.u32 %v2294, 16
      %v2467 = vrot.slane %v2465, 5
      %v2468 = vsel %vm674, %v2463, %v2467
      %v2470 = vshrl.u32 %v2295, 16
      %v2472 = vrot.slane %v2470, 4
      %v2473 = vshll.u32 %v2295, 16
      %v2475 = vrot.slane %v2473, 5
      %v2476 = vor.u32 %v2472, %v2475
      %v2477 = vrot.slane %v2476, 4
      %v2479 = vshll.u32 %v2296, 16
      %v2481 = vrot.slane %v2479, 5
      %v2482 = vsel %vm674, %v2477, %v2481
      %v2483 = vshrl.u32 %v2296, 16
      %v2485 = vrot.slane %v2483, 4
      %v2486 = vor.u32 %v2485, %v2481
      %v2487 = vrot.slane %v2486, 4
      %v2489 = vshll.u32 %v2297, 16
      %v2491 = vrot.slane %v2489, 5
      %v2492 = vsel %vm674, %v2487, %v2491
      %v2494 = vshrl.u32 %v2298, 16
      %v2496 = vrot.slane %v2494, 4
      %v2497 = vshll.u32 %v2298, 16
      %v2499 = vrot.slane %v2497, 5
      %v2500 = vor.u32 %v2496, %v2499
      %v2501 = vrot.slane %v2500, 4
      %v2503 = vshll.u32 %v2299, 16
      %v2505 = vrot.slane %v2503, 5
      %v2506 = vsel %vm674, %v2501, %v2505
      %v2507 = vshrl.u32 %v2299, 16
      %v2509 = vrot.slane %v2507, 4
      %v2510 = vor.u32 %v2509, %v2505
      %v2511 = vrot.slane %v2510, 4
      %v2513 = vshll.u32 %v2300, 16
      %v2515 = vrot.slane %v2513, 5
      %v2516 = vsel %vm674, %v2511, %v2515
      %v2518 = vshrl.u32 %v2301, 16
      %v2520 = vrot.slane %v2518, 4
      %v2521 = vshll.u32 %v2301, 16
      %v2523 = vrot.slane %v2521, 5
      %v2524 = vor.u32 %v2520, %v2523
      %v2525 = vrot.slane %v2524, 4
      %v2527 = vshll.u32 %v2302, 16
      %v2529 = vrot.slane %v2527, 5
      %v2530 = vsel %vm674, %v2525, %v2529
      %v2531 = vshrl.u32 %v2302, 16
      %v2533 = vrot.slane %v2531, 4
      %v2534 = vor.u32 %v2533, %v2529
      %v2535 = vrot.slane %v2534, 4
      %v2537 = vshll.u32 %v2303, 16
      %v2539 = vrot.slane %v2537, 5
      %v2540 = vsel %vm674, %v2535, %v2539
      %v2542 = vshrl.u32 %v2304, 16
      %v2544 = vrot.slane %v2542, 4
      %v2545 = vshll.u32 %v2304, 16
      %v2547 = vrot.slane %v2545, 5
      %v2548 = vor.u32 %v2544, %v2547
      %v2549 = vrot.slane %v2548, 4
      %v2551 = vshll.u32 %v2305, 16
      %v2553 = vrot.slane %v2551, 5
      %v2554 = vsel %vm674, %v2549, %v2553
      %v2555 = vshrl.u32 %v2305, 16
      %v2557 = vrot.slane %v2555, 4
      %v2558 = vor.u32 %v2557, %v2553
      %v2559 = vrot.slane %v2558, 4
      %v2561 = vshll.u32 %v2306, 16
      %v2563 = vrot.slane %v2561, 5
      %v2564 = vsel %vm674, %v2559, %v2563
      %v2566 = vshrl.u32 %v2307, 16
      %v2568 = vrot.slane %v2566, 4
      %v2569 = vshll.u32 %v2307, 16
      %v2571 = vrot.slane %v2569, 5
      %v2572 = vor.u32 %v2568, %v2571
      %v2573 = vrot.slane %v2572, 4
      %v2575 = vshll.u32 %v2308, 16
      %v2577 = vrot.slane %v2575, 5
      %v2578 = vsel %vm674, %v2573, %v2577
      %v2579 = vshrl.u32 %v2308, 16
      %v2581 = vrot.slane %v2579, 4
      %v2582 = vor.u32 %v2581, %v2577
      %v2583 = vrot.slane %v2582, 4
      %v2585 = vshll.u32 %v2309, 16
      %v2587 = vrot.slane %v2585, 5
      %v2588 = vsel %vm674, %v2583, %v2587
      %v2590 = vshrl.u32 %v2310, 16
      %v2592 = vrot.slane %v2590, 4
      %v2593 = vshll.u32 %v2310, 16
      %v2595 = vrot.slane %v2593, 5
      %v2596 = vor.u32 %v2592, %v2595
      %v2597 = vrot.slane %v2596, 4
      %v2599 = vshll.u32 %v2311, 16
      %v2601 = vrot.slane %v2599, 5
      %v2602 = vsel %vm674, %v2597, %v2601
      %v2603 = vshrl.u32 %v2311, 16
      %v2605 = vrot.slane %v2603, 4
      %v2606 = vor.u32 %v2605, %v2601
      %v2607 = vrot.slane %v2606, 4
      %v2609 = vshll.u32 %v2312, 16
      %v2611 = vrot.slane %v2609, 5
      %v2612 = vsel %vm674, %v2607, %v2611
      %v2614 = vshrl.u32 %v2313, 16
      %v2616 = vrot.slane %v2614, 4
      %v2617 = vshll.u32 %v2313, 16
      %v2619 = vrot.slane %v2617, 5
      %v2620 = vor.u32 %v2616, %v2619
      %v2621 = vrot.slane %v2620, 4
      %v2623 = vshll.u32 %v2314, 16
      %v2625 = vrot.slane %v2623, 5
      %v2626 = vsel %vm674, %v2621, %v2625
      %v2627 = vshrl.u32 %v2314, 16
      %v2629 = vrot.slane %v2627, 4
      %v2630 = vor.u32 %v2629, %v2625
      %v2631 = vrot.slane %v2630, 4
      %v2633 = vshll.u32 %v2315, 16
      %v2635 = vrot.slane %v2633, 5
      %v2636 = vsel %vm674, %v2631, %v2635
      %v2638 = vshrl.u32 %v2316, 16
      %v2640 = vrot.slane %v2638, 4
      %v2641 = vshll.u32 %v2316, 16
      %v2643 = vrot.slane %v2641, 5
      %v2644 = vor.u32 %v2640, %v2643
      %v2645 = vrot.slane %v2644, 4
      %v2647 = vshll.u32 %v2317, 16
      %v2649 = vrot.slane %v2647, 5
      %v2650 = vsel %vm674, %v2645, %v2649
      %v2651 = vshrl.u32 %v2317, 16
      %v2653 = vrot.slane %v2651, 4
      %v2654 = vor.u32 %v2653, %v2649
      %v2655 = vrot.slane %v2654, 4
      %v2657 = vshll.u32 %v2318, 16
      %v2659 = vrot.slane %v2657, 5
      %v2660 = vsel %vm674, %v2655, %v2659
      %v2662 = vshrl.u32 %v2319, 16
      %v2664 = vrot.slane %v2662, 4
      %v2665 = vshll.u32 %v2319, 16
      %v2667 = vrot.slane %v2665, 5
      %v2668 = vor.u32 %v2664, %v2667
      %v2669 = vrot.slane %v2668, 4
      %v2671 = vshll.u32 %v2320, 16
      %v2673 = vrot.slane %v2671, 5
      %v2674 = vsel %vm674, %v2669, %v2673
      %v2675 = vshrl.u32 %v2320, 16
      %v2677 = vrot.slane %v2675, 4
      %v2678 = vor.u32 %v2677, %v2673
      %v2679 = vrot.slane %v2678, 4
      %v2681 = vshll.u32 %v2321, 16
      %v2683 = vrot.slane %v2681, 5
      %v2684 = vsel %vm674, %v2679, %v2683
      %v2686 = vshrl.u32 %v2322, 16
      %v2688 = vrot.slane %v2686, 4
      %v2689 = vshll.u32 %v2322, 16
      %v2691 = vrot.slane %v2689, 5
      %v2692 = vor.u32 %v2688, %v2691
      %v2693 = vrot.slane %v2692, 4
      %v2695 = vshll.u32 %v2323, 16
      %v2697 = vrot.slane %v2695, 5
      %v2698 = vsel %vm674, %v2693, %v2697
      %v2699 = vshrl.u32 %v2323, 16
      %v2701 = vrot.slane %v2699, 4
      %v2702 = vor.u32 %v2701, %v2697
      %v2703 = vrot.slane %v2702, 4
      %v2705 = vshll.u32 %v2324, 16
      %v2707 = vrot.slane %v2705, 5
      %v2708 = vsel %vm674, %v2703, %v2707
      %v2709 = vld [vmem:[#allocation2] sm:$0xff]
      %v2710 = vld [vmem:[#allocation2 + $0x8] sm:$0xff]
      %v2711 = vld [vmem:[#allocation2 + $0x10] sm:$0xff]
      %v2712 = vld [vmem:[#allocation2 + $0x18] sm:$0xff]
      %v2713 = vld [vmem:[#allocation2 + $0x20] sm:$0xff]
      %v2714 = vld [vmem:[#allocation2 + $0x28] sm:$0xff]
      %v2715 = vld [vmem:[#allocation2 + $0x30] sm:$0xff]
      %v2716 = vld [vmem:[#allocation2 + $0x38] sm:$0xff]
      %v2717 = vld [vmem:[#allocation2 + $0x40] sm:$0xff]
      %v2718 = vld [vmem:[#allocation2 + $0x48] sm:$0xff]
      %v2719 = vld [vmem:[#allocation2 + $0x50] sm:$0xff]
      %v2720 = vld [vmem:[#allocation2 + $0x58] sm:$0xff]
      %v2721 = vld [vmem:[#allocation2 + $0x60] sm:$0xff]
      %v2722 = vld [vmem:[#allocation2 + $0x68] sm:$0xff]
      %v2723 = vld [vmem:[#allocation2 + $0x70] sm:$0xff]
      %v2724 = vld [vmem:[#allocation2 + $0x78] sm:$0xff]
      %v2725 = vld [vmem:[#allocation2 + $0x80] sm:$0xff]
      %v2726 = vld [vmem:[#allocation2 + $0x88] sm:$0xff]
      %v2727 = vld [vmem:[#allocation2 + $0x90] sm:$0xff]
      %v2728 = vld [vmem:[#allocation2 + $0x98] sm:$0xff]
      %v2729 = vld [vmem:[#allocation2 + $0xa0] sm:$0xff]
      %v2730 = vld [vmem:[#allocation2 + $0xa8] sm:$0xff]
      %v2731 = vld [vmem:[#allocation2 + $0xb0] sm:$0xff]
      %v2732 = vld [vmem:[#allocation2 + $0xb8] sm:$0xff]
      %v2733 = vld [vmem:[#allocation2 + $0xc0] sm:$0xff]
      %v2734 = vld [vmem:[#allocation2 + $0xc8] sm:$0xff]
      %v2735 = vld [vmem:[#allocation2 + $0xd0] sm:$0xff]
      %v2736 = vld [vmem:[#allocation2 + $0xd8] sm:$0xff]
      %v2737 = vld [vmem:[#allocation2 + $0xe0] sm:$0xff]
      %v2738 = vld [vmem:[#allocation2 + $0xe8] sm:$0xff]
      %v2739 = vld [vmem:[#allocation2 + $0xf0] sm:$0xff]
      %v2740 = vld [vmem:[#allocation2 + $0xf8] sm:$0xff]
      %s2741 = scalar_lea.vmem %s1, 256
      %v2742 = vld [vmem:[%s2741] sm:$0xf]
      %v2743 = vld [vmem:[%s2741 + $0x4] sm:$0xf]
      %v2744 = vld [vmem:[%s2741 + $0x8] sm:$0xf]
      %v2745 = vld [vmem:[%s2741 + $0xc] sm:$0xf]
      %v2746 = vld [vmem:[%s2741 + $0x10] sm:$0xf]
      %v2747 = vld [vmem:[%s2741 + $0x14] sm:$0xf]
      %v2748 = vld [vmem:[%s2741 + $0x18] sm:$0xf]
      %v2749 = vld [vmem:[%s2741 + $0x1c] sm:$0xf]
      %v2750 = vld [vmem:[%s2741 + $0x20] sm:$0xf]
      %v2751 = vld [vmem:[%s2741 + $0x24] sm:$0xf]
      %v2752 = vld [vmem:[%s2741 + $0x28] sm:$0xf]
      %v2753 = vld [vmem:[%s2741 + $0x2c] sm:$0xf]
      %v2754 = vld [vmem:[%s2741 + $0x30] sm:$0xf]
      %v2755 = vld [vmem:[%s2741 + $0x34] sm:$0xf]
      %v2756 = vld [vmem:[%s2741 + $0x38] sm:$0xf]
      %v2757 = vld [vmem:[%s2741 + $0x3c] sm:$0xf]
      %v2758 = vunpack.c.l.b16 %v2338
      %v2759 = vunpack.c.l.b16 %v2348
      %v2760 = vunpack.c.l.b16 %v2362
      %v2761 = vunpack.c.l.b16 %v2372
      %v2762 = vunpack.c.l.b16 %v2386
      %v2763 = vunpack.c.l.b16 %v2396
      %v2764 = vunpack.c.l.b16 %v2410
      %v2765 = vunpack.c.l.b16 %v2420
      %v2766 = vunpack.c.l.b16 %v2434
      %v2767 = vunpack.c.l.b16 %v2444
      %v2768 = vunpack.c.l.b16 %v2458
      %v2769 = vunpack.c.l.b16 %v2468
      %v2770 = vunpack.c.l.b16 %v2482
      %v2771 = vunpack.c.l.b16 %v2492
      %v2772 = vunpack.c.l.b16 %v2506
      %v2773 = vunpack.c.l.b16 %v2516
      %v2774 = vunpack.c.l.b16 %v2530
      %v2775 = vunpack.c.l.b16 %v2540
      %v2776 = vunpack.c.l.b16 %v2554
      %v2777 = vunpack.c.l.b16 %v2564
      %v2778 = vunpack.c.l.b16 %v2578
      %v2779 = vunpack.c.l.b16 %v2588
      %v2780 = vunpack.c.l.b16 %v2602
      %v2781 = vunpack.c.l.b16 %v2612
      %v2782 = vunpack.c.l.b16 %v2626
      %v2783 = vunpack.c.l.b16 %v2636
      %v2784 = vunpack.c.l.b16 %v2650
      %v2785 = vunpack.c.l.b16 %v2660
      %v2786 = vunpack.c.l.b16 %v2674
      %v2787 = vunpack.c.l.b16 %v2684
      %v2788 = vunpack.c.l.b16 %v2698
      %v2789 = vunpack.c.l.b16 %v2708
      %v2790 = vpack.c.b16 %v2759, %v2758
      %v2791 = vpack.c.b16 %v2761, %v2760
      %v2792 = vpack.c.b16 %v2763, %v2762
      %v2793 = vpack.c.b16 %v2765, %v2764
      %v2794 = vpack.c.b16 %v2767, %v2766
      %v2795 = vpack.c.b16 %v2769, %v2768
      %v2796 = vpack.c.b16 %v2771, %v2770
      %v2797 = vpack.c.b16 %v2773, %v2772
      %v2798 = vpack.c.b16 %v2775, %v2774
      %v2799 = vpack.c.b16 %v2777, %v2776
      %v2800 = vpack.c.b16 %v2779, %v2778
      %v2801 = vpack.c.b16 %v2781, %v2780
      %v2802 = vpack.c.b16 %v2783, %v2782
      %v2803 = vpack.c.b16 %v2785, %v2784
      %v2804 = vpack.c.b16 %v2787, %v2786
      %v2805 = vpack.c.b16 %v2789, %v2788
      %v2838 = vunpack.c.l.b16 %v2742
      %v2839 = vunpack.c.l.b16 %v2743
      %v2840 = vunpack.c.l.b16 %v2744
      %v2841 = vunpack.c.l.b16 %v2745
      %v2842 = vunpack.c.l.b16 %v2746
      %v2843 = vunpack.c.l.b16 %v2747
      %v2844 = vunpack.c.l.b16 %v2748
      %v2845 = vunpack.c.l.b16 %v2749
      %v2846 = vunpack.c.l.b16 %v2750
      %v2847 = vunpack.c.l.b16 %v2751
      %v2848 = vunpack.c.l.b16 %v2752
      %v2849 = vunpack.c.l.b16 %v2753
      %v2850 = vunpack.c.l.b16 %v2754
      %v2851 = vunpack.c.l.b16 %v2755
      %v2852 = vunpack.c.l.b16 %v2756
      %v2853 = vunpack.c.l.b16 %v2757
      %v2854 = vpack.c.b16 %v2839, %v2838
      %v2855 = vpack.c.b16 %v2841, %v2840
      %v2856 = vpack.c.b16 %v2843, %v2842
      %v2857 = vpack.c.b16 %v2845, %v2844
      %v2858 = vpack.c.b16 %v2847, %v2846
      %v2859 = vpack.c.b16 %v2849, %v2848
      %v2860 = vpack.c.b16 %v2851, %v2850
      %v2861 = vpack.c.b16 %v2853, %v2852
      %2870 = vmatpush.bf16.msra.mxu0 %v2861
      %2871 = vmatpush.bf16.msra.mxu0 %v2860
      %2872 = vmatpush.bf16.msra.mxu0 %v2859
      %2873 = vmatpush.bf16.msra.mxu0 %v2858
      %2874 = vmatpush.bf16.msra.mxu0 %v2857
      %2875 = vmatpush.bf16.msra.mxu0 %v2856
      %2876 = vmatpush.bf16.msra.mxu0 %v2855
      %2877 = vmatpush.bf16.msra.mxu0 %v2854
      %2878 = vmatmul.bf16.gmra.mxu0 %v2790
      %v2879 = vpop.f32.mrf.mxu0
      %v2880 = vadd.f32 0.0, %v2879
      %v2881 = vpop.f32.mrf.mxu0
      %v2882 = vadd.f32 0.0, %v2881
      %2883 = vmatmul.bf16.gmra.mxu0 %v2791
      %v2884 = vpop.f32.mrf.mxu0
      %v2885 = vadd.f32 0.0, %v2884
      %v2886 = vpop.f32.mrf.mxu0
      %v2887 = vadd.f32 0.0, %v2886
      %2888 = vmatmul.bf16.gmra.mxu0 %v2792
      %v2889 = vpop.f32.mrf.mxu0
      %v2890 = vadd.f32 0.0, %v2889
      %v2891 = vpop.f32.mrf.mxu0
      %v2892 = vadd.f32 0.0, %v2891
      %2893 = vmatmul.bf16.gmra.mxu0 %v2793
      %v2894 = vpop.f32.mrf.mxu0
      %v2895 = vadd.f32 0.0, %v2894
      %v2896 = vpop.f32.mrf.mxu0
      %v2897 = vadd.f32 0.0, %v2896
      %2898 = vmatmul.bf16.gmra.mxu0 %v2794
      %v2899 = vpop.f32.mrf.mxu0
      %v2900 = vadd.f32 0.0, %v2899
      %v2901 = vpop.f32.mrf.mxu0
      %v2902 = vadd.f32 0.0, %v2901
      %2903 = vmatmul.bf16.gmra.mxu0 %v2795
      %v2904 = vpop.f32.mrf.mxu0
      %v2905 = vadd.f32 0.0, %v2904
      %v2906 = vpop.f32.mrf.mxu0
      %v2907 = vadd.f32 0.0, %v2906
      %2908 = vmatmul.bf16.gmra.mxu0 %v2796
      %v2909 = vpop.f32.mrf.mxu0
      %v2910 = vadd.f32 0.0, %v2909
      %v2911 = vpop.f32.mrf.mxu0
      %v2912 = vadd.f32 0.0, %v2911
      %2913 = vmatmul.bf16.gmra.mxu0 %v2797
      %v2914 = vpop.f32.mrf.mxu0
      %v2915 = vadd.f32 0.0, %v2914
      %v2916 = vpop.f32.mrf.mxu0
      %v2917 = vadd.f32 0.0, %v2916
      %2918 = vmatmul.bf16.gmra.mxu0 %v2798
      %v2919 = vpop.f32.mrf.mxu0
      %v2920 = vadd.f32 0.0, %v2919
      %v2921 = vpop.f32.mrf.mxu0
      %v2922 = vadd.f32 0.0, %v2921
      %2923 = vmatmul.bf16.gmra.mxu0 %v2799
      %v2924 = vpop.f32.mrf.mxu0
      %v2925 = vadd.f32 0.0, %v2924
      %v2926 = vpop.f32.mrf.mxu0
      %v2927 = vadd.f32 0.0, %v2926
      %2928 = vmatmul.bf16.gmra.mxu0 %v2800
      %v2929 = vpop.f32.mrf.mxu0
      %v2930 = vadd.f32 0.0, %v2929
      %v2931 = vpop.f32.mrf.mxu0
      %v2932 = vadd.f32 0.0, %v2931
      %2933 = vmatmul.bf16.gmra.mxu0 %v2801
      %v2934 = vpop.f32.mrf.mxu0
      %v2935 = vadd.f32 0.0, %v2934
      %v2936 = vpop.f32.mrf.mxu0
      %v2937 = vadd.f32 0.0, %v2936
      %2938 = vmatmul.bf16.gmra.mxu0 %v2802
      %v2939 = vpop.f32.mrf.mxu0
      %v2940 = vadd.f32 0.0, %v2939
      %v2941 = vpop.f32.mrf.mxu0
      %v2942 = vadd.f32 0.0, %v2941
      %2943 = vmatmul.bf16.gmra.mxu0 %v2803
      %v2944 = vpop.f32.mrf.mxu0
      %v2945 = vadd.f32 0.0, %v2944
      %v2946 = vpop.f32.mrf.mxu0
      %v2947 = vadd.f32 0.0, %v2946
      %2948 = vmatmul.bf16.gmra.mxu0 %v2804
      %v2949 = vpop.f32.mrf.mxu0
      %v2950 = vadd.f32 0.0, %v2949
      %v2951 = vpop.f32.mrf.mxu0
      %v2952 = vadd.f32 0.0, %v2951
      %2953 = vmatmul.bf16.gmra.mxu0 %v2805
      %v2954 = vpop.f32.mrf.mxu0
      %v2955 = vadd.f32 0.0, %v2954
      %v2956 = vpop.f32.mrf.mxu0
      %v2957 = vadd.f32 0.0, %v2956
      %2958 = vdwg.mxu0
      %v2959 = vadd.f32 %v2709, %v2880
      %v2960 = vadd.f32 %v2710, %v2882
      %v2961 = vadd.f32 %v2711, %v2885
      %v2962 = vadd.f32 %v2712, %v2887
      %v2963 = vadd.f32 %v2713, %v2890
      %v2964 = vadd.f32 %v2714, %v2892
      %v2965 = vadd.f32 %v2715, %v2895
      %v2966 = vadd.f32 %v2716, %v2897
      %v2967 = vadd.f32 %v2717, %v2900
      %v2968 = vadd.f32 %v2718, %v2902
      %v2969 = vadd.f32 %v2719, %v2905
      %v2970 = vadd.f32 %v2720, %v2907
      %v2971 = vadd.f32 %v2721, %v2910
      %v2972 = vadd.f32 %v2722, %v2912
      %v2973 = vadd.f32 %v2723, %v2915
      %v2974 = vadd.f32 %v2724, %v2917
      %v2975 = vadd.f32 %v2725, %v2920
      %v2976 = vadd.f32 %v2726, %v2922
      %v2977 = vadd.f32 %v2727, %v2925
      %v2978 = vadd.f32 %v2728, %v2927
      %v2979 = vadd.f32 %v2729, %v2930
      %v2980 = vadd.f32 %v2730, %v2932
      %v2981 = vadd.f32 %v2731, %v2935
      %v2982 = vadd.f32 %v2732, %v2937
      %v2983 = vadd.f32 %v2733, %v2940
      %v2984 = vadd.f32 %v2734, %v2942
      %v2985 = vadd.f32 %v2735, %v2945
      %v2986 = vadd.f32 %v2736, %v2947
      %v2987 = vadd.f32 %v2737, %v2950
      %v2988 = vadd.f32 %v2738, %v2952
      %v2989 = vadd.f32 %v2739, %v2955
      %v2990 = vadd.f32 %v2740, %v2957
      %2991 = vst [vmem:[#allocation2] sm:$0xff] %v2959
      %2992 = vst [vmem:[#allocation2 + $0x8] sm:$0xff] %v2960
      %2993 = vst [vmem:[#allocation2 + $0x10] sm:$0xff] %v2961
      %2994 = vst [vmem:[#allocation2 + $0x18] sm:$0xff] %v2962
      %2995 = vst [vmem:[#allocation2 + $0x20] sm:$0xff] %v2963
      %2996 = vst [vmem:[#allocation2 + $0x28] sm:$0xff] %v2964
      %2997 = vst [vmem:[#allocation2 + $0x30] sm:$0xff] %v2965
      %2998 = vst [vmem:[#allocation2 + $0x38] sm:$0xff] %v2966
      %2999 = vst [vmem:[#allocation2 + $0x40] sm:$0xff] %v2967
      %3000 = vst [vmem:[#allocation2 + $0x48] sm:$0xff] %v2968
      %3001 = vst [vmem:[#allocation2 + $0x50] sm:$0xff] %v2969
      %3002 = vst [vmem:[#allocation2 + $0x58] sm:$0xff] %v2970
      %3003 = vst [vmem:[#allocation2 + $0x60] sm:$0xff] %v2971
      %3004 = vst [vmem:[#allocation2 + $0x68] sm:$0xff] %v2972
      %3005 = vst [vmem:[#allocation2 + $0x70] sm:$0xff] %v2973
      %3006 = vst [vmem:[#allocation2 + $0x78] sm:$0xff] %v2974
      %3007 = vst [vmem:[#allocation2 + $0x80] sm:$0xff] %v2975
      %3008 = vst [vmem:[#allocation2 + $0x88] sm:$0xff] %v2976
      %3009 = vst [vmem:[#allocation2 + $0x90] sm:$0xff] %v2977
      %3010 = vst [vmem:[#allocation2 + $0x98] sm:$0xff] %v2978
      %3011 = vst [vmem:[#allocation2 + $0xa0] sm:$0xff] %v2979
      %3012 = vst [vmem:[#allocation2 + $0xa8] sm:$0xff] %v2980
      %3013 = vst [vmem:[#allocation2 + $0xb0] sm:$0xff] %v2981
      %3014 = vst [vmem:[#allocation2 + $0xb8] sm:$0xff] %v2982
      %3015 = vst [vmem:[#allocation2 + $0xc0] sm:$0xff] %v2983
      %3016 = vst [vmem:[#allocation2 + $0xc8] sm:$0xff] %v2984
      %3017 = vst [vmem:[#allocation2 + $0xd0] sm:$0xff] %v2985
      %3018 = vst [vmem:[#allocation2 + $0xd8] sm:$0xff] %v2986
      %3019 = vst [vmem:[#allocation2 + $0xe0] sm:$0xff] %v2987
      %3020 = vst [vmem:[#allocation2 + $0xe8] sm:$0xff] %v2988
      %3021 = vst [vmem:[#allocation2 + $0xf0] sm:$0xff] %v2989
      %3022 = vst [vmem:[#allocation2 + $0xf8] sm:$0xff] %v2990
      %v3023 = vld [vmem:[%s1898] sm:$0xe]
      %v3024 = vld [vmem:[%s1898 + $0x4] sm:$0xf]
      %v3025 = vld [vmem:[%s1898 + $0x8] sm:$0x1]
      %v3026 = vld [vmem:[%s1898 + $0xc] sm:$0xe]
      %v3027 = vld [vmem:[%s1898 + $0x10] sm:$0xf]
      %v3028 = vld [vmem:[%s1898 + $0x14] sm:$0x1]
      %v3029 = vld [vmem:[%s1898 + $0x18] sm:$0xe]
      %v3030 = vld [vmem:[%s1898 + $0x1c] sm:$0xf]
      %v3031 = vld [vmem:[%s1898 + $0x20] sm:$0x1]
      %v3032 = vld [vmem:[%s1898 + $0x24] sm:$0xe]
      %v3033 = vld [vmem:[%s1898 + $0x28] sm:$0xf]
      %v3034 = vld [vmem:[%s1898 + $0x2c] sm:$0x1]
      %v3035 = vld [vmem:[%s1898 + $0x30] sm:$0xe]
      %v3036 = vld [vmem:[%s1898 + $0x34] sm:$0xf]
      %v3037 = vld [vmem:[%s1898 + $0x38] sm:$0x1]
      %v3038 = vld [vmem:[%s1898 + $0x3c] sm:$0xe]
      %v3039 = vld [vmem:[%s1898 + $0x40] sm:$0xf]
      %v3040 = vld [vmem:[%s1898 + $0x44] sm:$0x1]
      %v3041 = vld [vmem:[%s1898 + $0x48] sm:$0xe]
      %v3042 = vld [vmem:[%s1898 + $0x4c] sm:$0xf]
      %v3043 = vld [vmem:[%s1898 + $0x50] sm:$0x1]
      %v3044 = vld [vmem:[%s1898 + $0x54] sm:$0xe]
      %v3045 = vld [vmem:[%s1898 + $0x58] sm:$0xf]
      %v3046 = vld [vmem:[%s1898 + $0x5c] sm:$0x1]
      %v3047 = vld [vmem:[%s1898 + $0x60] sm:$0xe]
      %v3048 = vld [vmem:[%s1898 + $0x64] sm:$0xf]
      %v3049 = vld [vmem:[%s1898 + $0x68] sm:$0x1]
      %v3050 = vld [vmem:[%s1898 + $0x6c] sm:$0xe]
      %v3051 = vld [vmem:[%s1898 + $0x70] sm:$0xf]
      %v3052 = vld [vmem:[%s1898 + $0x74] sm:$0x1]
      %v3053 = vld [vmem:[%s1898 + $0x78] sm:$0xe]
      %v3054 = vld [vmem:[%s1898 + $0x7c] sm:$0xf]
      %v3055 = vld [vmem:[%s1898 + $0x80] sm:$0x1]
      %v3056 = vld [vmem:[%s1898 + $0x84] sm:$0xe]
      %v3057 = vld [vmem:[%s1898 + $0x88] sm:$0xf]
      %v3058 = vld [vmem:[%s1898 + $0x8c] sm:$0x1]
      %v3059 = vld [vmem:[%s1898 + $0x90] sm:$0xe]
      %v3060 = vld [vmem:[%s1898 + $0x94] sm:$0xf]
      %v3061 = vld [vmem:[%s1898 + $0x98] sm:$0x1]
      %v3062 = vld [vmem:[%s1898 + $0x9c] sm:$0xe]
      %v3063 = vld [vmem:[%s1898 + $0xa0] sm:$0xf]
      %v3064 = vld [vmem:[%s1898 + $0xa4] sm:$0x1]
      %v3065 = vld [vmem:[%s1898 + $0xa8] sm:$0xe]
      %v3066 = vld [vmem:[%s1898 + $0xac] sm:$0xf]
      %v3067 = vld [vmem:[%s1898 + $0xb0] sm:$0x1]
      %v3068 = vld [vmem:[%s1898 + $0xb4] sm:$0xe]
      %v3069 = vld [vmem:[%s1898 + $0xb8] sm:$0xf]
      %v3070 = vld [vmem:[%s1898 + $0xbc] sm:$0x1]
      %v3119 = vrot.slane %v3023, 5
      %v3120 = vrot.slane %v3119, 4
      %v3121 = vrot.slane %v3024, 5
      %v3122 = vsel %vm1471, %v3120, %v3121
      %v3123 = vrot.slane %v3121, 4
      %v3124 = vrot.slane %v3025, 5
      %v3125 = vsel %vm1471, %v3123, %v3124
      %v3126 = vrot.slane %v3026, 5
      %v3127 = vrot.slane %v3126, 4
      %v3128 = vrot.slane %v3027, 5
      %v3129 = vsel %vm1471, %v3127, %v3128
      %v3130 = vrot.slane %v3128, 4
      %v3131 = vrot.slane %v3028, 5
      %v3132 = vsel %vm1471, %v3130, %v3131
      %v3133 = vrot.slane %v3029, 5
      %v3134 = vrot.slane %v3133, 4
      %v3135 = vrot.slane %v3030, 5
      %v3136 = vsel %vm1471, %v3134, %v3135
      %v3137 = vrot.slane %v3135, 4
      %v3138 = vrot.slane %v3031, 5
      %v3139 = vsel %vm1471, %v3137, %v3138
      %v3140 = vrot.slane %v3032, 5
      %v3141 = vrot.slane %v3140, 4
      %v3142 = vrot.slane %v3033, 5
      %v3143 = vsel %vm1471, %v3141, %v3142
      %v3144 = vrot.slane %v3142, 4
      %v3145 = vrot.slane %v3034, 5
      %v3146 = vsel %vm1471, %v3144, %v3145
      %v3147 = vrot.slane %v3035, 5
      %v3148 = vrot.slane %v3147, 4
      %v3149 = vrot.slane %v3036, 5
      %v3150 = vsel %vm1471, %v3148, %v3149
      %v3151 = vrot.slane %v3149, 4
      %v3152 = vrot.slane %v3037, 5
      %v3153 = vsel %vm1471, %v3151, %v3152
      %v3154 = vrot.slane %v3038, 5
      %v3155 = vrot.slane %v3154, 4
      %v3156 = vrot.slane %v3039, 5
      %v3157 = vsel %vm1471, %v3155, %v3156
      %v3158 = vrot.slane %v3156, 4
      %v3159 = vrot.slane %v3040, 5
      %v3160 = vsel %vm1471, %v3158, %v3159
      %v3161 = vrot.slane %v3041, 5
      %v3162 = vrot.slane %v3161, 4
      %v3163 = vrot.slane %v3042, 5
      %v3164 = vsel %vm1471, %v3162, %v3163
      %v3165 = vrot.slane %v3163, 4
      %v3166 = vrot.slane %v3043, 5
      %v3167 = vsel %vm1471, %v3165, %v3166
      %v3168 = vrot.slane %v3044, 5
      %v3169 = vrot.slane %v3168, 4
      %v3170 = vrot.slane %v3045, 5
      %v3171 = vsel %vm1471, %v3169, %v3170
      %v3172 = vrot.slane %v3170, 4
      %v3173 = vrot.slane %v3046, 5
      %v3174 = vsel %vm1471, %v3172, %v3173
      %v3175 = vrot.slane %v3047, 5
      %v3176 = vrot.slane %v3175, 4
      %v3177 = vrot.slane %v3048, 5
      %v3178 = vsel %vm1471, %v3176, %v3177
      %v3179 = vrot.slane %v3177, 4
      %v3180 = vrot.slane %v3049, 5
      %v3181 = vsel %vm1471, %v3179, %v3180
      %v3182 = vrot.slane %v3050, 5
      %v3183 = vrot.slane %v3182, 4
      %v3184 = vrot.slane %v3051, 5
      %v3185 = vsel %vm1471, %v3183, %v3184
      %v3186 = vrot.slane %v3184, 4
      %v3187 = vrot.slane %v3052, 5
      %v3188 = vsel %vm1471, %v3186, %v3187
      %v3189 = vrot.slane %v3053, 5
      %v3190 = vrot.slane %v3189, 4
      %v3191 = vrot.slane %v3054, 5
      %v3192 = vsel %vm1471, %v3190, %v3191
      %v3193 = vrot.slane %v3191, 4
      %v3194 = vrot.slane %v3055, 5
      %v3195 = vsel %vm1471, %v3193, %v3194
      %v3196 = vrot.slane %v3056, 5
      %v3197 = vrot.slane %v3196, 4
      %v3198 = vrot.slane %v3057, 5
      %v3199 = vsel %vm1471, %v3197, %v3198
      %v3200 = vrot.slane %v3198, 4
      %v3201 = vrot.slane %v3058, 5
      %v3202 = vsel %vm1471, %v3200, %v3201
      %v3203 = vrot.slane %v3059, 5
      %v3204 = vrot.slane %v3203, 4
      %v3205 = vrot.slane %v3060, 5
      %v3206 = vsel %vm1471, %v3204, %v3205
      %v3207 = vrot.slane %v3205, 4
      %v3208 = vrot.slane %v3061, 5
      %v3209 = vsel %vm1471, %v3207, %v3208
      %v3210 = vrot.slane %v3062, 5
      %v3211 = vrot.slane %v3210, 4
      %v3212 = vrot.slane %v3063, 5
      %v3213 = vsel %vm1471, %v3211, %v3212
      %v3214 = vrot.slane %v3212, 4
      %v3215 = vrot.slane %v3064, 5
      %v3216 = vsel %vm1471, %v3214, %v3215
      %v3217 = vrot.slane %v3065, 5
      %v3218 = vrot.slane %v3217, 4
      %v3219 = vrot.slane %v3066, 5
      %v3220 = vsel %vm1471, %v3218, %v3219
      %v3221 = vrot.slane %v3219, 4
      %v3222 = vrot.slane %v3067, 5
      %v3223 = vsel %vm1471, %v3221, %v3222
      %v3224 = vrot.slane %v3068, 5
      %v3225 = vrot.slane %v3224, 4
      %v3226 = vrot.slane %v3069, 5
      %v3227 = vsel %vm1471, %v3225, %v3226
      %v3228 = vrot.slane %v3226, 4
      %v3229 = vrot.slane %v3070, 5
      %v3230 = vsel %vm1471, %v3228, %v3229
      %v3231 = vld [vmem:[#allocation2] sm:$0xff]
      %v3232 = vld [vmem:[#allocation2 + $0x8] sm:$0xff]
      %v3233 = vld [vmem:[#allocation2 + $0x10] sm:$0xff]
      %v3234 = vld [vmem:[#allocation2 + $0x18] sm:$0xff]
      %v3235 = vld [vmem:[#allocation2 + $0x20] sm:$0xff]
      %v3236 = vld [vmem:[#allocation2 + $0x28] sm:$0xff]
      %v3237 = vld [vmem:[#allocation2 + $0x30] sm:$0xff]
      %v3238 = vld [vmem:[#allocation2 + $0x38] sm:$0xff]
      %v3239 = vld [vmem:[#allocation2 + $0x40] sm:$0xff]
      %v3240 = vld [vmem:[#allocation2 + $0x48] sm:$0xff]
      %v3241 = vld [vmem:[#allocation2 + $0x50] sm:$0xff]
      %v3242 = vld [vmem:[#allocation2 + $0x58] sm:$0xff]
      %v3243 = vld [vmem:[#allocation2 + $0x60] sm:$0xff]
      %v3244 = vld [vmem:[#allocation2 + $0x68] sm:$0xff]
      %v3245 = vld [vmem:[#allocation2 + $0x70] sm:$0xff]
      %v3246 = vld [vmem:[#allocation2 + $0x78] sm:$0xff]
      %v3247 = vld [vmem:[#allocation2 + $0x80] sm:$0xff]
      %v3248 = vld [vmem:[#allocation2 + $0x88] sm:$0xff]
      %v3249 = vld [vmem:[#allocation2 + $0x90] sm:$0xff]
      %v3250 = vld [vmem:[#allocation2 + $0x98] sm:$0xff]
      %v3251 = vld [vmem:[#allocation2 + $0xa0] sm:$0xff]
      %v3252 = vld [vmem:[#allocation2 + $0xa8] sm:$0xff]
      %v3253 = vld [vmem:[#allocation2 + $0xb0] sm:$0xff]
      %v3254 = vld [vmem:[#allocation2 + $0xb8] sm:$0xff]
      %v3255 = vld [vmem:[#allocation2 + $0xc0] sm:$0xff]
      %v3256 = vld [vmem:[#allocation2 + $0xc8] sm:$0xff]
      %v3257 = vld [vmem:[#allocation2 + $0xd0] sm:$0xff]
      %v3258 = vld [vmem:[#allocation2 + $0xd8] sm:$0xff]
      %v3259 = vld [vmem:[#allocation2 + $0xe0] sm:$0xff]
      %v3260 = vld [vmem:[#allocation2 + $0xe8] sm:$0xff]
      %v3261 = vld [vmem:[#allocation2 + $0xf0] sm:$0xff]
      %v3262 = vld [vmem:[#allocation2 + $0xf8] sm:$0xff]
      %s3263 = scalar_lea.vmem %s1, 320
      %v3264 = vld [vmem:[%s3263] sm:$0xf]
      %v3265 = vld [vmem:[%s3263 + $0x4] sm:$0xf]
      %v3266 = vld [vmem:[%s3263 + $0x8] sm:$0xf]
      %v3267 = vld [vmem:[%s3263 + $0xc] sm:$0xf]
      %v3268 = vld [vmem:[%s3263 + $0x10] sm:$0xf]
      %v3269 = vld [vmem:[%s3263 + $0x14] sm:$0xf]
      %v3270 = vld [vmem:[%s3263 + $0x18] sm:$0xf]
      %v3271 = vld [vmem:[%s3263 + $0x1c] sm:$0xf]
      %v3272 = vld [vmem:[%s3263 + $0x20] sm:$0xf]
      %v3273 = vld [vmem:[%s3263 + $0x24] sm:$0xf]
      %v3274 = vld [vmem:[%s3263 + $0x28] sm:$0xf]
      %v3275 = vld [vmem:[%s3263 + $0x2c] sm:$0xf]
      %v3276 = vld [vmem:[%s3263 + $0x30] sm:$0xf]
      %v3277 = vld [vmem:[%s3263 + $0x34] sm:$0xf]
      %v3278 = vld [vmem:[%s3263 + $0x38] sm:$0xf]
      %v3279 = vld [vmem:[%s3263 + $0x3c] sm:$0xf]
      %v3280 = vunpack.c.l.b16 %v3122
      %v3281 = vunpack.c.l.b16 %v3125
      %v3282 = vunpack.c.l.b16 %v3129
      %v3283 = vunpack.c.l.b16 %v3132
      %v3284 = vunpack.c.l.b16 %v3136
      %v3285 = vunpack.c.l.b16 %v3139
      %v3286 = vunpack.c.l.b16 %v3143
      %v3287 = vunpack.c.l.b16 %v3146
      %v3288 = vunpack.c.l.b16 %v3150
      %v3289 = vunpack.c.l.b16 %v3153
      %v3290 = vunpack.c.l.b16 %v3157
      %v3291 = vunpack.c.l.b16 %v3160
      %v3292 = vunpack.c.l.b16 %v3164
      %v3293 = vunpack.c.l.b16 %v3167
      %v3294 = vunpack.c.l.b16 %v3171
      %v3295 = vunpack.c.l.b16 %v3174
      %v3296 = vunpack.c.l.b16 %v3178
      %v3297 = vunpack.c.l.b16 %v3181
      %v3298 = vunpack.c.l.b16 %v3185
      %v3299 = vunpack.c.l.b16 %v3188
      %v3300 = vunpack.c.l.b16 %v3192
      %v3301 = vunpack.c.l.b16 %v3195
      %v3302 = vunpack.c.l.b16 %v3199
      %v3303 = vunpack.c.l.b16 %v3202
      %v3304 = vunpack.c.l.b16 %v3206
      %v3305 = vunpack.c.l.b16 %v3209
      %v3306 = vunpack.c.l.b16 %v3213
      %v3307 = vunpack.c.l.b16 %v3216
      %v3308 = vunpack.c.l.b16 %v3220
      %v3309 = vunpack.c.l.b16 %v3223
      %v3310 = vunpack.c.l.b16 %v3227
      %v3311 = vunpack.c.l.b16 %v3230
      %v3312 = vpack.c.b16 %v3281, %v3280
      %v3313 = vpack.c.b16 %v3283, %v3282
      %v3314 = vpack.c.b16 %v3285, %v3284
      %v3315 = vpack.c.b16 %v3287, %v3286
      %v3316 = vpack.c.b16 %v3289, %v3288
      %v3317 = vpack.c.b16 %v3291, %v3290
      %v3318 = vpack.c.b16 %v3293, %v3292
      %v3319 = vpack.c.b16 %v3295, %v3294
      %v3320 = vpack.c.b16 %v3297, %v3296
      %v3321 = vpack.c.b16 %v3299, %v3298
      %v3322 = vpack.c.b16 %v3301, %v3300
      %v3323 = vpack.c.b16 %v3303, %v3302
      %v3324 = vpack.c.b16 %v3305, %v3304
      %v3325 = vpack.c.b16 %v3307, %v3306
      %v3326 = vpack.c.b16 %v3309, %v3308
      %v3327 = vpack.c.b16 %v3311, %v3310
      %v3360 = vunpack.c.l.b16 %v3264
      %v3361 = vunpack.c.l.b16 %v3265
      %v3362 = vunpack.c.l.b16 %v3266
      %v3363 = vunpack.c.l.b16 %v3267
      %v3364 = vunpack.c.l.b16 %v3268
      %v3365 = vunpack.c.l.b16 %v3269
      %v3366 = vunpack.c.l.b16 %v3270
      %v3367 = vunpack.c.l.b16 %v3271
      %v3368 = vunpack.c.l.b16 %v3272
      %v3369 = vunpack.c.l.b16 %v3273
      %v3370 = vunpack.c.l.b16 %v3274
      %v3371 = vunpack.c.l.b16 %v3275
      %v3372 = vunpack.c.l.b16 %v3276
      %v3373 = vunpack.c.l.b16 %v3277
      %v3374 = vunpack.c.l.b16 %v3278
      %v3375 = vunpack.c.l.b16 %v3279
      %v3376 = vpack.c.b16 %v3361, %v3360
      %v3377 = vpack.c.b16 %v3363, %v3362
      %v3378 = vpack.c.b16 %v3365, %v3364
      %v3379 = vpack.c.b16 %v3367, %v3366
      %v3380 = vpack.c.b16 %v3369, %v3368
      %v3381 = vpack.c.b16 %v3371, %v3370
      %v3382 = vpack.c.b16 %v3373, %v3372
      %v3383 = vpack.c.b16 %v3375, %v3374
      %3392 = vmatpush.bf16.msra.mxu0 %v3383
      %3393 = vmatpush.bf16.msra.mxu0 %v3382
      %3394 = vmatpush.bf16.msra.mxu0 %v3381
      %3395 = vmatpush.bf16.msra.mxu0 %v3380
      %3396 = vmatpush.bf16.msra.mxu0 %v3379
      %3397 = vmatpush.bf16.msra.mxu0 %v3378
      %3398 = vmatpush.bf16.msra.mxu0 %v3377
      %3399 = vmatpush.bf16.msra.mxu0 %v3376
      %3400 = vmatmul.bf16.gmra.mxu0 %v3312
      %v3401 = vpop.f32.mrf.mxu0
      %v3402 = vadd.f32 0.0, %v3401
      %v3403 = vpop.f32.mrf.mxu0
      %v3404 = vadd.f32 0.0, %v3403
      %3405 = vmatmul.bf16.gmra.mxu0 %v3313
      %v3406 = vpop.f32.mrf.mxu0
      %v3407 = vadd.f32 0.0, %v3406
      %v3408 = vpop.f32.mrf.mxu0
      %v3409 = vadd.f32 0.0, %v3408
      %3410 = vmatmul.bf16.gmra.mxu0 %v3314
      %v3411 = vpop.f32.mrf.mxu0
      %v3412 = vadd.f32 0.0, %v3411
      %v3413 = vpop.f32.mrf.mxu0
      %v3414 = vadd.f32 0.0, %v3413
      %3415 = vmatmul.bf16.gmra.mxu0 %v3315
      %v3416 = vpop.f32.mrf.mxu0
      %v3417 = vadd.f32 0.0, %v3416
      %v3418 = vpop.f32.mrf.mxu0
      %v3419 = vadd.f32 0.0, %v3418
      %3420 = vmatmul.bf16.gmra.mxu0 %v3316
      %v3421 = vpop.f32.mrf.mxu0
      %v3422 = vadd.f32 0.0, %v3421
      %v3423 = vpop.f32.mrf.mxu0
      %v3424 = vadd.f32 0.0, %v3423
      %3425 = vmatmul.bf16.gmra.mxu0 %v3317
      %v3426 = vpop.f32.mrf.mxu0
      %v3427 = vadd.f32 0.0, %v3426
      %v3428 = vpop.f32.mrf.mxu0
      %v3429 = vadd.f32 0.0, %v3428
      %3430 = vmatmul.bf16.gmra.mxu0 %v3318
      %v3431 = vpop.f32.mrf.mxu0
      %v3432 = vadd.f32 0.0, %v3431
      %v3433 = vpop.f32.mrf.mxu0
      %v3434 = vadd.f32 0.0, %v3433
      %3435 = vmatmul.bf16.gmra.mxu0 %v3319
      %v3436 = vpop.f32.mrf.mxu0
      %v3437 = vadd.f32 0.0, %v3436
      %v3438 = vpop.f32.mrf.mxu0
      %v3439 = vadd.f32 0.0, %v3438
      %3440 = vmatmul.bf16.gmra.mxu0 %v3320
      %v3441 = vpop.f32.mrf.mxu0
      %v3442 = vadd.f32 0.0, %v3441
      %v3443 = vpop.f32.mrf.mxu0
      %v3444 = vadd.f32 0.0, %v3443
      %3445 = vmatmul.bf16.gmra.mxu0 %v3321
      %v3446 = vpop.f32.mrf.mxu0
      %v3447 = vadd.f32 0.0, %v3446
      %v3448 = vpop.f32.mrf.mxu0
      %v3449 = vadd.f32 0.0, %v3448
      %3450 = vmatmul.bf16.gmra.mxu0 %v3322
      %v3451 = vpop.f32.mrf.mxu0
      %v3452 = vadd.f32 0.0, %v3451
      %v3453 = vpop.f32.mrf.mxu0
      %v3454 = vadd.f32 0.0, %v3453
      %3455 = vmatmul.bf16.gmra.mxu0 %v3323
      %v3456 = vpop.f32.mrf.mxu0
      %v3457 = vadd.f32 0.0, %v3456
      %v3458 = vpop.f32.mrf.mxu0
      %v3459 = vadd.f32 0.0, %v3458
      %3460 = vmatmul.bf16.gmra.mxu0 %v3324
      %v3461 = vpop.f32.mrf.mxu0
      %v3462 = vadd.f32 0.0, %v3461
      %v3463 = vpop.f32.mrf.mxu0
      %v3464 = vadd.f32 0.0, %v3463
      %3465 = vmatmul.bf16.gmra.mxu0 %v3325
      %v3466 = vpop.f32.mrf.mxu0
      %v3467 = vadd.f32 0.0, %v3466
      %v3468 = vpop.f32.mrf.mxu0
      %v3469 = vadd.f32 0.0, %v3468
      %3470 = vmatmul.bf16.gmra.mxu0 %v3326
      %v3471 = vpop.f32.mrf.mxu0
      %v3472 = vadd.f32 0.0, %v3471
      %v3473 = vpop.f32.mrf.mxu0
      %v3474 = vadd.f32 0.0, %v3473
      %3475 = vmatmul.bf16.gmra.mxu0 %v3327
      %v3476 = vpop.f32.mrf.mxu0
      %v3477 = vadd.f32 0.0, %v3476
      %v3478 = vpop.f32.mrf.mxu0
      %v3479 = vadd.f32 0.0, %v3478
      %3480 = vdwg.mxu0
      %v3481 = vadd.f32 %v3231, %v3402
      %v3482 = vadd.f32 %v3232, %v3404
      %v3483 = vadd.f32 %v3233, %v3407
      %v3484 = vadd.f32 %v3234, %v3409
      %v3485 = vadd.f32 %v3235, %v3412
      %v3486 = vadd.f32 %v3236, %v3414
      %v3487 = vadd.f32 %v3237, %v3417
      %v3488 = vadd.f32 %v3238, %v3419
      %v3489 = vadd.f32 %v3239, %v3422
      %v3490 = vadd.f32 %v3240, %v3424
      %v3491 = vadd.f32 %v3241, %v3427
      %v3492 = vadd.f32 %v3242, %v3429
      %v3493 = vadd.f32 %v3243, %v3432
      %v3494 = vadd.f32 %v3244, %v3434
      %v3495 = vadd.f32 %v3245, %v3437
      %v3496 = vadd.f32 %v3246, %v3439
      %v3497 = vadd.f32 %v3247, %v3442
      %v3498 = vadd.f32 %v3248, %v3444
      %v3499 = vadd.f32 %v3249, %v3447
      %v3500 = vadd.f32 %v3250, %v3449
      %v3501 = vadd.f32 %v3251, %v3452
      %v3502 = vadd.f32 %v3252, %v3454
      %v3503 = vadd.f32 %v3253, %v3457
      %v3504 = vadd.f32 %v3254, %v3459
      %v3505 = vadd.f32 %v3255, %v3462
      %v3506 = vadd.f32 %v3256, %v3464
      %v3507 = vadd.f32 %v3257, %v3467
      %v3508 = vadd.f32 %v3258, %v3469
      %v3509 = vadd.f32 %v3259, %v3472
      %v3510 = vadd.f32 %v3260, %v3474
      %v3511 = vadd.f32 %v3261, %v3477
      %v3512 = vadd.f32 %v3262, %v3479
      %3513 = vst [vmem:[#allocation2] sm:$0xff] %v3481
      %3514 = vst [vmem:[#allocation2 + $0x8] sm:$0xff] %v3482
      %3515 = vst [vmem:[#allocation2 + $0x10] sm:$0xff] %v3483
      %3516 = vst [vmem:[#allocation2 + $0x18] sm:$0xff] %v3484
      %3517 = vst [vmem:[#allocation2 + $0x20] sm:$0xff] %v3485
      %3518 = vst [vmem:[#allocation2 + $0x28] sm:$0xff] %v3486
      %3519 = vst [vmem:[#allocation2 + $0x30] sm:$0xff] %v3487
      %3520 = vst [vmem:[#allocation2 + $0x38] sm:$0xff] %v3488
      %3521 = vst [vmem:[#allocation2 + $0x40] sm:$0xff] %v3489
      %3522 = vst [vmem:[#allocation2 + $0x48] sm:$0xff] %v3490
      %3523 = vst [vmem:[#allocation2 + $0x50] sm:$0xff] %v3491
      %3524 = vst [vmem:[#allocation2 + $0x58] sm:$0xff] %v3492
      %3525 = vst [vmem:[#allocation2 + $0x60] sm:$0xff] %v3493
      %3526 = vst [vmem:[#allocation2 + $0x68] sm:$0xff] %v3494
      %3527 = vst [vmem:[#allocation2 + $0x70] sm:$0xff] %v3495
      %3528 = vst [vmem:[#allocation2 + $0x78] sm:$0xff] %v3496
      %3529 = vst [vmem:[#allocation2 + $0x80] sm:$0xff] %v3497
      %3530 = vst [vmem:[#allocation2 + $0x88] sm:$0xff] %v3498
      %3531 = vst [vmem:[#allocation2 + $0x90] sm:$0xff] %v3499
      %3532 = vst [vmem:[#allocation2 + $0x98] sm:$0xff] %v3500
      %3533 = vst [vmem:[#allocation2 + $0xa0] sm:$0xff] %v3501
      %3534 = vst [vmem:[#allocation2 + $0xa8] sm:$0xff] %v3502
      %3535 = vst [vmem:[#allocation2 + $0xb0] sm:$0xff] %v3503
      %3536 = vst [vmem:[#allocation2 + $0xb8] sm:$0xff] %v3504
      %3537 = vst [vmem:[#allocation2 + $0xc0] sm:$0xff] %v3505
      %3538 = vst [vmem:[#allocation2 + $0xc8] sm:$0xff] %v3506
      %3539 = vst [vmem:[#allocation2 + $0xd0] sm:$0xff] %v3507
      %3540 = vst [vmem:[#allocation2 + $0xd8] sm:$0xff] %v3508
      %3541 = vst [vmem:[#allocation2 + $0xe0] sm:$0xff] %v3509
      %3542 = vst [vmem:[#allocation2 + $0xe8] sm:$0xff] %v3510
      %3543 = vst [vmem:[#allocation2 + $0xf0] sm:$0xff] %v3511
      %3544 = vst [vmem:[#allocation2 + $0xf8] sm:$0xff] %v3512
      %s3545 = scalar_lea.vmem %s203, 24
      %v3546 = vld [vmem:[%s3545] sm:$0xf]
      %v3547 = vld [vmem:[%s3545 + $0x4] sm:$0xf]
      %v3548 = vld [vmem:[%s3545 + $0xc] sm:$0xf]
      %v3549 = vld [vmem:[%s3545 + $0x10] sm:$0xf]
      %v3550 = vld [vmem:[%s3545 + $0x18] sm:$0xf]
      %v3551 = vld [vmem:[%s3545 + $0x1c] sm:$0xf]
      %v3552 = vld [vmem:[%s3545 + $0x24] sm:$0xf]
      %v3553 = vld [vmem:[%s3545 + $0x28] sm:$0xf]
      %v3554 = vld [vmem:[%s3545 + $0x30] sm:$0xf]
      %v3555 = vld [vmem:[%s3545 + $0x34] sm:$0xf]
      %v3556 = vld [vmem:[%s3545 + $0x3c] sm:$0xf]
      %v3557 = vld [vmem:[%s3545 + $0x40] sm:$0xf]
      %v3558 = vld [vmem:[%s3545 + $0x48] sm:$0xf]
      %v3559 = vld [vmem:[%s3545 + $0x4c] sm:$0xf]
      %v3560 = vld [vmem:[%s3545 + $0x54] sm:$0xf]
      %v3561 = vld [vmem:[%s3545 + $0x58] sm:$0xf]
      %v3562 = vld [vmem:[%s3545 + $0x60] sm:$0xf]
      %v3563 = vld [vmem:[%s3545 + $0x64] sm:$0xf]
      %v3564 = vld [vmem:[%s3545 + $0x6c] sm:$0xf]
      %v3565 = vld [vmem:[%s3545 + $0x70] sm:$0xf]
      %v3566 = vld [vmem:[%s3545 + $0x78] sm:$0xf]
      %v3567 = vld [vmem:[%s3545 + $0x7c] sm:$0xf]
      %v3568 = vld [vmem:[%s3545 + $0x84] sm:$0xf]
      %v3569 = vld [vmem:[%s3545 + $0x88] sm:$0xf]
      %v3570 = vld [vmem:[%s3545 + $0x90] sm:$0xf]
      %v3571 = vld [vmem:[%s3545 + $0x94] sm:$0xf]
      %v3572 = vld [vmem:[%s3545 + $0x9c] sm:$0xf]
      %v3573 = vld [vmem:[%s3545 + $0xa0] sm:$0xf]
      %v3574 = vld [vmem:[%s3545 + $0xa8] sm:$0xf]
      %v3575 = vld [vmem:[%s3545 + $0xac] sm:$0xf]
      %v3576 = vld [vmem:[%s3545 + $0xb4] sm:$0xf]
      %v3577 = vld [vmem:[%s3545 + $0xb8] sm:$0xf]
      %v3578 = vld [vmem:[#allocation2] sm:$0xff]
      %v3579 = vld [vmem:[#allocation2 + $0x8] sm:$0xff]
      %v3580 = vld [vmem:[#allocation2 + $0x10] sm:$0xff]
      %v3581 = vld [vmem:[#allocation2 + $0x18] sm:$0xff]
      %v3582 = vld [vmem:[#allocation2 + $0x20] sm:$0xff]
      %v3583 = vld [vmem:[#allocation2 + $0x28] sm:$0xff]
      %v3584 = vld [vmem:[#allocation2 + $0x30] sm:$0xff]
      %v3585 = vld [vmem:[#allocation2 + $0x38] sm:$0xff]
      %v3586 = vld [vmem:[#allocation2 + $0x40] sm:$0xff]
      %v3587 = vld [vmem:[#allocation2 + $0x48] sm:$0xff]
      %v3588 = vld [vmem:[#allocation2 + $0x50] sm:$0xff]
      %v3589 = vld [vmem:[#allocation2 + $0x58] sm:$0xff]
      %v3590 = vld [vmem:[#allocation2 + $0x60] sm:$0xff]
      %v3591 = vld [vmem:[#allocation2 + $0x68] sm:$0xff]
      %v3592 = vld [vmem:[#allocation2 + $0x70] sm:$0xff]
      %v3593 = vld [vmem:[#allocation2 + $0x78] sm:$0xff]
      %v3594 = vld [vmem:[#allocation2 + $0x80] sm:$0xff]
      %v3595 = vld [vmem:[#allocation2 + $0x88] sm:$0xff]
      %v3596 = vld [vmem:[#allocation2 + $0x90] sm:$0xff]
      %v3597 = vld [vmem:[#allocation2 + $0x98] sm:$0xff]
      %v3598 = vld [vmem:[#allocation2 + $0xa0] sm:$0xff]
      %v3599 = vld [vmem:[#allocation2 + $0xa8] sm:$0xff]
      %v3600 = vld [vmem:[#allocation2 + $0xb0] sm:$0xff]
      %v3601 = vld [vmem:[#allocation2 + $0xb8] sm:$0xff]
      %v3602 = vld [vmem:[#allocation2 + $0xc0] sm:$0xff]
      %v3603 = vld [vmem:[#allocation2 + $0xc8] sm:$0xff]
      %v3604 = vld [vmem:[#allocation2 + $0xd0] sm:$0xff]
      %v3605 = vld [vmem:[#allocation2 + $0xd8] sm:$0xff]
      %v3606 = vld [vmem:[#allocation2 + $0xe0] sm:$0xff]
      %v3607 = vld [vmem:[#allocation2 + $0xe8] sm:$0xff]
      %v3608 = vld [vmem:[#allocation2 + $0xf0] sm:$0xff]
      %v3609 = vld [vmem:[#allocation2 + $0xf8] sm:$0xff]
      %s3610 = scalar_lea.vmem %s1, 384
      %v3611 = vld [vmem:[%s3610] sm:$0xf]
      %v3612 = vld [vmem:[%s3610 + $0x4] sm:$0xf]
      %v3613 = vld [vmem:[%s3610 + $0x8] sm:$0xf]
      %v3614 = vld [vmem:[%s3610 + $0xc] sm:$0xf]
      %v3615 = vld [vmem:[%s3610 + $0x10] sm:$0xf]
      %v3616 = vld [vmem:[%s3610 + $0x14] sm:$0xf]
      %v3617 = vld [vmem:[%s3610 + $0x18] sm:$0xf]
      %v3618 = vld [vmem:[%s3610 + $0x1c] sm:$0xf]
      %v3619 = vld [vmem:[%s3610 + $0x20] sm:$0xf]
      %v3620 = vld [vmem:[%s3610 + $0x24] sm:$0xf]
      %v3621 = vld [vmem:[%s3610 + $0x28] sm:$0xf]
      %v3622 = vld [vmem:[%s3610 + $0x2c] sm:$0xf]
      %v3623 = vld [vmem:[%s3610 + $0x30] sm:$0xf]
      %v3624 = vld [vmem:[%s3610 + $0x34] sm:$0xf]
      %v3625 = vld [vmem:[%s3610 + $0x38] sm:$0xf]
      %v3626 = vld [vmem:[%s3610 + $0x3c] sm:$0xf]
      %v3659 = vunpack.c.l.b16 %v3546
      %v3660 = vunpack.c.l.b16 %v3547
      %v3661 = vunpack.c.l.b16 %v3548
      %v3662 = vunpack.c.l.b16 %v3549
      %v3663 = vunpack.c.l.b16 %v3550
      %v3664 = vunpack.c.l.b16 %v3551
      %v3665 = vunpack.c.l.b16 %v3552
      %v3666 = vunpack.c.l.b16 %v3553
      %v3667 = vunpack.c.l.b16 %v3554
      %v3668 = vunpack.c.l.b16 %v3555
      %v3669 = vunpack.c.l.b16 %v3556
      %v3670 = vunpack.c.l.b16 %v3557
      %v3671 = vunpack.c.l.b16 %v3558
      %v3672 = vunpack.c.l.b16 %v3559
      %v3673 = vunpack.c.l.b16 %v3560
      %v3674 = vunpack.c.l.b16 %v3561
      %v3675 = vunpack.c.l.b16 %v3562
      %v3676 = vunpack.c.l.b16 %v3563
      %v3677 = vunpack.c.l.b16 %v3564
      %v3678 = vunpack.c.l.b16 %v3565
      %v3679 = vunpack.c.l.b16 %v3566
      %v3680 = vunpack.c.l.b16 %v3567
      %v3681 = vunpack.c.l.b16 %v3568
      %v3682 = vunpack.c.l.b16 %v3569
      %v3683 = vunpack.c.l.b16 %v3570
      %v3684 = vunpack.c.l.b16 %v3571
      %v3685 = vunpack.c.l.b16 %v3572
      %v3686 = vunpack.c.l.b16 %v3573
      %v3687 = vunpack.c.l.b16 %v3574
      %v3688 = vunpack.c.l.b16 %v3575
      %v3689 = vunpack.c.l.b16 %v3576
      %v3690 = vunpack.c.l.b16 %v3577
      %v3691 = vpack.c.b16 %v3660, %v3659
      %v3692 = vpack.c.b16 %v3662, %v3661
      %v3693 = vpack.c.b16 %v3664, %v3663
      %v3694 = vpack.c.b16 %v3666, %v3665
      %v3695 = vpack.c.b16 %v3668, %v3667
      %v3696 = vpack.c.b16 %v3670, %v3669
      %v3697 = vpack.c.b16 %v3672, %v3671
      %v3698 = vpack.c.b16 %v3674, %v3673
      %v3699 = vpack.c.b16 %v3676, %v3675
      %v3700 = vpack.c.b16 %v3678, %v3677
      %v3701 = vpack.c.b16 %v3680, %v3679
      %v3702 = vpack.c.b16 %v3682, %v3681
      %v3703 = vpack.c.b16 %v3684, %v3683
      %v3704 = vpack.c.b16 %v3686, %v3685
      %v3705 = vpack.c.b16 %v3688, %v3687
      %v3706 = vpack.c.b16 %v3690, %v3689
      %v3739 = vunpack.c.l.b16 %v3611
      %v3740 = vunpack.c.l.b16 %v3612
      %v3741 = vunpack.c.l.b16 %v3613
      %v3742 = vunpack.c.l.b16 %v3614
      %v3743 = vunpack.c.l.b16 %v3615
      %v3744 = vunpack.c.l.b16 %v3616
      %v3745 = vunpack.c.l.b16 %v3617
      %v3746 = vunpack.c.l.b16 %v3618
      %v3747 = vunpack.c.l.b16 %v3619
      %v3748 = vunpack.c.l.b16 %v3620
      %v3749 = vunpack.c.l.b16 %v3621
      %v3750 = vunpack.c.l.b16 %v3622
      %v3751 = vunpack.c.l.b16 %v3623
      %v3752 = vunpack.c.l.b16 %v3624
      %v3753 = vunpack.c.l.b16 %v3625
      %v3754 = vunpack.c.l.b16 %v3626
      %v3755 = vpack.c.b16 %v3740, %v3739
      %v3756 = vpack.c.b16 %v3742, %v3741
      %v3757 = vpack.c.b16 %v3744, %v3743
      %v3758 = vpack.c.b16 %v3746, %v3745
      %v3759 = vpack.c.b16 %v3748, %v3747
      %v3760 = vpack.c.b16 %v3750, %v3749
      %v3761 = vpack.c.b16 %v3752, %v3751
      %v3762 = vpack.c.b16 %v3754, %v3753
      %3771 = vmatpush.bf16.msra.mxu0 %v3762
      %3772 = vmatpush.bf16.msra.mxu0 %v3761
      %3773 = vmatpush.bf16.msra.mxu0 %v3760
      %3774 = vmatpush.bf16.msra.mxu0 %v3759
      %3775 = vmatpush.bf16.msra.mxu0 %v3758
      %3776 = vmatpush.bf16.msra.mxu0 %v3757
      %3777 = vmatpush.bf16.msra.mxu0 %v3756
      %3778 = vmatpush.bf16.msra.mxu0 %v3755
      %3779 = vmatmul.bf16.gmra.mxu0 %v3691
      %v3780 = vpop.f32.mrf.mxu0
      %v3781 = vadd.f32 0.0, %v3780
      %v3782 = vpop.f32.mrf.mxu0
      %v3783 = vadd.f32 0.0, %v3782
      %3784 = vmatmul.bf16.gmra.mxu0 %v3692
      %v3785 = vpop.f32.mrf.mxu0
      %v3786 = vadd.f32 0.0, %v3785
      %v3787 = vpop.f32.mrf.mxu0
      %v3788 = vadd.f32 0.0, %v3787
      %3789 = vmatmul.bf16.gmra.mxu0 %v3693
      %v3790 = vpop.f32.mrf.mxu0
      %v3791 = vadd.f32 0.0, %v3790
      %v3792 = vpop.f32.mrf.mxu0
      %v3793 = vadd.f32 0.0, %v3792
      %3794 = vmatmul.bf16.gmra.mxu0 %v3694
      %v3795 = vpop.f32.mrf.mxu0
      %v3796 = vadd.f32 0.0, %v3795
      %v3797 = vpop.f32.mrf.mxu0
      %v3798 = vadd.f32 0.0, %v3797
      %3799 = vmatmul.bf16.gmra.mxu0 %v3695
      %v3800 = vpop.f32.mrf.mxu0
      %v3801 = vadd.f32 0.0, %v3800
      %v3802 = vpop.f32.mrf.mxu0
      %v3803 = vadd.f32 0.0, %v3802
      %3804 = vmatmul.bf16.gmra.mxu0 %v3696
      %v3805 = vpop.f32.mrf.mxu0
      %v3806 = vadd.f32 0.0, %v3805
      %v3807 = vpop.f32.mrf.mxu0
      %v3808 = vadd.f32 0.0, %v3807
      %3809 = vmatmul.bf16.gmra.mxu0 %v3697
      %v3810 = vpop.f32.mrf.mxu0
      %v3811 = vadd.f32 0.0, %v3810
      %v3812 = vpop.f32.mrf.mxu0
      %v3813 = vadd.f32 0.0, %v3812
      %3814 = vmatmul.bf16.gmra.mxu0 %v3698
      %v3815 = vpop.f32.mrf.mxu0
      %v3816 = vadd.f32 0.0, %v3815
      %v3817 = vpop.f32.mrf.mxu0
      %v3818 = vadd.f32 0.0, %v3817
      %3819 = vmatmul.bf16.gmra.mxu0 %v3699
      %v3820 = vpop.f32.mrf.mxu0
      %v3821 = vadd.f32 0.0, %v3820
      %v3822 = vpop.f32.mrf.mxu0
      %v3823 = vadd.f32 0.0, %v3822
      %3824 = vmatmul.bf16.gmra.mxu0 %v3700
      %v3825 = vpop.f32.mrf.mxu0
      %v3826 = vadd.f32 0.0, %v3825
      %v3827 = vpop.f32.mrf.mxu0
      %v3828 = vadd.f32 0.0, %v3827
      %3829 = vmatmul.bf16.gmra.mxu0 %v3701
      %v3830 = vpop.f32.mrf.mxu0
      %v3831 = vadd.f32 0.0, %v3830
      %v3832 = vpop.f32.mrf.mxu0
      %v3833 = vadd.f32 0.0, %v3832
      %3834 = vmatmul.bf16.gmra.mxu0 %v3702
      %v3835 = vpop.f32.mrf.mxu0
      %v3836 = vadd.f32 0.0, %v3835
      %v3837 = vpop.f32.mrf.mxu0
      %v3838 = vadd.f32 0.0, %v3837
      %3839 = vmatmul.bf16.gmra.mxu0 %v3703
      %v3840 = vpop.f32.mrf.mxu0
      %v3841 = vadd.f32 0.0, %v3840
      %v3842 = vpop.f32.mrf.mxu0
      %v3843 = vadd.f32 0.0, %v3842
      %3844 = vmatmul.bf16.gmra.mxu0 %v3704
      %v3845 = vpop.f32.mrf.mxu0
      %v3846 = vadd.f32 0.0, %v3845
      %v3847 = vpop.f32.mrf.mxu0
      %v3848 = vadd.f32 0.0, %v3847
      %3849 = vmatmul.bf16.gmra.mxu0 %v3705
      %v3850 = vpop.f32.mrf.mxu0
      %v3851 = vadd.f32 0.0, %v3850
      %v3852 = vpop.f32.mrf.mxu0
      %v3853 = vadd.f32 0.0, %v3852
      %3854 = vmatmul.bf16.gmra.mxu0 %v3706
      %v3855 = vpop.f32.mrf.mxu0
      %v3856 = vadd.f32 0.0, %v3855
      %v3857 = vpop.f32.mrf.mxu0
      %v3858 = vadd.f32 0.0, %v3857
      %3859 = vdwg.mxu0
      %v3860 = vadd.f32 %v3578, %v3781
      %v3861 = vadd.f32 %v3579, %v3783
      %v3862 = vadd.f32 %v3580, %v3786
      %v3863 = vadd.f32 %v3581, %v3788
      %v3864 = vadd.f32 %v3582, %v3791
      %v3865 = vadd.f32 %v3583, %v3793
      %v3866 = vadd.f32 %v3584, %v3796
      %v3867 = vadd.f32 %v3585, %v3798
      %v3868 = vadd.f32 %v3586, %v3801
      %v3869 = vadd.f32 %v3587, %v3803
      %v3870 = vadd.f32 %v3588, %v3806
      %v3871 = vadd.f32 %v3589, %v3808
      %v3872 = vadd.f32 %v3590, %v3811
      %v3873 = vadd.f32 %v3591, %v3813
      %v3874 = vadd.f32 %v3592, %v3816
      %v3875 = vadd.f32 %v3593, %v3818
      %v3876 = vadd.f32 %v3594, %v3821
      %v3877 = vadd.f32 %v3595, %v3823
      %v3878 = vadd.f32 %v3596, %v3826
      %v3879 = vadd.f32 %v3597, %v3828
      %v3880 = vadd.f32 %v3598, %v3831
      %v3881 = vadd.f32 %v3599, %v3833
      %v3882 = vadd.f32 %v3600, %v3836
      %v3883 = vadd.f32 %v3601, %v3838
      %v3884 = vadd.f32 %v3602, %v3841
      %v3885 = vadd.f32 %v3603, %v3843
      %v3886 = vadd.f32 %v3604, %v3846
      %v3887 = vadd.f32 %v3605, %v3848
      %v3888 = vadd.f32 %v3606, %v3851
      %v3889 = vadd.f32 %v3607, %v3853
      %v3890 = vadd.f32 %v3608, %v3856
      %v3891 = vadd.f32 %v3609, %v3858
      %3892 = vst [vmem:[#allocation2] sm:$0xff] %v3860
      %3893 = vst [vmem:[#allocation2 + $0x8] sm:$0xff] %v3861
      %3894 = vst [vmem:[#allocation2 + $0x10] sm:$0xff] %v3862
      %3895 = vst [vmem:[#allocation2 + $0x18] sm:$0xff] %v3863
      %3896 = vst [vmem:[#allocation2 + $0x20] sm:$0xff] %v3864
      %3897 = vst [vmem:[#allocation2 + $0x28] sm:$0xff] %v3865
      %3898 = vst [vmem:[#allocation2 + $0x30] sm:$0xff] %v3866
      %3899 = vst [vmem:[#allocation2 + $0x38] sm:$0xff] %v3867
      %3900 = vst [vmem:[#allocation2 + $0x40] sm:$0xff] %v3868
      %3901 = vst [vmem:[#allocation2 + $0x48] sm:$0xff] %v3869
      %3902 = vst [vmem:[#allocation2 + $0x50] sm:$0xff] %v3870
      %3903 = vst [vmem:[#allocation2 + $0x58] sm:$0xff] %v3871
      %3904 = vst [vmem:[#allocation2 + $0x60] sm:$0xff] %v3872
      %3905 = vst [vmem:[#allocation2 + $0x68] sm:$0xff] %v3873
      %3906 = vst [vmem:[#allocation2 + $0x70] sm:$0xff] %v3874
      %3907 = vst [vmem:[#allocation2 + $0x78] sm:$0xff] %v3875
      %3908 = vst [vmem:[#allocation2 + $0x80] sm:$0xff] %v3876
      %3909 = vst [vmem:[#allocation2 + $0x88] sm:$0xff] %v3877
      %3910 = vst [vmem:[#allocation2 + $0x90] sm:$0xff] %v3878
      %3911 = vst [vmem:[#allocation2 + $0x98] sm:$0xff] %v3879
      %3912 = vst [vmem:[#allocation2 + $0xa0] sm:$0xff] %v3880
      %3913 = vst [vmem:[#allocation2 + $0xa8] sm:$0xff] %v3881
      %3914 = vst [vmem:[#allocation2 + $0xb0] sm:$0xff] %v3882
      %3915 = vst [vmem:[#allocation2 + $0xb8] sm:$0xff] %v3883
      %3916 = vst [vmem:[#allocation2 + $0xc0] sm:$0xff] %v3884
      %3917 = vst [vmem:[#allocation2 + $0xc8] sm:$0xff] %v3885
      %3918 = vst [vmem:[#allocation2 + $0xd0] sm:$0xff] %v3886
      %3919 = vst [vmem:[#allocation2 + $0xd8] sm:$0xff] %v3887
      %3920 = vst [vmem:[#allocation2 + $0xe0] sm:$0xff] %v3888
      %3921 = vst [vmem:[#allocation2 + $0xe8] sm:$0xff] %v3889
      %3922 = vst [vmem:[#allocation2 + $0xf0] sm:$0xff] %v3890
      %3923 = vst [vmem:[#allocation2 + $0xf8] sm:$0xff] %v3891
      %v3924 = vld [vmem:[%s3545] sm:$0xf]
      %v3925 = vld [vmem:[%s3545 + $0x4] sm:$0xf]
      %v3926 = vld [vmem:[%s3545 + $0x8] sm:$0x1]
      %v3927 = vld [vmem:[%s3545 + $0xc] sm:$0xf]
      %v3928 = vld [vmem:[%s3545 + $0x10] sm:$0xf]
      %v3929 = vld [vmem:[%s3545 + $0x14] sm:$0x1]
      %v3930 = vld [vmem:[%s3545 + $0x18] sm:$0xf]
      %v3931 = vld [vmem:[%s3545 + $0x1c] sm:$0xf]
      %v3932 = vld [vmem:[%s3545 + $0x20] sm:$0x1]
      %v3933 = vld [vmem:[%s3545 + $0x24] sm:$0xf]
      %v3934 = vld [vmem:[%s3545 + $0x28] sm:$0xf]
      %v3935 = vld [vmem:[%s3545 + $0x2c] sm:$0x1]
      %v3936 = vld [vmem:[%s3545 + $0x30] sm:$0xf]
      %v3937 = vld [vmem:[%s3545 + $0x34] sm:$0xf]
      %v3938 = vld [vmem:[%s3545 + $0x38] sm:$0x1]
      %v3939 = vld [vmem:[%s3545 + $0x3c] sm:$0xf]
      %v3940 = vld [vmem:[%s3545 + $0x40] sm:$0xf]
      %v3941 = vld [vmem:[%s3545 + $0x44] sm:$0x1]
      %v3942 = vld [vmem:[%s3545 + $0x48] sm:$0xf]
      %v3943 = vld [vmem:[%s3545 + $0x4c] sm:$0xf]
      %v3944 = vld [vmem:[%s3545 + $0x50] sm:$0x1]
      %v3945 = vld [vmem:[%s3545 + $0x54] sm:$0xf]
      %v3946 = vld [vmem:[%s3545 + $0x58] sm:$0xf]
      %v3947 = vld [vmem:[%s3545 + $0x5c] sm:$0x1]
      %v3948 = vld [vmem:[%s3545 + $0x60] sm:$0xf]
      %v3949 = vld [vmem:[%s3545 + $0x64] sm:$0xf]
      %v3950 = vld [vmem:[%s3545 + $0x68] sm:$0x1]
      %v3951 = vld [vmem:[%s3545 + $0x6c] sm:$0xf]
      %v3952 = vld [vmem:[%s3545 + $0x70] sm:$0xf]
      %v3953 = vld [vmem:[%s3545 + $0x74] sm:$0x1]
      %v3954 = vld [vmem:[%s3545 + $0x78] sm:$0xf]
      %v3955 = vld [vmem:[%s3545 + $0x7c] sm:$0xf]
      %v3956 = vld [vmem:[%s3545 + $0x80] sm:$0x1]
      %v3957 = vld [vmem:[%s3545 + $0x84] sm:$0xf]
      %v3958 = vld [vmem:[%s3545 + $0x88] sm:$0xf]
      %v3959 = vld [vmem:[%s3545 + $0x8c] sm:$0x1]
      %v3960 = vld [vmem:[%s3545 + $0x90] sm:$0xf]
      %v3961 = vld [vmem:[%s3545 + $0x94] sm:$0xf]
      %v3962 = vld [vmem:[%s3545 + $0x98] sm:$0x1]
      %v3963 = vld [vmem:[%s3545 + $0x9c] sm:$0xf]
      %v3964 = vld [vmem:[%s3545 + $0xa0] sm:$0xf]
      %v3965 = vld [vmem:[%s3545 + $0xa4] sm:$0x1]
      %v3966 = vld [vmem:[%s3545 + $0xa8] sm:$0xf]
      %v3967 = vld [vmem:[%s3545 + $0xac] sm:$0xf]
      %v3968 = vld [vmem:[%s3545 + $0xb0] sm:$0x1]
      %v3969 = vld [vmem:[%s3545 + $0xb4] sm:$0xf]
      %v3970 = vld [vmem:[%s3545 + $0xb8] sm:$0xf]
      %v3971 = vld [vmem:[%s3545 + $0xbc] sm:$0x1]
      %v3973 = vshrl.u32 %v3924, 16
      %v3975 = vrot.slane %v3973, 4
      %v3976 = vshll.u32 %v3924, 16
      %v3978 = vrot.slane %v3976, 5
      %v3979 = vor.u32 %v3975, %v3978
      %v3980 = vrot.slane %v3979, 4
      %v3982 = vshll.u32 %v3925, 16
      %v3984 = vrot.slane %v3982, 5
      %v3985 = vsel %vm674, %v3980, %v3984
      %v3986 = vshrl.u32 %v3925, 16
      %v3988 = vrot.slane %v3986, 4
      %v3989 = vor.u32 %v3988, %v3984
      %v3990 = vrot.slane %v3989, 4
      %v3992 = vshll.u32 %v3926, 16
      %v3994 = vrot.slane %v3992, 5
      %v3995 = vsel %vm674, %v3990, %v3994
      %v3997 = vshrl.u32 %v3927, 16
      %v3999 = vrot.slane %v3997, 4
      %v4000 = vshll.u32 %v3927, 16
      %v4002 = vrot.slane %v4000, 5
      %v4003 = vor.u32 %v3999, %v4002
      %v4004 = vrot.slane %v4003, 4
      %v4006 = vshll.u32 %v3928, 16
      %v4008 = vrot.slane %v4006, 5
      %v4009 = vsel %vm674, %v4004, %v4008
      %v4010 = vshrl.u32 %v3928, 16
      %v4012 = vrot.slane %v4010, 4
      %v4013 = vor.u32 %v4012, %v4008
      %v4014 = vrot.slane %v4013, 4
      %v4016 = vshll.u32 %v3929, 16
      %v4018 = vrot.slane %v4016, 5
      %v4019 = vsel %vm674, %v4014, %v4018
      %v4021 = vshrl.u32 %v3930, 16
      %v4023 = vrot.slane %v4021, 4
      %v4024 = vshll.u32 %v3930, 16
      %v4026 = vrot.slane %v4024, 5
      %v4027 = vor.u32 %v4023, %v4026
      %v4028 = vrot.slane %v4027, 4
      %v4030 = vshll.u32 %v3931, 16
      %v4032 = vrot.slane %v4030, 5
      %v4033 = vsel %vm674, %v4028, %v4032
      %v4034 = vshrl.u32 %v3931, 16
      %v4036 = vrot.slane %v4034, 4
      %v4037 = vor.u32 %v4036, %v4032
      %v4038 = vrot.slane %v4037, 4
      %v4040 = vshll.u32 %v3932, 16
      %v4042 = vrot.slane %v4040, 5
      %v4043 = vsel %vm674, %v4038, %v4042
      %v4045 = vshrl.u32 %v3933, 16
      %v4047 = vrot.slane %v4045, 4
      %v4048 = vshll.u32 %v3933, 16
      %v4050 = vrot.slane %v4048, 5
      %v4051 = vor.u32 %v4047, %v4050
      %v4052 = vrot.slane %v4051, 4
      %v4054 = vshll.u32 %v3934, 16
      %v4056 = vrot.slane %v4054, 5
      %v4057 = vsel %vm674, %v4052, %v4056
      %v4058 = vshrl.u32 %v3934, 16
      %v4060 = vrot.slane %v4058, 4
      %v4061 = vor.u32 %v4060, %v4056
      %v4062 = vrot.slane %v4061, 4
      %v4064 = vshll.u32 %v3935, 16
      %v4066 = vrot.slane %v4064, 5
      %v4067 = vsel %vm674, %v4062, %v4066
      %v4069 = vshrl.u32 %v3936, 16
      %v4071 = vrot.slane %v4069, 4
      %v4072 = vshll.u32 %v3936, 16
      %v4074 = vrot.slane %v4072, 5
      %v4075 = vor.u32 %v4071, %v4074
      %v4076 = vrot.slane %v4075, 4
      %v4078 = vshll.u32 %v3937, 16
      %v4080 = vrot.slane %v4078, 5
      %v4081 = vsel %vm674, %v4076, %v4080
      %v4082 = vshrl.u32 %v3937, 16
      %v4084 = vrot.slane %v4082, 4
      %v4085 = vor.u32 %v4084, %v4080
      %v4086 = vrot.slane %v4085, 4
      %v4088 = vshll.u32 %v3938, 16
      %v4090 = vrot.slane %v4088, 5
      %v4091 = vsel %vm674, %v4086, %v4090
      %v4093 = vshrl.u32 %v3939, 16
      %v4095 = vrot.slane %v4093, 4
      %v4096 = vshll.u32 %v3939, 16
      %v4098 = vrot.slane %v4096, 5
      %v4099 = vor.u32 %v4095, %v4098
      %v4100 = vrot.slane %v4099, 4
      %v4102 = vshll.u32 %v3940, 16
      %v4104 = vrot.slane %v4102, 5
      %v4105 = vsel %vm674, %v4100, %v4104
      %v4106 = vshrl.u32 %v3940, 16
      %v4108 = vrot.slane %v4106, 4
      %v4109 = vor.u32 %v4108, %v4104
      %v4110 = vrot.slane %v4109, 4
      %v4112 = vshll.u32 %v3941, 16
      %v4114 = vrot.slane %v4112, 5
      %v4115 = vsel %vm674, %v4110, %v4114
      %v4117 = vshrl.u32 %v3942, 16
      %v4119 = vrot.slane %v4117, 4
      %v4120 = vshll.u32 %v3942, 16
      %v4122 = vrot.slane %v4120, 5
      %v4123 = vor.u32 %v4119, %v4122
      %v4124 = vrot.slane %v4123, 4
      %v4126 = vshll.u32 %v3943, 16
      %v4128 = vrot.slane %v4126, 5
      %v4129 = vsel %vm674, %v4124, %v4128
      %v4130 = vshrl.u32 %v3943, 16
      %v4132 = vrot.slane %v4130, 4
      %v4133 = vor.u32 %v4132, %v4128
      %v4134 = vrot.slane %v4133, 4
      %v4136 = vshll.u32 %v3944, 16
      %v4138 = vrot.slane %v4136, 5
      %v4139 = vsel %vm674, %v4134, %v4138
      %v4141 = vshrl.u32 %v3945, 16
      %v4143 = vrot.slane %v4141, 4
      %v4144 = vshll.u32 %v3945, 16
      %v4146 = vrot.slane %v4144, 5
      %v4147 = vor.u32 %v4143, %v4146
      %v4148 = vrot.slane %v4147, 4
      %v4150 = vshll.u32 %v3946, 16
      %v4152 = vrot.slane %v4150, 5
      %v4153 = vsel %vm674, %v4148, %v4152
      %v4154 = vshrl.u32 %v3946, 16
      %v4156 = vrot.slane %v4154, 4
      %v4157 = vor.u32 %v4156, %v4152
      %v4158 = vrot.slane %v4157, 4
      %v4160 = vshll.u32 %v3947, 16
      %v4162 = vrot.slane %v4160, 5
      %v4163 = vsel %vm674, %v4158, %v4162
      %v4165 = vshrl.u32 %v3948, 16
      %v4167 = vrot.slane %v4165, 4
      %v4168 = vshll.u32 %v3948, 16
      %v4170 = vrot.slane %v4168, 5
      %v4171 = vor.u32 %v4167, %v4170
      %v4172 = vrot.slane %v4171, 4
      %v4174 = vshll.u32 %v3949, 16
      %v4176 = vrot.slane %v4174, 5
      %v4177 = vsel %vm674, %v4172, %v4176
      %v4178 = vshrl.u32 %v3949, 16
      %v4180 = vrot.slane %v4178, 4
      %v4181 = vor.u32 %v4180, %v4176
      %v4182 = vrot.slane %v4181, 4
      %v4184 = vshll.u32 %v3950, 16
      %v4186 = vrot.slane %v4184, 5
      %v4187 = vsel %vm674, %v4182, %v4186
      %v4189 = vshrl.u32 %v3951, 16
      %v4191 = vrot.slane %v4189, 4
      %v4192 = vshll.u32 %v3951, 16
      %v4194 = vrot.slane %v4192, 5
      %v4195 = vor.u32 %v4191, %v4194
      %v4196 = vrot.slane %v4195, 4
      %v4198 = vshll.u32 %v3952, 16
      %v4200 = vrot.slane %v4198, 5
      %v4201 = vsel %vm674, %v4196, %v4200
      %v4202 = vshrl.u32 %v3952, 16
      %v4204 = vrot.slane %v4202, 4
      %v4205 = vor.u32 %v4204, %v4200
      %v4206 = vrot.slane %v4205, 4
      %v4208 = vshll.u32 %v3953, 16
      %v4210 = vrot.slane %v4208, 5
      %v4211 = vsel %vm674, %v4206, %v4210
      %v4213 = vshrl.u32 %v3954, 16
      %v4215 = vrot.slane %v4213, 4
      %v4216 = vshll.u32 %v3954, 16
      %v4218 = vrot.slane %v4216, 5
      %v4219 = vor.u32 %v4215, %v4218
      %v4220 = vrot.slane %v4219, 4
      %v4222 = vshll.u32 %v3955, 16
      %v4224 = vrot.slane %v4222, 5
      %v4225 = vsel %vm674, %v4220, %v4224
      %v4226 = vshrl.u32 %v3955, 16
      %v4228 = vrot.slane %v4226, 4
      %v4229 = vor.u32 %v4228, %v4224
      %v4230 = vrot.slane %v4229, 4
      %v4232 = vshll.u32 %v3956, 16
      %v4234 = vrot.slane %v4232, 5
      %v4235 = vsel %vm674, %v4230, %v4234
      %v4237 = vshrl.u32 %v3957, 16
      %v4239 = vrot.slane %v4237, 4
      %v4240 = vshll.u32 %v3957, 16
      %v4242 = vrot.slane %v4240, 5
      %v4243 = vor.u32 %v4239, %v4242
      %v4244 = vrot.slane %v4243, 4
      %v4246 = vshll.u32 %v3958, 16
      %v4248 = vrot.slane %v4246, 5
      %v4249 = vsel %vm674, %v4244, %v4248
      %v4250 = vshrl.u32 %v3958, 16
      %v4252 = vrot.slane %v4250, 4
      %v4253 = vor.u32 %v4252, %v4248
      %v4254 = vrot.slane %v4253, 4
      %v4256 = vshll.u32 %v3959, 16
      %v4258 = vrot.slane %v4256, 5
      %v4259 = vsel %vm674, %v4254, %v4258
      %v4261 = vshrl.u32 %v3960, 16
      %v4263 = vrot.slane %v4261, 4
      %v4264 = vshll.u32 %v3960, 16
      %v4266 = vrot.slane %v4264, 5
      %v4267 = vor.u32 %v4263, %v4266
      %v4268 = vrot.slane %v4267, 4
      %v4270 = vshll.u32 %v3961, 16
      %v4272 = vrot.slane %v4270, 5
      %v4273 = vsel %vm674, %v4268, %v4272
      %v4274 = vshrl.u32 %v3961, 16
      %v4276 = vrot.slane %v4274, 4
      %v4277 = vor.u32 %v4276, %v4272
      %v4278 = vrot.slane %v4277, 4
      %v4280 = vshll.u32 %v3962, 16
      %v4282 = vrot.slane %v4280, 5
      %v4283 = vsel %vm674, %v4278, %v4282
      %v4285 = vshrl.u32 %v3963, 16
      %v4287 = vrot.slane %v4285, 4
      %v4288 = vshll.u32 %v3963, 16
      %v4290 = vrot.slane %v4288, 5
      %v4291 = vor.u32 %v4287, %v4290
      %v4292 = vrot.slane %v4291, 4
      %v4294 = vshll.u32 %v3964, 16
      %v4296 = vrot.slane %v4294, 5
      %v4297 = vsel %vm674, %v4292, %v4296
      %v4298 = vshrl.u32 %v3964, 16
      %v4300 = vrot.slane %v4298, 4
      %v4301 = vor.u32 %v4300, %v4296
      %v4302 = vrot.slane %v4301, 4
      %v4304 = vshll.u32 %v3965, 16
      %v4306 = vrot.slane %v4304, 5
      %v4307 = vsel %vm674, %v4302, %v4306
      %v4309 = vshrl.u32 %v3966, 16
      %v4311 = vrot.slane %v4309, 4
      %v4312 = vshll.u32 %v3966, 16
      %v4314 = vrot.slane %v4312, 5
      %v4315 = vor.u32 %v4311, %v4314
      %v4316 = vrot.slane %v4315, 4
      %v4318 = vshll.u32 %v3967, 16
      %v4320 = vrot.slane %v4318, 5
      %v4321 = vsel %vm674, %v4316, %v4320
      %v4322 = vshrl.u32 %v3967, 16
      %v4324 = vrot.slane %v4322, 4
      %v4325 = vor.u32 %v4324, %v4320
      %v4326 = vrot.slane %v4325, 4
      %v4328 = vshll.u32 %v3968, 16
      %v4330 = vrot.slane %v4328, 5
      %v4331 = vsel %vm674, %v4326, %v4330
      %v4333 = vshrl.u32 %v3969, 16
      %v4335 = vrot.slane %v4333, 4
      %v4336 = vshll.u32 %v3969, 16
      %v4338 = vrot.slane %v4336, 5
      %v4339 = vor.u32 %v4335, %v4338
      %v4340 = vrot.slane %v4339, 4
      %v4342 = vshll.u32 %v3970, 16
      %v4344 = vrot.slane %v4342, 5
      %v4345 = vsel %vm674, %v4340, %v4344
      %v4346 = vshrl.u32 %v3970, 16
      %v4348 = vrot.slane %v4346, 4
      %v4349 = vor.u32 %v4348, %v4344
      %v4350 = vrot.slane %v4349, 4
      %v4352 = vshll.u32 %v3971, 16
      %v4354 = vrot.slane %v4352, 5
      %v4355 = vsel %vm674, %v4350, %v4354
      %v4356 = vld [vmem:[#allocation2] sm:$0xff]
      %v4357 = vld [vmem:[#allocation2 + $0x8] sm:$0xff]
      %v4358 = vld [vmem:[#allocation2 + $0x10] sm:$0xff]
      %v4359 = vld [vmem:[#allocation2 + $0x18] sm:$0xff]
      %v4360 = vld [vmem:[#allocation2 + $0x20] sm:$0xff]
      %v4361 = vld [vmem:[#allocation2 + $0x28] sm:$0xff]
      %v4362 = vld [vmem:[#allocation2 + $0x30] sm:$0xff]
      %v4363 = vld [vmem:[#allocation2 + $0x38] sm:$0xff]
      %v4364 = vld [vmem:[#allocation2 + $0x40] sm:$0xff]
      %v4365 = vld [vmem:[#allocation2 + $0x48] sm:$0xff]
      %v4366 = vld [vmem:[#allocation2 + $0x50] sm:$0xff]
      %v4367 = vld [vmem:[#allocation2 + $0x58] sm:$0xff]
      %v4368 = vld [vmem:[#allocation2 + $0x60] sm:$0xff]
      %v4369 = vld [vmem:[#allocation2 + $0x68] sm:$0xff]
      %v4370 = vld [vmem:[#allocation2 + $0x70] sm:$0xff]
      %v4371 = vld [vmem:[#allocation2 + $0x78] sm:$0xff]
      %v4372 = vld [vmem:[#allocation2 + $0x80] sm:$0xff]
      %v4373 = vld [vmem:[#allocation2 + $0x88] sm:$0xff]
      %v4374 = vld [vmem:[#allocation2 + $0x90] sm:$0xff]
      %v4375 = vld [vmem:[#allocation2 + $0x98] sm:$0xff]
      %v4376 = vld [vmem:[#allocation2 + $0xa0] sm:$0xff]
      %v4377 = vld [vmem:[#allocation2 + $0xa8] sm:$0xff]
      %v4378 = vld [vmem:[#allocation2 + $0xb0] sm:$0xff]
      %v4379 = vld [vmem:[#allocation2 + $0xb8] sm:$0xff]
      %v4380 = vld [vmem:[#allocation2 + $0xc0] sm:$0xff]
      %v4381 = vld [vmem:[#allocation2 + $0xc8] sm:$0xff]
      %v4382 = vld [vmem:[#allocation2 + $0xd0] sm:$0xff]
      %v4383 = vld [vmem:[#allocation2 + $0xd8] sm:$0xff]
      %v4384 = vld [vmem:[#allocation2 + $0xe0] sm:$0xff]
      %v4385 = vld [vmem:[#allocation2 + $0xe8] sm:$0xff]
      %v4386 = vld [vmem:[#allocation2 + $0xf0] sm:$0xff]
      %v4387 = vld [vmem:[#allocation2 + $0xf8] sm:$0xff]
      %s4388 = scalar_lea.vmem %s1, 448
      %v4389 = vld [vmem:[%s4388] sm:$0xf]
      %v4390 = vld [vmem:[%s4388 + $0x4] sm:$0xf]
      %v4391 = vld [vmem:[%s4388 + $0x8] sm:$0xf]
      %v4392 = vld [vmem:[%s4388 + $0xc] sm:$0xf]
      %v4393 = vld [vmem:[%s4388 + $0x10] sm:$0xf]
      %v4394 = vld [vmem:[%s4388 + $0x14] sm:$0xf]
      %v4395 = vld [vmem:[%s4388 + $0x18] sm:$0xf]
      %v4396 = vld [vmem:[%s4388 + $0x1c] sm:$0xf]
      %v4397 = vld [vmem:[%s4388 + $0x20] sm:$0xf]
      %v4398 = vld [vmem:[%s4388 + $0x24] sm:$0xf]
      %v4399 = vld [vmem:[%s4388 + $0x28] sm:$0xf]
      %v4400 = vld [vmem:[%s4388 + $0x2c] sm:$0xf]
      %v4401 = vld [vmem:[%s4388 + $0x30] sm:$0xf]
      %v4402 = vld [vmem:[%s4388 + $0x34] sm:$0xf]
      %v4403 = vld [vmem:[%s4388 + $0x38] sm:$0xf]
      %v4404 = vld [vmem:[%s4388 + $0x3c] sm:$0xf]
      %v4405 = vunpack.c.l.b16 %v3985
      %v4406 = vunpack.c.l.b16 %v3995
      %v4407 = vunpack.c.l.b16 %v4009
      %v4408 = vunpack.c.l.b16 %v4019
      %v4409 = vunpack.c.l.b16 %v4033
      %v4410 = vunpack.c.l.b16 %v4043
      %v4411 = vunpack.c.l.b16 %v4057
      %v4412 = vunpack.c.l.b16 %v4067
      %v4413 = vunpack.c.l.b16 %v4081
      %v4414 = vunpack.c.l.b16 %v4091
      %v4415 = vunpack.c.l.b16 %v4105
      %v4416 = vunpack.c.l.b16 %v4115
      %v4417 = vunpack.c.l.b16 %v4129
      %v4418 = vunpack.c.l.b16 %v4139
      %v4419 = vunpack.c.l.b16 %v4153
      %v4420 = vunpack.c.l.b16 %v4163
      %v4421 = vunpack.c.l.b16 %v4177
      %v4422 = vunpack.c.l.b16 %v4187
      %v4423 = vunpack.c.l.b16 %v4201
      %v4424 = vunpack.c.l.b16 %v4211
      %v4425 = vunpack.c.l.b16 %v4225
      %v4426 = vunpack.c.l.b16 %v4235
      %v4427 = vunpack.c.l.b16 %v4249
      %v4428 = vunpack.c.l.b16 %v4259
      %v4429 = vunpack.c.l.b16 %v4273
      %v4430 = vunpack.c.l.b16 %v4283
      %v4431 = vunpack.c.l.b16 %v4297
      %v4432 = vunpack.c.l.b16 %v4307
      %v4433 = vunpack.c.l.b16 %v4321
      %v4434 = vunpack.c.l.b16 %v4331
      %v4435 = vunpack.c.l.b16 %v4345
      %v4436 = vunpack.c.l.b16 %v4355
      %v4437 = vpack.c.b16 %v4406, %v4405
      %v4438 = vpack.c.b16 %v4408, %v4407
      %v4439 = vpack.c.b16 %v4410, %v4409
      %v4440 = vpack.c.b16 %v4412, %v4411
      %v4441 = vpack.c.b16 %v4414, %v4413
      %v4442 = vpack.c.b16 %v4416, %v4415
      %v4443 = vpack.c.b16 %v4418, %v4417
      %v4444 = vpack.c.b16 %v4420, %v4419
      %v4445 = vpack.c.b16 %v4422, %v4421
      %v4446 = vpack.c.b16 %v4424, %v4423
      %v4447 = vpack.c.b16 %v4426, %v4425
      %v4448 = vpack.c.b16 %v4428, %v4427
      %v4449 = vpack.c.b16 %v4430, %v4429
      %v4450 = vpack.c.b16 %v4432, %v4431
      %v4451 = vpack.c.b16 %v4434, %v4433
      %v4452 = vpack.c.b16 %v4436, %v4435
      %v4485 = vunpack.c.l.b16 %v4389
      %v4486 = vunpack.c.l.b16 %v4390
      %v4487 = vunpack.c.l.b16 %v4391
      %v4488 = vunpack.c.l.b16 %v4392
      %v4489 = vunpack.c.l.b16 %v4393
      %v4490 = vunpack.c.l.b16 %v4394
      %v4491 = vunpack.c.l.b16 %v4395
      %v4492 = vunpack.c.l.b16 %v4396
      %v4493 = vunpack.c.l.b16 %v4397
      %v4494 = vunpack.c.l.b16 %v4398
      %v4495 = vunpack.c.l.b16 %v4399
      %v4496 = vunpack.c.l.b16 %v4400
      %v4497 = vunpack.c.l.b16 %v4401
      %v4498 = vunpack.c.l.b16 %v4402
      %v4499 = vunpack.c.l.b16 %v4403
      %v4500 = vunpack.c.l.b16 %v4404
      %v4501 = vpack.c.b16 %v4486, %v4485
      %v4502 = vpack.c.b16 %v4488, %v4487
      %v4503 = vpack.c.b16 %v4490, %v4489
      %v4504 = vpack.c.b16 %v4492, %v4491
      %v4505 = vpack.c.b16 %v4494, %v4493
      %v4506 = vpack.c.b16 %v4496, %v4495
      %v4507 = vpack.c.b16 %v4498, %v4497
      %v4508 = vpack.c.b16 %v4500, %v4499
      %4517 = vmatpush.bf16.msra.mxu0 %v4508
      %4518 = vmatpush.bf16.msra.mxu0 %v4507
      %4519 = vmatpush.bf16.msra.mxu0 %v4506
      %4520 = vmatpush.bf16.msra.mxu0 %v4505
      %4521 = vmatpush.bf16.msra.mxu0 %v4504
      %4522 = vmatpush.bf16.msra.mxu0 %v4503
      %4523 = vmatpush.bf16.msra.mxu0 %v4502
      %4524 = vmatpush.bf16.msra.mxu0 %v4501
      %4525 = vmatmul.bf16.gmra.mxu0 %v4437
      %v4526 = vpop.f32.mrf.mxu0
      %v4527 = vadd.f32 0.0, %v4526
      %v4528 = vpop.f32.mrf.mxu0
      %v4529 = vadd.f32 0.0, %v4528
      %4530 = vmatmul.bf16.gmra.mxu0 %v4438
      %v4531 = vpop.f32.mrf.mxu0
      %v4532 = vadd.f32 0.0, %v4531
      %v4533 = vpop.f32.mrf.mxu0
      %v4534 = vadd.f32 0.0, %v4533
      %4535 = vmatmul.bf16.gmra.mxu0 %v4439
      %v4536 = vpop.f32.mrf.mxu0
      %v4537 = vadd.f32 0.0, %v4536
      %v4538 = vpop.f32.mrf.mxu0
      %v4539 = vadd.f32 0.0, %v4538
      %4540 = vmatmul.bf16.gmra.mxu0 %v4440
      %v4541 = vpop.f32.mrf.mxu0
      %v4542 = vadd.f32 0.0, %v4541
      %v4543 = vpop.f32.mrf.mxu0
      %v4544 = vadd.f32 0.0, %v4543
      %4545 = vmatmul.bf16.gmra.mxu0 %v4441
      %v4546 = vpop.f32.mrf.mxu0
      %v4547 = vadd.f32 0.0, %v4546
      %v4548 = vpop.f32.mrf.mxu0
      %v4549 = vadd.f32 0.0, %v4548
      %4550 = vmatmul.bf16.gmra.mxu0 %v4442
      %v4551 = vpop.f32.mrf.mxu0
      %v4552 = vadd.f32 0.0, %v4551
      %v4553 = vpop.f32.mrf.mxu0
      %v4554 = vadd.f32 0.0, %v4553
      %4555 = vmatmul.bf16.gmra.mxu0 %v4443
      %v4556 = vpop.f32.mrf.mxu0
      %v4557 = vadd.f32 0.0, %v4556
      %v4558 = vpop.f32.mrf.mxu0
      %v4559 = vadd.f32 0.0, %v4558
      %4560 = vmatmul.bf16.gmra.mxu0 %v4444
      %v4561 = vpop.f32.mrf.mxu0
      %v4562 = vadd.f32 0.0, %v4561
      %v4563 = vpop.f32.mrf.mxu0
      %v4564 = vadd.f32 0.0, %v4563
      %4565 = vmatmul.bf16.gmra.mxu0 %v4445
      %v4566 = vpop.f32.mrf.mxu0
      %v4567 = vadd.f32 0.0, %v4566
      %v4568 = vpop.f32.mrf.mxu0
      %v4569 = vadd.f32 0.0, %v4568
      %4570 = vmatmul.bf16.gmra.mxu0 %v4446
      %v4571 = vpop.f32.mrf.mxu0
      %v4572 = vadd.f32 0.0, %v4571
      %v4573 = vpop.f32.mrf.mxu0
      %v4574 = vadd.f32 0.0, %v4573
      %4575 = vmatmul.bf16.gmra.mxu0 %v4447
      %v4576 = vpop.f32.mrf.mxu0
      %v4577 = vadd.f32 0.0, %v4576
      %v4578 = vpop.f32.mrf.mxu0
      %v4579 = vadd.f32 0.0, %v4578
      %4580 = vmatmul.bf16.gmra.mxu0 %v4448
      %v4581 = vpop.f32.mrf.mxu0
      %v4582 = vadd.f32 0.0, %v4581
      %v4583 = vpop.f32.mrf.mxu0
      %v4584 = vadd.f32 0.0, %v4583
      %4585 = vmatmul.bf16.gmra.mxu0 %v4449
      %v4586 = vpop.f32.mrf.mxu0
      %v4587 = vadd.f32 0.0, %v4586
      %v4588 = vpop.f32.mrf.mxu0
      %v4589 = vadd.f32 0.0, %v4588
      %4590 = vmatmul.bf16.gmra.mxu0 %v4450
      %v4591 = vpop.f32.mrf.mxu0
      %v4592 = vadd.f32 0.0, %v4591
      %v4593 = vpop.f32.mrf.mxu0
      %v4594 = vadd.f32 0.0, %v4593
      %4595 = vmatmul.bf16.gmra.mxu0 %v4451
      %v4596 = vpop.f32.mrf.mxu0
      %v4597 = vadd.f32 0.0, %v4596
      %v4598 = vpop.f32.mrf.mxu0
      %v4599 = vadd.f32 0.0, %v4598
      %4600 = vmatmul.bf16.gmra.mxu0 %v4452
      %v4601 = vpop.f32.mrf.mxu0
      %v4602 = vadd.f32 0.0, %v4601
      %v4603 = vpop.f32.mrf.mxu0
      %v4604 = vadd.f32 0.0, %v4603
      %4605 = vdwg.mxu0
      %v4606 = vadd.f32 %v4356, %v4527
      %v4607 = vadd.f32 %v4357, %v4529
      %v4608 = vadd.f32 %v4358, %v4532
      %v4609 = vadd.f32 %v4359, %v4534
      %v4610 = vadd.f32 %v4360, %v4537
      %v4611 = vadd.f32 %v4361, %v4539
      %v4612 = vadd.f32 %v4362, %v4542
      %v4613 = vadd.f32 %v4363, %v4544
      %v4614 = vadd.f32 %v4364, %v4547
      %v4615 = vadd.f32 %v4365, %v4549
      %v4616 = vadd.f32 %v4366, %v4552
      %v4617 = vadd.f32 %v4367, %v4554
      %v4618 = vadd.f32 %v4368, %v4557
      %v4619 = vadd.f32 %v4369, %v4559
      %v4620 = vadd.f32 %v4370, %v4562
      %v4621 = vadd.f32 %v4371, %v4564
      %v4622 = vadd.f32 %v4372, %v4567
      %v4623 = vadd.f32 %v4373, %v4569
      %v4624 = vadd.f32 %v4374, %v4572
      %v4625 = vadd.f32 %v4375, %v4574
      %v4626 = vadd.f32 %v4376, %v4577
      %v4627 = vadd.f32 %v4377, %v4579
      %v4628 = vadd.f32 %v4378, %v4582
      %v4629 = vadd.f32 %v4379, %v4584
      %v4630 = vadd.f32 %v4380, %v4587
      %v4631 = vadd.f32 %v4381, %v4589
      %v4632 = vadd.f32 %v4382, %v4592
      %v4633 = vadd.f32 %v4383, %v4594
      %v4634 = vadd.f32 %v4384, %v4597
      %v4635 = vadd.f32 %v4385, %v4599
      %v4636 = vadd.f32 %v4386, %v4602
      %v4637 = vadd.f32 %v4387, %v4604
      %4638 = vst [vmem:[#allocation2] sm:$0xff] %v4606
      %4639 = vst [vmem:[#allocation2 + $0x8] sm:$0xff] %v4607
      %4640 = vst [vmem:[#allocation2 + $0x10] sm:$0xff] %v4608
      %4641 = vst [vmem:[#allocation2 + $0x18] sm:$0xff] %v4609
      %4642 = vst [vmem:[#allocation2 + $0x20] sm:$0xff] %v4610
      %4643 = vst [vmem:[#allocation2 + $0x28] sm:$0xff] %v4611
      %4644 = vst [vmem:[#allocation2 + $0x30] sm:$0xff] %v4612
      %4645 = vst [vmem:[#allocation2 + $0x38] sm:$0xff] %v4613
      %4646 = vst [vmem:[#allocation2 + $0x40] sm:$0xff] %v4614
      %4647 = vst [vmem:[#allocation2 + $0x48] sm:$0xff] %v4615
      %4648 = vst [vmem:[#allocation2 + $0x50] sm:$0xff] %v4616
      %4649 = vst [vmem:[#allocation2 + $0x58] sm:$0xff] %v4617
      %4650 = vst [vmem:[#allocation2 + $0x60] sm:$0xff] %v4618
      %4651 = vst [vmem:[#allocation2 + $0x68] sm:$0xff] %v4619
      %4652 = vst [vmem:[#allocation2 + $0x70] sm:$0xff] %v4620
      %4653 = vst [vmem:[#allocation2 + $0x78] sm:$0xff] %v4621
      %4654 = vst [vmem:[#allocation2 + $0x80] sm:$0xff] %v4622
      %4655 = vst [vmem:[#allocation2 + $0x88] sm:$0xff] %v4623
      %4656 = vst [vmem:[#allocation2 + $0x90] sm:$0xff] %v4624
      %4657 = vst [vmem:[#allocation2 + $0x98] sm:$0xff] %v4625
      %4658 = vst [vmem:[#allocation2 + $0xa0] sm:$0xff] %v4626
      %4659 = vst [vmem:[#allocation2 + $0xa8] sm:$0xff] %v4627
      %4660 = vst [vmem:[#allocation2 + $0xb0] sm:$0xff] %v4628
      %4661 = vst [vmem:[#allocation2 + $0xb8] sm:$0xff] %v4629
      %4662 = vst [vmem:[#allocation2 + $0xc0] sm:$0xff] %v4630
      %4663 = vst [vmem:[#allocation2 + $0xc8] sm:$0xff] %v4631
      %4664 = vst [vmem:[#allocation2 + $0xd0] sm:$0xff] %v4632
      %4665 = vst [vmem:[#allocation2 + $0xd8] sm:$0xff] %v4633
      %4666 = vst [vmem:[#allocation2 + $0xe0] sm:$0xff] %v4634
      %4667 = vst [vmem:[#allocation2 + $0xe8] sm:$0xff] %v4635
      %4668 = vst [vmem:[#allocation2 + $0xf0] sm:$0xff] %v4636
      %4669 = vst [vmem:[#allocation2 + $0xf8] sm:$0xff] %v4637
      %v4670 = vld [vmem:[%s3545] sm:$0xe]
      %v4671 = vld [vmem:[%s3545 + $0x4] sm:$0xf]
      %v4672 = vld [vmem:[%s3545 + $0x8] sm:$0x1]
      %v4673 = vld [vmem:[%s3545 + $0xc] sm:$0xe]
      %v4674 = vld [vmem:[%s3545 + $0x10] sm:$0xf]
      %v4675 = vld [vmem:[%s3545 + $0x14] sm:$0x1]
      %v4676 = vld [vmem:[%s3545 + $0x18] sm:$0xe]
      %v4677 = vld [vmem:[%s3545 + $0x1c] sm:$0xf]
      %v4678 = vld [vmem:[%s3545 + $0x20] sm:$0x1]
      %v4679 = vld [vmem:[%s3545 + $0x24] sm:$0xe]
      %v4680 = vld [vmem:[%s3545 + $0x28] sm:$0xf]
      %v4681 = vld [vmem:[%s3545 + $0x2c] sm:$0x1]
      %v4682 = vld [vmem:[%s3545 + $0x30] sm:$0xe]
      %v4683 = vld [vmem:[%s3545 + $0x34] sm:$0xf]
      %v4684 = vld [vmem:[%s3545 + $0x38] sm:$0x1]
      %v4685 = vld [vmem:[%s3545 + $0x3c] sm:$0xe]
      %v4686 = vld [vmem:[%s3545 + $0x40] sm:$0xf]
      %v4687 = vld [vmem:[%s3545 + $0x44] sm:$0x1]
      %v4688 = vld [vmem:[%s3545 + $0x48] sm:$0xe]
      %v4689 = vld [vmem:[%s3545 + $0x4c] sm:$0xf]
      %v4690 = vld [vmem:[%s3545 + $0x50] sm:$0x1]
      %v4691 = vld [vmem:[%s3545 + $0x54] sm:$0xe]
      %v4692 = vld [vmem:[%s3545 + $0x58] sm:$0xf]
      %v4693 = vld [vmem:[%s3545 + $0x5c] sm:$0x1]
      %v4694 = vld [vmem:[%s3545 + $0x60] sm:$0xe]
      %v4695 = vld [vmem:[%s3545 + $0x64] sm:$0xf]
      %v4696 = vld [vmem:[%s3545 + $0x68] sm:$0x1]
      %v4697 = vld [vmem:[%s3545 + $0x6c] sm:$0xe]
      %v4698 = vld [vmem:[%s3545 + $0x70] sm:$0xf]
      %v4699 = vld [vmem:[%s3545 + $0x74] sm:$0x1]
      %v4700 = vld [vmem:[%s3545 + $0x78] sm:$0xe]
      %v4701 = vld [vmem:[%s3545 + $0x7c] sm:$0xf]
      %v4702 = vld [vmem:[%s3545 + $0x80] sm:$0x1]
      %v4703 = vld [vmem:[%s3545 + $0x84] sm:$0xe]
      %v4704 = vld [vmem:[%s3545 + $0x88] sm:$0xf]
      %v4705 = vld [vmem:[%s3545 + $0x8c] sm:$0x1]
      %v4706 = vld [vmem:[%s3545 + $0x90] sm:$0xe]
      %v4707 = vld [vmem:[%s3545 + $0x94] sm:$0xf]
      %v4708 = vld [vmem:[%s3545 + $0x98] sm:$0x1]
      %v4709 = vld [vmem:[%s3545 + $0x9c] sm:$0xe]
      %v4710 = vld [vmem:[%s3545 + $0xa0] sm:$0xf]
      %v4711 = vld [vmem:[%s3545 + $0xa4] sm:$0x1]
      %v4712 = vld [vmem:[%s3545 + $0xa8] sm:$0xe]
      %v4713 = vld [vmem:[%s3545 + $0xac] sm:$0xf]
      %v4714 = vld [vmem:[%s3545 + $0xb0] sm:$0x1]
      %v4715 = vld [vmem:[%s3545 + $0xb4] sm:$0xe]
      %v4716 = vld [vmem:[%s3545 + $0xb8] sm:$0xf]
      %v4717 = vld [vmem:[%s3545 + $0xbc] sm:$0x1]
      %v4766 = vrot.slane %v4670, 5
      %v4767 = vrot.slane %v4766, 4
      %v4768 = vrot.slane %v4671, 5
      %v4769 = vsel %vm1471, %v4767, %v4768
      %v4770 = vrot.slane %v4768, 4
      %v4771 = vrot.slane %v4672, 5
      %v4772 = vsel %vm1471, %v4770, %v4771
      %v4773 = vrot.slane %v4673, 5
      %v4774 = vrot.slane %v4773, 4
      %v4775 = vrot.slane %v4674, 5
      %v4776 = vsel %vm1471, %v4774, %v4775
      %v4777 = vrot.slane %v4775, 4
      %v4778 = vrot.slane %v4675, 5
      %v4779 = vsel %vm1471, %v4777, %v4778
      %v4780 = vrot.slane %v4676, 5
      %v4781 = vrot.slane %v4780, 4
      %v4782 = vrot.slane %v4677, 5
      %v4783 = vsel %vm1471, %v4781, %v4782
      %v4784 = vrot.slane %v4782, 4
      %v4785 = vrot.slane %v4678, 5
      %v4786 = vsel %vm1471, %v4784, %v4785
      %v4787 = vrot.slane %v4679, 5
      %v4788 = vrot.slane %v4787, 4
      %v4789 = vrot.slane %v4680, 5
      %v4790 = vsel %vm1471, %v4788, %v4789
      %v4791 = vrot.slane %v4789, 4
      %v4792 = vrot.slane %v4681, 5
      %v4793 = vsel %vm1471, %v4791, %v4792
      %v4794 = vrot.slane %v4682, 5
      %v4795 = vrot.slane %v4794, 4
      %v4796 = vrot.slane %v4683, 5
      %v4797 = vsel %vm1471, %v4795, %v4796
      %v4798 = vrot.slane %v4796, 4
      %v4799 = vrot.slane %v4684, 5
      %v4800 = vsel %vm1471, %v4798, %v4799
      %v4801 = vrot.slane %v4685, 5
      %v4802 = vrot.slane %v4801, 4
      %v4803 = vrot.slane %v4686, 5
      %v4804 = vsel %vm1471, %v4802, %v4803
      %v4805 = vrot.slane %v4803, 4
      %v4806 = vrot.slane %v4687, 5
      %v4807 = vsel %vm1471, %v4805, %v4806
      %v4808 = vrot.slane %v4688, 5
      %v4809 = vrot.slane %v4808, 4
      %v4810 = vrot.slane %v4689, 5
      %v4811 = vsel %vm1471, %v4809, %v4810
      %v4812 = vrot.slane %v4810, 4
      %v4813 = vrot.slane %v4690, 5
      %v4814 = vsel %vm1471, %v4812, %v4813
      %v4815 = vrot.slane %v4691, 5
      %v4816 = vrot.slane %v4815, 4
      %v4817 = vrot.slane %v4692, 5
      %v4818 = vsel %vm1471, %v4816, %v4817
      %v4819 = vrot.slane %v4817, 4
      %v4820 = vrot.slane %v4693, 5
      %v4821 = vsel %vm1471, %v4819, %v4820
      %v4822 = vrot.slane %v4694, 5
      %v4823 = vrot.slane %v4822, 4
      %v4824 = vrot.slane %v4695, 5
      %v4825 = vsel %vm1471, %v4823, %v4824
      %v4826 = vrot.slane %v4824, 4
      %v4827 = vrot.slane %v4696, 5
      %v4828 = vsel %vm1471, %v4826, %v4827
      %v4829 = vrot.slane %v4697, 5
      %v4830 = vrot.slane %v4829, 4
      %v4831 = vrot.slane %v4698, 5
      %v4832 = vsel %vm1471, %v4830, %v4831
      %v4833 = vrot.slane %v4831, 4
      %v4834 = vrot.slane %v4699, 5
      %v4835 = vsel %vm1471, %v4833, %v4834
      %v4836 = vrot.slane %v4700, 5
      %v4837 = vrot.slane %v4836, 4
      %v4838 = vrot.slane %v4701, 5
      %v4839 = vsel %vm1471, %v4837, %v4838
      %v4840 = vrot.slane %v4838, 4
      %v4841 = vrot.slane %v4702, 5
      %v4842 = vsel %vm1471, %v4840, %v4841
      %v4843 = vrot.slane %v4703, 5
      %v4844 = vrot.slane %v4843, 4
      %v4845 = vrot.slane %v4704, 5
      %v4846 = vsel %vm1471, %v4844, %v4845
      %v4847 = vrot.slane %v4845, 4
      %v4848 = vrot.slane %v4705, 5
      %v4849 = vsel %vm1471, %v4847, %v4848
      %v4850 = vrot.slane %v4706, 5
      %v4851 = vrot.slane %v4850, 4
      %v4852 = vrot.slane %v4707, 5
      %v4853 = vsel %vm1471, %v4851, %v4852
      %v4854 = vrot.slane %v4852, 4
      %v4855 = vrot.slane %v4708, 5
      %v4856 = vsel %vm1471, %v4854, %v4855
      %v4857 = vrot.slane %v4709, 5
      %v4858 = vrot.slane %v4857, 4
      %v4859 = vrot.slane %v4710, 5
      %v4860 = vsel %vm1471, %v4858, %v4859
      %v4861 = vrot.slane %v4859, 4
      %v4862 = vrot.slane %v4711, 5
      %v4863 = vsel %vm1471, %v4861, %v4862
      %v4864 = vrot.slane %v4712, 5
      %v4865 = vrot.slane %v4864, 4
      %v4866 = vrot.slane %v4713, 5
      %v4867 = vsel %vm1471, %v4865, %v4866
      %v4868 = vrot.slane %v4866, 4
      %v4869 = vrot.slane %v4714, 5
      %v4870 = vsel %vm1471, %v4868, %v4869
      %v4871 = vrot.slane %v4715, 5
      %v4872 = vrot.slane %v4871, 4
      %v4873 = vrot.slane %v4716, 5
      %v4874 = vsel %vm1471, %v4872, %v4873
      %v4875 = vrot.slane %v4873, 4
      %v4876 = vrot.slane %v4717, 5
      %v4877 = vsel %vm1471, %v4875, %v4876
      %v4878 = vld [vmem:[#allocation2] sm:$0xff]
      %v4879 = vld [vmem:[#allocation2 + $0x8] sm:$0xff]
      %v4880 = vld [vmem:[#allocation2 + $0x10] sm:$0xff]
      %v4881 = vld [vmem:[#allocation2 + $0x18] sm:$0xff]
      %v4882 = vld [vmem:[#allocation2 + $0x20] sm:$0xff]
      %v4883 = vld [vmem:[#allocation2 + $0x28] sm:$0xff]
      %v4884 = vld [vmem:[#allocation2 + $0x30] sm:$0xff]
      %v4885 = vld [vmem:[#allocation2 + $0x38] sm:$0xff]
      %v4886 = vld [vmem:[#allocation2 + $0x40] sm:$0xff]
      %v4887 = vld [vmem:[#allocation2 + $0x48] sm:$0xff]
      %v4888 = vld [vmem:[#allocation2 + $0x50] sm:$0xff]
      %v4889 = vld [vmem:[#allocation2 + $0x58] sm:$0xff]
      %v4890 = vld [vmem:[#allocation2 + $0x60] sm:$0xff]
      %v4891 = vld [vmem:[#allocation2 + $0x68] sm:$0xff]
      %v4892 = vld [vmem:[#allocation2 + $0x70] sm:$0xff]
      %v4893 = vld [vmem:[#allocation2 + $0x78] sm:$0xff]
      %v4894 = vld [vmem:[#allocation2 + $0x80] sm:$0xff]
      %v4895 = vld [vmem:[#allocation2 + $0x88] sm:$0xff]
      %v4896 = vld [vmem:[#allocation2 + $0x90] sm:$0xff]
      %v4897 = vld [vmem:[#allocation2 + $0x98] sm:$0xff]
      %v4898 = vld [vmem:[#allocation2 + $0xa0] sm:$0xff]
      %v4899 = vld [vmem:[#allocation2 + $0xa8] sm:$0xff]
      %v4900 = vld [vmem:[#allocation2 + $0xb0] sm:$0xff]
      %v4901 = vld [vmem:[#allocation2 + $0xb8] sm:$0xff]
      %v4902 = vld [vmem:[#allocation2 + $0xc0] sm:$0xff]
      %v4903 = vld [vmem:[#allocation2 + $0xc8] sm:$0xff]
      %v4904 = vld [vmem:[#allocation2 + $0xd0] sm:$0xff]
      %v4905 = vld [vmem:[#allocation2 + $0xd8] sm:$0xff]
      %v4906 = vld [vmem:[#allocation2 + $0xe0] sm:$0xff]
      %v4907 = vld [vmem:[#allocation2 + $0xe8] sm:$0xff]
      %v4908 = vld [vmem:[#allocation2 + $0xf0] sm:$0xff]
      %v4909 = vld [vmem:[#allocation2 + $0xf8] sm:$0xff]
      %s4910 = scalar_lea.vmem %s1, 512
      %v4911 = vld [vmem:[%s4910] sm:$0xf]
      %v4912 = vld [vmem:[%s4910 + $0x4] sm:$0xf]
      %v4913 = vld [vmem:[%s4910 + $0x8] sm:$0xf]
      %v4914 = vld [vmem:[%s4910 + $0xc] sm:$0xf]
      %v4915 = vld [vmem:[%s4910 + $0x10] sm:$0xf]
      %v4916 = vld [vmem:[%s4910 + $0x14] sm:$0xf]
      %v4917 = vld [vmem:[%s4910 + $0x18] sm:$0xf]
      %v4918 = vld [vmem:[%s4910 + $0x1c] sm:$0xf]
      %v4919 = vld [vmem:[%s4910 + $0x20] sm:$0xf]
      %v4920 = vld [vmem:[%s4910 + $0x24] sm:$0xf]
      %v4921 = vld [vmem:[%s4910 + $0x28] sm:$0xf]
      %v4922 = vld [vmem:[%s4910 + $0x2c] sm:$0xf]
      %v4923 = vld [vmem:[%s4910 + $0x30] sm:$0xf]
      %v4924 = vld [vmem:[%s4910 + $0x34] sm:$0xf]
      %v4925 = vld [vmem:[%s4910 + $0x38] sm:$0xf]
      %v4926 = vld [vmem:[%s4910 + $0x3c] sm:$0xf]
      %v4927 = vunpack.c.l.b16 %v4769
      %v4928 = vunpack.c.l.b16 %v4772
      %v4929 = vunpack.c.l.b16 %v4776
      %v4930 = vunpack.c.l.b16 %v4779
      %v4931 = vunpack.c.l.b16 %v4783
      %v4932 = vunpack.c.l.b16 %v4786
      %v4933 = vunpack.c.l.b16 %v4790
      %v4934 = vunpack.c.l.b16 %v4793
      %v4935 = vunpack.c.l.b16 %v4797
      %v4936 = vunpack.c.l.b16 %v4800
      %v4937 = vunpack.c.l.b16 %v4804
      %v4938 = vunpack.c.l.b16 %v4807
      %v4939 = vunpack.c.l.b16 %v4811
      %v4940 = vunpack.c.l.b16 %v4814
      %v4941 = vunpack.c.l.b16 %v4818
      %v4942 = vunpack.c.l.b16 %v4821
      %v4943 = vunpack.c.l.b16 %v4825
      %v4944 = vunpack.c.l.b16 %v4828
      %v4945 = vunpack.c.l.b16 %v4832
      %v4946 = vunpack.c.l.b16 %v4835
      %v4947 = vunpack.c.l.b16 %v4839
      %v4948 = vunpack.c.l.b16 %v4842
      %v4949 = vunpack.c.l.b16 %v4846
      %v4950 = vunpack.c.l.b16 %v4849
      %v4951 = vunpack.c.l.b16 %v4853
      %v4952 = vunpack.c.l.b16 %v4856
      %v4953 = vunpack.c.l.b16 %v4860
      %v4954 = vunpack.c.l.b16 %v4863
      %v4955 = vunpack.c.l.b16 %v4867
      %v4956 = vunpack.c.l.b16 %v4870
      %v4957 = vunpack.c.l.b16 %v4874
      %v4958 = vunpack.c.l.b16 %v4877
      %v4959 = vpack.c.b16 %v4928, %v4927
      %v4960 = vpack.c.b16 %v4930, %v4929
      %v4961 = vpack.c.b16 %v4932, %v4931
      %v4962 = vpack.c.b16 %v4934, %v4933
      %v4963 = vpack.c.b16 %v4936, %v4935
      %v4964 = vpack.c.b16 %v4938, %v4937
      %v4965 = vpack.c.b16 %v4940, %v4939
      %v4966 = vpack.c.b16 %v4942, %v4941
      %v4967 = vpack.c.b16 %v4944, %v4943
      %v4968 = vpack.c.b16 %v4946, %v4945
      %v4969 = vpack.c.b16 %v4948, %v4947
      %v4970 = vpack.c.b16 %v4950, %v4949
      %v4971 = vpack.c.b16 %v4952, %v4951
      %v4972 = vpack.c.b16 %v4954, %v4953
      %v4973 = vpack.c.b16 %v4956, %v4955
      %v4974 = vpack.c.b16 %v4958, %v4957
      %v5007 = vunpack.c.l.b16 %v4911
      %v5008 = vunpack.c.l.b16 %v4912
      %v5009 = vunpack.c.l.b16 %v4913
      %v5010 = vunpack.c.l.b16 %v4914
      %v5011 = vunpack.c.l.b16 %v4915
      %v5012 = vunpack.c.l.b16 %v4916
      %v5013 = vunpack.c.l.b16 %v4917
      %v5014 = vunpack.c.l.b16 %v4918
      %v5015 = vunpack.c.l.b16 %v4919
      %v5016 = vunpack.c.l.b16 %v4920
      %v5017 = vunpack.c.l.b16 %v4921
      %v5018 = vunpack.c.l.b16 %v4922
      %v5019 = vunpack.c.l.b16 %v4923
      %v5020 = vunpack.c.l.b16 %v4924
      %v5021 = vunpack.c.l.b16 %v4925
      %v5022 = vunpack.c.l.b16 %v4926
      %v5023 = vpack.c.b16 %v5008, %v5007
      %v5024 = vpack.c.b16 %v5010, %v5009
      %v5025 = vpack.c.b16 %v5012, %v5011
      %v5026 = vpack.c.b16 %v5014, %v5013
      %v5027 = vpack.c.b16 %v5016, %v5015
      %v5028 = vpack.c.b16 %v5018, %v5017
      %v5029 = vpack.c.b16 %v5020, %v5019
      %v5030 = vpack.c.b16 %v5022, %v5021
      %5039 = vmatpush.bf16.msra.mxu0 %v5030
      %5040 = vmatpush.bf16.msra.mxu0 %v5029
      %5041 = vmatpush.bf16.msra.mxu0 %v5028
      %5042 = vmatpush.bf16.msra.mxu0 %v5027
      %5043 = vmatpush.bf16.msra.mxu0 %v5026
      %5044 = vmatpush.bf16.msra.mxu0 %v5025
      %5045 = vmatpush.bf16.msra.mxu0 %v5024
      %5046 = vmatpush.bf16.msra.mxu0 %v5023
      %5047 = vmatmul.bf16.gmra.mxu0 %v4959
      %v5048 = vpop.f32.mrf.mxu0
      %v5049 = vadd.f32 0.0, %v5048
      %v5050 = vpop.f32.mrf.mxu0
      %v5051 = vadd.f32 0.0, %v5050
      %5052 = vmatmul.bf16.gmra.mxu0 %v4960
      %v5053 = vpop.f32.mrf.mxu0
      %v5054 = vadd.f32 0.0, %v5053
      %v5055 = vpop.f32.mrf.mxu0
      %v5056 = vadd.f32 0.0, %v5055
      %5057 = vmatmul.bf16.gmra.mxu0 %v4961
      %v5058 = vpop.f32.mrf.mxu0
      %v5059 = vadd.f32 0.0, %v5058
      %v5060 = vpop.f32.mrf.mxu0
      %v5061 = vadd.f32 0.0, %v5060
      %5062 = vmatmul.bf16.gmra.mxu0 %v4962
      %v5063 = vpop.f32.mrf.mxu0
      %v5064 = vadd.f32 0.0, %v5063
      %v5065 = vpop.f32.mrf.mxu0
      %v5066 = vadd.f32 0.0, %v5065
      %5067 = vmatmul.bf16.gmra.mxu0 %v4963
      %v5068 = vpop.f32.mrf.mxu0
      %v5069 = vadd.f32 0.0, %v5068
      %v5070 = vpop.f32.mrf.mxu0
      %v5071 = vadd.f32 0.0, %v5070
      %5072 = vmatmul.bf16.gmra.mxu0 %v4964
      %v5073 = vpop.f32.mrf.mxu0
      %v5074 = vadd.f32 0.0, %v5073
      %v5075 = vpop.f32.mrf.mxu0
      %v5076 = vadd.f32 0.0, %v5075
      %5077 = vmatmul.bf16.gmra.mxu0 %v4965
      %v5078 = vpop.f32.mrf.mxu0
      %v5079 = vadd.f32 0.0, %v5078
      %v5080 = vpop.f32.mrf.mxu0
      %v5081 = vadd.f32 0.0, %v5080
      %5082 = vmatmul.bf16.gmra.mxu0 %v4966
      %v5083 = vpop.f32.mrf.mxu0
      %v5084 = vadd.f32 0.0, %v5083
      %v5085 = vpop.f32.mrf.mxu0
      %v5086 = vadd.f32 0.0, %v5085
      %5087 = vmatmul.bf16.gmra.mxu0 %v4967
      %v5088 = vpop.f32.mrf.mxu0
      %v5089 = vadd.f32 0.0, %v5088
      %v5090 = vpop.f32.mrf.mxu0
      %v5091 = vadd.f32 0.0, %v5090
      %5092 = vmatmul.bf16.gmra.mxu0 %v4968
      %v5093 = vpop.f32.mrf.mxu0
      %v5094 = vadd.f32 0.0, %v5093
      %v5095 = vpop.f32.mrf.mxu0
      %v5096 = vadd.f32 0.0, %v5095
      %5097 = vmatmul.bf16.gmra.mxu0 %v4969
      %v5098 = vpop.f32.mrf.mxu0
      %v5099 = vadd.f32 0.0, %v5098
      %v5100 = vpop.f32.mrf.mxu0
      %v5101 = vadd.f32 0.0, %v5100
      %5102 = vmatmul.bf16.gmra.mxu0 %v4970
      %v5103 = vpop.f32.mrf.mxu0
      %v5104 = vadd.f32 0.0, %v5103
      %v5105 = vpop.f32.mrf.mxu0
      %v5106 = vadd.f32 0.0, %v5105
      %5107 = vmatmul.bf16.gmra.mxu0 %v4971
      %v5108 = vpop.f32.mrf.mxu0
      %v5109 = vadd.f32 0.0, %v5108
      %v5110 = vpop.f32.mrf.mxu0
      %v5111 = vadd.f32 0.0, %v5110
      %5112 = vmatmul.bf16.gmra.mxu0 %v4972
      %v5113 = vpop.f32.mrf.mxu0
      %v5114 = vadd.f32 0.0, %v5113
      %v5115 = vpop.f32.mrf.mxu0
      %v5116 = vadd.f32 0.0, %v5115
      %5117 = vmatmul.bf16.gmra.mxu0 %v4973
      %v5118 = vpop.f32.mrf.mxu0
      %v5119 = vadd.f32 0.0, %v5118
      %v5120 = vpop.f32.mrf.mxu0
      %v5121 = vadd.f32 0.0, %v5120
      %5122 = vmatmul.bf16.gmra.mxu0 %v4974
      %v5123 = vpop.f32.mrf.mxu0
      %v5124 = vadd.f32 0.0, %v5123
      %v5125 = vpop.f32.mrf.mxu0
      %v5126 = vadd.f32 0.0, %v5125
      %5127 = vdwg.mxu0
      %v5128 = vadd.f32 %v4878, %v5049
      %v5129 = vadd.f32 %v4879, %v5051
      %v5130 = vadd.f32 %v4880, %v5054
      %v5131 = vadd.f32 %v4881, %v5056
      %v5132 = vadd.f32 %v4882, %v5059
      %v5133 = vadd.f32 %v4883, %v5061
      %v5134 = vadd.f32 %v4884, %v5064
      %v5135 = vadd.f32 %v4885, %v5066
      %v5136 = vadd.f32 %v4886, %v5069
      %v5137 = vadd.f32 %v4887, %v5071
      %v5138 = vadd.f32 %v4888, %v5074
      %v5139 = vadd.f32 %v4889, %v5076
      %v5140 = vadd.f32 %v4890, %v5079
      %v5141 = vadd.f32 %v4891, %v5081
      %v5142 = vadd.f32 %v4892, %v5084
      %v5143 = vadd.f32 %v4893, %v5086
      %v5144 = vadd.f32 %v4894, %v5089
      %v5145 = vadd.f32 %v4895, %v5091
      %v5146 = vadd.f32 %v4896, %v5094
      %v5147 = vadd.f32 %v4897, %v5096
      %v5148 = vadd.f32 %v4898, %v5099
      %v5149 = vadd.f32 %v4899, %v5101
      %v5150 = vadd.f32 %v4900, %v5104
      %v5151 = vadd.f32 %v4901, %v5106
      %v5152 = vadd.f32 %v4902, %v5109
      %v5153 = vadd.f32 %v4903, %v5111
      %v5154 = vadd.f32 %v4904, %v5114
      %v5155 = vadd.f32 %v4905, %v5116
      %v5156 = vadd.f32 %v4906, %v5119
      %v5157 = vadd.f32 %v4907, %v5121
      %v5158 = vadd.f32 %v4908, %v5124
      %v5159 = vadd.f32 %v4909, %v5126
      %5160 = vst [vmem:[#allocation2] sm:$0xff] %v5128
      %5161 = vst [vmem:[#allocation2 + $0x8] sm:$0xff] %v5129
      %5162 = vst [vmem:[#allocation2 + $0x10] sm:$0xff] %v5130
      %5163 = vst [vmem:[#allocation2 + $0x18] sm:$0xff] %v5131
      %5164 = vst [vmem:[#allocation2 + $0x20] sm:$0xff] %v5132
      %5165 = vst [vmem:[#allocation2 + $0x28] sm:$0xff] %v5133
      %5166 = vst [vmem:[#allocation2 + $0x30] sm:$0xff] %v5134
      %5167 = vst [vmem:[#allocation2 + $0x38] sm:$0xff] %v5135
      %5168 = vst [vmem:[#allocation2 + $0x40] sm:$0xff] %v5136
      %5169 = vst [vmem:[#allocation2 + $0x48] sm:$0xff] %v5137
      %5170 = vst [vmem:[#allocation2 + $0x50] sm:$0xff] %v5138
      %5171 = vst [vmem:[#allocation2 + $0x58] sm:$0xff] %v5139
      %5172 = vst [vmem:[#allocation2 + $0x60] sm:$0xff] %v5140
      %5173 = vst [vmem:[#allocation2 + $0x68] sm:$0xff] %v5141
      %5174 = vst [vmem:[#allocation2 + $0x70] sm:$0xff] %v5142
      %5175 = vst [vmem:[#allocation2 + $0x78] sm:$0xff] %v5143
      %5176 = vst [vmem:[#allocation2 + $0x80] sm:$0xff] %v5144
      %5177 = vst [vmem:[#allocation2 + $0x88] sm:$0xff] %v5145
      %5178 = vst [vmem:[#allocation2 + $0x90] sm:$0xff] %v5146
      %5179 = vst [vmem:[#allocation2 + $0x98] sm:$0xff] %v5147
      %5180 = vst [vmem:[#allocation2 + $0xa0] sm:$0xff] %v5148
      %5181 = vst [vmem:[#allocation2 + $0xa8] sm:$0xff] %v5149
      %5182 = vst [vmem:[#allocation2 + $0xb0] sm:$0xff] %v5150
      %5183 = vst [vmem:[#allocation2 + $0xb8] sm:$0xff] %v5151
      %5184 = vst [vmem:[#allocation2 + $0xc0] sm:$0xff] %v5152
      %5185 = vst [vmem:[#allocation2 + $0xc8] sm:$0xff] %v5153
      %5186 = vst [vmem:[#allocation2 + $0xd0] sm:$0xff] %v5154
      %5187 = vst [vmem:[#allocation2 + $0xd8] sm:$0xff] %v5155
      %5188 = vst [vmem:[#allocation2 + $0xe0] sm:$0xff] %v5156
      %5189 = vst [vmem:[#allocation2 + $0xe8] sm:$0xff] %v5157
      %5190 = vst [vmem:[#allocation2 + $0xf0] sm:$0xff] %v5158
      %5191 = vst [vmem:[#allocation2 + $0xf8] sm:$0xff] %v5159
      %v5192 = vld [vmem:[#allocation2] sm:$0xff]
      %v5193 = vld [vmem:[#allocation2 + $0x8] sm:$0xff]
      %v5194 = vld [vmem:[#allocation2 + $0x10] sm:$0xff]
      %v5195 = vld [vmem:[#allocation2 + $0x18] sm:$0xff]
      %v5196 = vld [vmem:[#allocation2 + $0x20] sm:$0xff]
      %v5197 = vld [vmem:[#allocation2 + $0x28] sm:$0xff]
      %v5198 = vld [vmem:[#allocation2 + $0x30] sm:$0xff]
      %v5199 = vld [vmem:[#allocation2 + $0x38] sm:$0xff]
      %v5200 = vld [vmem:[#allocation2 + $0x40] sm:$0xff]
      %v5201 = vld [vmem:[#allocation2 + $0x48] sm:$0xff]
      %v5202 = vld [vmem:[#allocation2 + $0x50] sm:$0xff]
      %v5203 = vld [vmem:[#allocation2 + $0x58] sm:$0xff]
      %v5204 = vld [vmem:[#allocation2 + $0x60] sm:$0xff]
      %v5205 = vld [vmem:[#allocation2 + $0x68] sm:$0xff]
      %v5206 = vld [vmem:[#allocation2 + $0x70] sm:$0xff]
      %v5207 = vld [vmem:[#allocation2 + $0x78] sm:$0xff]
      %v5208 = vld [vmem:[#allocation2 + $0x80] sm:$0xff]
      %v5209 = vld [vmem:[#allocation2 + $0x88] sm:$0xff]
      %v5210 = vld [vmem:[#allocation2 + $0x90] sm:$0xff]
      %v5211 = vld [vmem:[#allocation2 + $0x98] sm:$0xff]
      %v5212 = vld [vmem:[#allocation2 + $0xa0] sm:$0xff]
      %v5213 = vld [vmem:[#allocation2 + $0xa8] sm:$0xff]
      %v5214 = vld [vmem:[#allocation2 + $0xb0] sm:$0xff]
      %v5215 = vld [vmem:[#allocation2 + $0xb8] sm:$0xff]
      %v5216 = vld [vmem:[#allocation2 + $0xc0] sm:$0xff]
      %v5217 = vld [vmem:[#allocation2 + $0xc8] sm:$0xff]
      %v5218 = vld [vmem:[#allocation2 + $0xd0] sm:$0xff]
      %v5219 = vld [vmem:[#allocation2 + $0xd8] sm:$0xff]
      %v5220 = vld [vmem:[#allocation2 + $0xe0] sm:$0xff]
      %v5221 = vld [vmem:[#allocation2 + $0xe8] sm:$0xff]
      %v5222 = vld [vmem:[#allocation2 + $0xf0] sm:$0xff]
      %v5223 = vld [vmem:[#allocation2 + $0xf8] sm:$0xff]
      %v5224 = vpack.c.bf16 %v5192, %v5192
      %v5225 = vpack.c.bf16 %v5193, %v5193
      %v5226 = vpack.c.bf16 %v5194, %v5194
      %v5227 = vpack.c.bf16 %v5195, %v5195
      %v5228 = vpack.c.bf16 %v5196, %v5196
      %v5229 = vpack.c.bf16 %v5197, %v5197
      %v5230 = vpack.c.bf16 %v5198, %v5198
      %v5231 = vpack.c.bf16 %v5199, %v5199
      %v5232 = vpack.c.bf16 %v5200, %v5200
      %v5233 = vpack.c.bf16 %v5201, %v5201
      %v5234 = vpack.c.bf16 %v5202, %v5202
      %v5235 = vpack.c.bf16 %v5203, %v5203
      %v5236 = vpack.c.bf16 %v5204, %v5204
      %v5237 = vpack.c.bf16 %v5205, %v5205
      %v5238 = vpack.c.bf16 %v5206, %v5206
      %v5239 = vpack.c.bf16 %v5207, %v5207
      %v5240 = vpack.c.bf16 %v5208, %v5208
      %v5241 = vpack.c.bf16 %v5209, %v5209
      %v5242 = vpack.c.bf16 %v5210, %v5210
      %v5243 = vpack.c.bf16 %v5211, %v5211
      %v5244 = vpack.c.bf16 %v5212, %v5212
      %v5245 = vpack.c.bf16 %v5213, %v5213
      %v5246 = vpack.c.bf16 %v5214, %v5214
      %v5247 = vpack.c.bf16 %v5215, %v5215
      %v5248 = vpack.c.bf16 %v5216, %v5216
      %v5249 = vpack.c.bf16 %v5217, %v5217
      %v5250 = vpack.c.bf16 %v5218, %v5218
      %v5251 = vpack.c.bf16 %v5219, %v5219
      %v5252 = vpack.c.bf16 %v5220, %v5220
      %v5253 = vpack.c.bf16 %v5221, %v5221
      %v5254 = vpack.c.bf16 %v5222, %v5222
      %v5255 = vpack.c.bf16 %v5223, %v5223
      %5256 = vst [vmem:[%s208] sm:$0xf] %v5224
      %5257 = vst [vmem:[%s208 + $0x4] sm:$0xf] %v5225
      %5258 = vst [vmem:[%s208 + $0x8] sm:$0xf] %v5226
      %5259 = vst [vmem:[%s208 + $0xc] sm:$0xf] %v5227
      %5260 = vst [vmem:[%s208 + $0x10] sm:$0xf] %v5228
      %5261 = vst [vmem:[%s208 + $0x14] sm:$0xf] %v5229
      %5262 = vst [vmem:[%s208 + $0x18] sm:$0xf] %v5230
      %5263 = vst [vmem:[%s208 + $0x1c] sm:$0xf] %v5231
      %5264 = vst [vmem:[%s208 + $0x20] sm:$0xf] %v5232
      %5265 = vst [vmem:[%s208 + $0x24] sm:$0xf] %v5233
      %5266 = vst [vmem:[%s208 + $0x28] sm:$0xf] %v5234
      %5267 = vst [vmem:[%s208 + $0x2c] sm:$0xf] %v5235
      %5268 = vst [vmem:[%s208 + $0x30] sm:$0xf] %v5236
      %5269 = vst [vmem:[%s208 + $0x34] sm:$0xf] %v5237
      %5270 = vst [vmem:[%s208 + $0x38] sm:$0xf] %v5238
      %5271 = vst [vmem:[%s208 + $0x3c] sm:$0xf] %v5239
      %5272 = vst [vmem:[%s208 + $0x40] sm:$0xf] %v5240
      %5273 = vst [vmem:[%s208 + $0x44] sm:$0xf] %v5241
      %5274 = vst [vmem:[%s208 + $0x48] sm:$0xf] %v5242
      %5275 = vst [vmem:[%s208 + $0x4c] sm:$0xf] %v5243
      %5276 = vst [vmem:[%s208 + $0x50] sm:$0xf] %v5244
      %5277 = vst [vmem:[%s208 + $0x54] sm:$0xf] %v5245
      %5278 = vst [vmem:[%s208 + $0x58] sm:$0xf] %v5246
      %5279 = vst [vmem:[%s208 + $0x5c] sm:$0xf] %v5247
      %5280 = vst [vmem:[%s208 + $0x60] sm:$0xf] %v5248
      %5281 = vst [vmem:[%s208 + $0x64] sm:$0xf] %v5249
      %5282 = vst [vmem:[%s208 + $0x68] sm:$0xf] %v5250
      %5283 = vst [vmem:[%s208 + $0x6c] sm:$0xf] %v5251
      %5284 = vst [vmem:[%s208 + $0x70] sm:$0xf] %v5252
      %5285 = vst [vmem:[%s208 + $0x74] sm:$0xf] %v5253
      %5286 = vst [vmem:[%s208 + $0x78] sm:$0xf] %v5254
      %5287 = vst [vmem:[%s208 + $0x7c] sm:$0xf] %v5255
      %v5288 = vadd.f32 %v5192, %v5193
      %v5289 = vadd.f32 %v5288, %v5194
      %v5290 = vadd.f32 %v5289, %v5195
      %v5291 = vadd.f32 %v5290, %v5196
      %v5292 = vadd.f32 %v5291, %v5197
      %v5293 = vadd.f32 %v5292, %v5198
      %v5294 = vadd.f32 %v5293, %v5199
      %v5295 = vadd.f32 %v5294, %v5200
      %v5296 = vadd.f32 %v5295, %v5201
      %v5297 = vadd.f32 %v5296, %v5202
      %v5298 = vadd.f32 %v5297, %v5203
      %v5299 = vadd.f32 %v5298, %v5204
      %v5300 = vadd.f32 %v5299, %v5205
      %v5301 = vadd.f32 %v5300, %v5206
      %v5302 = vadd.f32 %v5301, %v5207
      %v5303 = vadd.f32 %v5302, %v5208
      %v5304 = vadd.f32 %v5303, %v5209
      %v5305 = vadd.f32 %v5304, %v5210
      %v5306 = vadd.f32 %v5305, %v5211
      %v5307 = vadd.f32 %v5306, %v5212
      %v5308 = vadd.f32 %v5307, %v5213
      %v5309 = vadd.f32 %v5308, %v5214
      %v5310 = vadd.f32 %v5309, %v5215
      %v5311 = vadd.f32 %v5310, %v5216
      %v5312 = vadd.f32 %v5311, %v5217
      %v5313 = vadd.f32 %v5312, %v5218
      %v5314 = vadd.f32 %v5313, %v5219
      %v5315 = vadd.f32 %v5314, %v5220
      %v5316 = vadd.f32 %v5315, %v5221
      %v5317 = vadd.f32 %v5316, %v5222
      %v5318 = vadd.f32 %v5317, %v5223
      %v5319 = vrot.slane %v5318, 4
      %v5320 = vadd.f32 %v5318, %v5319
      %v5321 = vrot.slane %v5320, 2
      %v5322 = vadd.f32 %v5320, %v5321
      %v5323 = vrot.slane %v5322, 1
      %v5324 = vadd.f32 %v5322, %v5323
      %5325 = vst [vmem:[%s211] sm:$0x1] %v5324
      %v5326 = vmul.f32 %v5192, %v5192
      %v5327 = vmul.f32 %v5193, %v5193
      %v5328 = vmul.f32 %v5194, %v5194
      %v5329 = vmul.f32 %v5195, %v5195
      %v5330 = vmul.f32 %v5196, %v5196
      %v5331 = vmul.f32 %v5197, %v5197
      %v5332 = vmul.f32 %v5198, %v5198
      %v5333 = vmul.f32 %v5199, %v5199
      %v5334 = vmul.f32 %v5200, %v5200
      %v5335 = vmul.f32 %v5201, %v5201
      %v5336 = vmul.f32 %v5202, %v5202
      %v5337 = vmul.f32 %v5203, %v5203
      %v5338 = vmul.f32 %v5204, %v5204
      %v5339 = vmul.f32 %v5205, %v5205
      %v5340 = vmul.f32 %v5206, %v5206
      %v5341 = vmul.f32 %v5207, %v5207
      %v5342 = vmul.f32 %v5208, %v5208
      %v5343 = vmul.f32 %v5209, %v5209
      %v5344 = vmul.f32 %v5210, %v5210
      %v5345 = vmul.f32 %v5211, %v5211
      %v5346 = vmul.f32 %v5212, %v5212
      %v5347 = vmul.f32 %v5213, %v5213
      %v5348 = vmul.f32 %v5214, %v5214
      %v5349 = vmul.f32 %v5215, %v5215
      %v5350 = vmul.f32 %v5216, %v5216
      %v5351 = vmul.f32 %v5217, %v5217
      %v5352 = vmul.f32 %v5218, %v5218
      %v5353 = vmul.f32 %v5219, %v5219
      %v5354 = vmul.f32 %v5220, %v5220
      %v5355 = vmul.f32 %v5221, %v5221
      %v5356 = vmul.f32 %v5222, %v5222
      %v5357 = vmul.f32 %v5223, %v5223
      %v5358 = vadd.f32 %v5326, %v5327
      %v5359 = vadd.f32 %v5358, %v5328
      %v5360 = vadd.f32 %v5359, %v5329
      %v5361 = vadd.f32 %v5360, %v5330
      %v5362 = vadd.f32 %v5361, %v5331
      %v5363 = vadd.f32 %v5362, %v5332
      %v5364 = vadd.f32 %v5363, %v5333
      %v5365 = vadd.f32 %v5364, %v5334
      %v5366 = vadd.f32 %v5365, %v5335
      %v5367 = vadd.f32 %v5366, %v5336
      %v5368 = vadd.f32 %v5367, %v5337
      %v5369 = vadd.f32 %v5368, %v5338
      %v5370 = vadd.f32 %v5369, %v5339
      %v5371 = vadd.f32 %v5370, %v5340
      %v5372 = vadd.f32 %v5371, %v5341
      %v5373 = vadd.f32 %v5372, %v5342
      %v5374 = vadd.f32 %v5373, %v5343
      %v5375 = vadd.f32 %v5374, %v5344
      %v5376 = vadd.f32 %v5375, %v5345
      %v5377 = vadd.f32 %v5376, %v5346
      %v5378 = vadd.f32 %v5377, %v5347
      %v5379 = vadd.f32 %v5378, %v5348
      %v5380 = vadd.f32 %v5379, %v5349
      %v5381 = vadd.f32 %v5380, %v5350
      %v5382 = vadd.f32 %v5381, %v5351
      %v5383 = vadd.f32 %v5382, %v5352
      %v5384 = vadd.f32 %v5383, %v5353
      %v5385 = vadd.f32 %v5384, %v5354
      %v5386 = vadd.f32 %v5385, %v5355
      %v5387 = vadd.f32 %v5386, %v5356
      %v5388 = vadd.f32 %v5387, %v5357
      %v5389 = vrot.slane %v5388, 4
      %v5390 = vadd.f32 %v5388, %v5389
      %v5391 = vrot.slane %v5390, 2
      %v5392 = vadd.f32 %v5390, %v5391
      %v5393 = vrot.slane %v5392, 1
      %v5394 = vadd.f32 %v5392, %v5393
      %5395 = vst [vmem:[%s214] sm:$0x1] %v5394
      %p5396 = scmp.lt.s32.totalorder %s16, 1
      %s5397 = scalar_select %p5396, %s16, 1
      %s5398 = smul.addr %s5397, 32
      %s5399 = smul.addr %s5398, 4
      %s5400 = scalar_lea.vmem %s2, %s5399
      %p5401 = scmp.lt.s32.totalorder %s16, 1
      %s5402 = scalar_select %p5401, %s16, 1
      %s5403 = scalar_lea.vmem %s3, %s5402
      %p5404 = scmp.lt.s32.totalorder %s16, 1
      %s5405 = scalar_select %p5404, %s16, 1
      %s5406 = scalar_lea.vmem %s4, %s5405
      // Predicated region
      $region29: #{residual_block_forward.2} parent=27 // pred_check
        %p5407 = pneg %p81
      $region30: #{residual_block_forward.2} parent=27 // pred_check_branch
        %5409 = sbr.rel (%p5407) target = $region32
      $region31: #{residual_block_forward.2} parent=27 // pred_region
        _
      $region32: #{residual_block_forward.2} parent=27 // pred_fallthru
        _
      // Predicated region
      $region33: #{residual_block_forward.2} parent=27 // pred_check
        %p5410 = pneg %p107
      $region34: #{residual_block_forward.2} parent=27 // pred_check_branch
        %5412 = sbr.rel (%p5410) target = $region36
      $region35: #{residual_block_forward.2} parent=27 // pred_region
        _
      $region36: #{residual_block_forward.2} parent=27 // pred_fallthru
        _
      // Predicated region
      $region37: #{residual_block_forward.2} parent=27 // pred_check
        %p5413 = pneg %p133
      $region38: #{residual_block_forward.2} parent=27 // pred_check_branch
        %5415 = sbr.rel (%p5413) target = $region40
      $region39: #{residual_block_forward.2} parent=27 // pred_region
        _
      $region40: #{residual_block_forward.2} parent=27 // pred_fallthru
        _
    $region28: #{residual_block_forward.2} parent=5 // pred_fallthru
      _
    %p5416 = scmp.le.s32.totalorder 2, %s11
    // Predicated region
    $region41: #{residual_block_forward.2} parent=5 // pred_check
      %p5417 = pneg %p5416
    $region42: #{residual_block_forward.2} parent=5 // pred_check_branch
      %5419 = sbr.rel (%p5417) target = $region44
    $region43: #{residual_block_forward.2} parent=5 // pred_region
      %s5420 = ssub.s32 %s11, 2
      // Predicated region
      $region45: #{residual_block_forward.2} parent=43 // pred_check
        %p5421 = pneg %p87
      $region46: #{residual_block_forward.2} parent=43 // pred_check_branch
        %5423 = sbr.rel (%p5421) target = $region48
      $region47: #{residual_block_forward.2} parent=43 // pred_region
        %p5424 = scmp.lt.s32.totalorder %s17, 1
        %s5425 = scalar_select %p5424, %s17, 1
        %s5426 = smul.addr %s5425, 32
        %s5427 = smul.addr %s5426, 4
        %s5428 = scalar_lea.vmem %s2, %s5427
      $region48: #{residual_block_forward.2} parent=43 // pred_fallthru
        _
      // Predicated region
      $region49: #{residual_block_forward.2} parent=43 // pred_check
        %p5429 = pneg %p113
      $region50: #{residual_block_forward.2} parent=43 // pred_check_branch
        %5431 = sbr.rel (%p5429) target = $region52
      $region51: #{residual_block_forward.2} parent=43 // pred_region
        %p5432 = scmp.lt.s32.totalorder %s17, 1
        %s5433 = scalar_select %p5432, %s17, 1
        %s5434 = scalar_lea.vmem %s3, %s5433
      $region52: #{residual_block_forward.2} parent=43 // pred_fallthru
        _
      // Predicated region
      $region53: #{residual_block_forward.2} parent=43 // pred_check
        %p5435 = pneg %p139
      $region54: #{residual_block_forward.2} parent=43 // pred_check_branch
        %5437 = sbr.rel (%p5435) target = $region56
      $region55: #{residual_block_forward.2} parent=43 // pred_region
        %p5438 = scmp.lt.s32.totalorder %s17, 1
        %s5439 = scalar_select %p5438, %s17, 1
        %s5440 = scalar_lea.vmem %s4, %s5439
      $region56: #{residual_block_forward.2} parent=43 // pred_fallthru
        _
    $region44: #{residual_block_forward.2} parent=5 // pred_fallthru
      _
  $region6: #{residual_block_forward.2} parent=0 // loop_footer
    %s15 = sadd.s32 1, %s11
  $region7: #{residual_block_forward.2} parent=0 // loop_footer_branch
    %10 = sbr.rel target = $region3
  $region8: #{residual_block_forward.2} parent=0 // loop_exit
    _

</llo_original>
